<compile_context>
chip_gen: v5e
topology: v5e:2x2
jax: 0.10.0
libtpu: 0.0.40
codegen_flags: <defaults>
</compile_context>

<pallas_src>
import functools

import jax
import jax.numpy as jnp
from jax import lax
from jax.experimental import pallas as pl
from jax.experimental.pallas import tpu as pltpu


def convlr_kernel(x_ref, w_ref, b_ref, mask_ref, out_ref, xw_ref, *, ktaps):
    """One batch-fold of the ConvLR recurrence.

    x_ref/out_ref: (W, C, L) f32 with L = Nb*(H+2P); every sample owns a
        [P pad | H data | P pad] lane segment whose pad lanes are kept at 0.
    w_ref:    (K, C, C) compute-dtype tap-major weights.
    b_ref:    (C, 1) f32 bias.
    mask_ref: (C, L) f32, 1.0 on data lanes / 0.0 on per-sample pad lanes.
    xw_ref:   (C, L + 2P) compute-dtype working scratch; tap k's shifted conv
              input is the static slice xw[:, k:k+L].
    """
    Wd, C, L = out_ref.shape
    K = ktaps
    P = (K - 1) // 2
    cdt = xw_ref.dtype

    # Only the 2*P global border lanes ever need to be zero; the middle
    # [P, P+L) is fully rewritten every recurrence step.  Done every grid step
    # (NOT gated on program_id) so it is megacore / v7x safe.
    if P > 0:
        xw_ref[:, :P] = jnp.zeros((C, P), cdt)
        xw_ref[:, P + L:] = jnp.zeros((C, P), cdt)

    # Hoisted out of both W loops (JAX does not CSE broadcast_in_dim).
    bias_full = jnp.broadcast_to(b_ref[...], (C, L)).astype(jnp.float32)
    maskf = mask_ref[...]

    def conv_relu(col):
        # (C, L) f32 -> (C, L) f32 with per-sample pad lanes forced back to 0.
        xw_ref[:, P:P + L] = col.astype(cdt)       # one cast + one store / step
        acc = bias_full
        for k in range(K):                         # static unroll over taps
            # Tap slices feed the MXU directly; f32 accumulation.
            acc = acc + jnp.dot(w_ref[k], xw_ref[:, k:k + L],
                                preferred_element_type=jnp.float32)
        # ReLU, then zero the pad lanes so the next conv input (and the pass-2
        # residual read) always sees clean "same" padding.
        return jnp.maximum(acc, 0.0) * maskf

    col0 = x_ref[0]
    out_ref[0] = col0

    # Unroll only while the carried column + tap temporaries stay small.
    unroll = bool(Wd <= 8 and C * L * 4 <= 128 * 1024)

    # Left-to-right pass: out[i] = conv(out[i-1]) + x[i]
    def fwd_body(i, prev):
        cur = conv_relu(prev) + x_ref[i]
        out_ref[i] = cur
        return cur

    last = lax.fori_loop(1, Wd, fwd_body, col0, unroll=unroll)

    # Right-to-left pass: out[i] = conv(out[i+1]) + out[i]   (stops at i = 1)
    def bwd_body(j, nxt):
        i = Wd - 2 - j
        cur = conv_relu(nxt) + out_ref[i]
        out_ref[i] = cur
        return cur

    lax.fori_loop(0, Wd - 2, bwd_body, last, unroll=unroll)


def _vmem_capacity_bytes():
    """Best-effort physical VMEM query; fall back to the v7x 64 MiB core."""
    try:
        info = pltpu.get_tpu_info()
        for name in ("vmem_capacity_bytes", "vmem_size_bytes", "vmem_bytes"):
            val = getattr(info, name, None)
            if val:
                return int(val)
    except Exception:  # pragma: no cover - hardware query is advisory only
        pass
    return 64 * 1024 * 1024


def _vmem_estimate(w, c, l, p, k, itemsize_c):
    """Rough per-grid-step VMEM residency (pipeline double-buffering)."""
    est = 2 * 2 * (w * c * l * 4)          # x + out f32 blocks, 2x buffered
    est += 2 * (k * c * c * itemsize_c)    # tap weights
    est += 2 * (c * l * 4)                 # pad-lane mask
    est += 2 * (c * 4)                     # bias
    est += c * (l + 2 * p) * itemsize_c    # working scratch
    return est


def _choose_batch_fold(n, hp, w, c, p, k, itemsize_c, vmem_budget,
                       lane_target=256):
    """Fold Nb samples into the lane dim: chase lane density (dominant lever
    at small H) within the VMEM budget; once the lane target is met, prefer an
    even number of grid steps so v7x's two TensorCores both get work."""
    nb = 1
    for d in range(1, n + 1):
        if n % d:
            continue
        if _vmem_estimate(w, c, d * hp, p, k, itemsize_c) > vmem_budget:
            break
        nb = d
        if d * hp >= lane_target and (n // d) % 2 == 0:
            break
    return nb


@functools.partial(jax.jit, static_argnames=("compute_dtype",))
def convlr_pallas(fea_nchw, weight_oihw, bias, compute_dtype=jnp.bfloat16):
    """fea_nchw: (N, C, H, W) f32; weight_oihw: (C, C, K, 1); bias: (C,)."""
    n, c, h, w = fea_nchw.shape
    k = weight_oihw.shape[2]
    p = (k - 1) // 2
    hp = h + 2 * p
    itemsize_c = jnp.dtype(compute_dtype).itemsize

    vmem_cap = _vmem_capacity_bytes()
    nb = _choose_batch_fold(n, hp, w, c, p, k, itemsize_c,
                            vmem_budget=int(0.4 * vmem_cap))
    # TODO(synk): if even nb=1 exceeds the VMEM budget (very large W*C*H),
    # stream x column-by-column (memory_space=pl.ANY + manual double-buffered
    # make_async_copy) so only the out stack stays resident.
    nblk = n // nb
    l = nb * hp

    # One pad + one transpose on each side of the kernel.  Callers that can
    # produce/consume the packed (N/Nb, W, C, Nb*(H+2P)) layout directly should
    # feed the pallas_call below and skip these full-tensor HBM round trips.
    xpad = jnp.pad(fea_nchw.astype(jnp.float32),
                   ((0, 0), (0, 0), (p, p), (0, 0)))          # (N, C, Hp, W)
    xpk = jnp.transpose(xpad.reshape(nblk, nb, c, hp, w),
                        (0, 4, 2, 1, 3)).reshape(nblk, w, c, l)

    # (C_out, C_in, K, 1) -> tap-major (K, C_out, C_in) in the compute dtype.
    w_taps = jnp.transpose(weight_oihw[..., 0], (2, 0, 1)).astype(compute_dtype)
    b = bias.reshape(c, 1).astype(jnp.float32)

    # 1.0 on data lanes, 0.0 on per-sample pad lanes.
    pos = jnp.arange(l, dtype=jnp.int32) % hp
    maskf = jnp.broadcast_to(
        ((pos >= p) & (pos < p + h)).astype(jnp.float32)[None, :], (c, l))

    vmem_limit = int(min(max(32 * 1024 * 1024,
                             2 * _vmem_estimate(w, c, l, p, k, itemsize_c)),
                         int(0.9 * vmem_cap)))

    kernel = functools.partial(convlr_kernel, ktaps=k)

    out = pl.pallas_call(
        kernel,
        grid=(nblk,),
        in_specs=[
            pl.BlockSpec((None, w, c, l), lambda i: (i, 0, 0, 0)),
            pl.BlockSpec((k, c, c), lambda i: (0, 0, 0)),
            pl.BlockSpec((c, 1), lambda i: (0, 0)),
            pl.BlockSpec((c, l), lambda i: (0, 0)),
        ],
        out_specs=pl.BlockSpec((None, w, c, l), lambda i: (i, 0, 0, 0)),
        out_shape=jax.ShapeDtypeStruct((nblk, w, c, l), jnp.float32),
        scratch_shapes=[pltpu.VMEM((c, l + 2 * p), compute_dtype)],
        input_output_aliases={0: 0},
        compiler_params=pltpu.CompilerParams(
            dimension_semantics=("parallel",),
            vmem_limit_bytes=vmem_limit),
    )(xpk, w_taps, b, maskf)

    # Packed (N/Nb, W, C, Nb*Hp) -> NCHW, dropping the per-sample pad lanes.
    out = out.reshape(nblk, w, c, nb, hp)[..., p:p + h]
    out = jnp.transpose(out, (0, 3, 2, 4, 1)).reshape(n, c, h, w)
    return out


def convlr_reference(fea_nchw, weight_oihw, bias):
    """Pure-JAX reference mirroring the PyTorch module (NCHW conv)."""
    n, c, h, w = fea_nchw.shape
    k = weight_oihw.shape[2]
    pad = (k - 1) // 2

    def conv_relu(x_nc_h1):
        y = jax.lax.conv_general_dilated(
            x_nc_h1, weight_oihw, window_strides=(1, 1),
            padding=((pad, pad), (0, 0)),
            dimension_numbers=("NCHW", "OIHW", "NCHW"))
        return jnp.maximum(y + bias[None, :, None, None], 0.0)

    cols = [fea_nchw[:, :, :, i:i + 1] for i in range(w)]
    for i in range(1, w):
        cols[i] = conv_relu(cols[i - 1]) + cols[i]
    for i in range(w - 2, 0, -1):
        cols[i] = conv_relu(cols[i + 1]) + cols[i]
    return jnp.concatenate(cols, axis=3)


if __name__ == "__main__":
    # Small shapes consistent with the module (in_out_channels plays C).
    N, C, H, W = 2, 32, 16, 6
    K = 9  # kernel_size=(9, 1)

    key = jax.random.PRNGKey(0)
    k1, k2, k3 = jax.random.split(key, 3)
    fea = jax.random.normal(k1, (N, C, H, W), dtype=jnp.float32)
    weight = 0.05 * jax.random.normal(k2, (C, C, K, 1), dtype=jnp.float32)
    bias = 0.1 * jax.random.normal(k3, (C,), dtype=jnp.float32)

    ref = convlr_reference(fea, weight, bias)

    # Default path: bf16 MXU operands, f32 accumulation -> bf16-level tolerance
    # (errors compound over the 2W-2 recurrence steps).
    out_bf16 = jax.block_until_ready(convlr_pallas(fea, weight, bias))
    assert out_bf16.shape == (N, C, H, W)
    assert jnp.allclose(out_bf16, ref, atol=5e-2, rtol=2e-2), (
        float(jnp.max(jnp.abs(out_bf16 - ref))))

    # f32 operand path: tight parity with the PyTorch/XLA reference.
    out_f32 = jax.block_until_ready(
        convlr_pallas(fea, weight, bias, compute_dtype=jnp.float32))
    assert jnp.allclose(out_f32, ref, atol=2e-3, rtol=2e-3), (
        float(jnp.max(jnp.abs(out_f32 - ref))))

    # TODO(synk): groups > 1 branch (grouped conv + 1x1 conv) not implemented;
    # the module default groups=1 is what this kernel covers.
    print("KERNEL_OK")
</pallas_src>

<mosaic_0001>
module attributes {stable_mosaic.version = 11 : i64} {
  func.func @convlr_kernel(%arg0: i32, %arg1: memref<1x6x32x48xf32, #tpu.memory_space<vmem>>, %arg2: memref<9x32x32xbf16, #tpu.memory_space<vmem>>, %arg3: memref<32x1xf32, #tpu.memory_space<vmem>>, %arg4: memref<32x48xf32, #tpu.memory_space<vmem>>, %arg5: memref<1x6x32x48xf32, #tpu.memory_space<vmem>>, %arg6: memref<32x56xbf16, #tpu.memory_space<vmem>>) attributes {dimension_semantics = [#tpu.dimension_semantics<parallel>], iteration_bounds = array<i64: 1>, scalar_prefetch = 0 : i64, scratch_operands = 1 : i64, tpu.core_type = #tpu.core_type<tc>, window_params = [{transform_indices = @transform_0, window_bounds = array<i64: 1, 6, 32, 48>}, {pipeline_mode = #tpu.pipeline_mode<synchronous>, transform_indices = @transform_1, window_bounds = array<i64: 9, 32, 32>}, {pipeline_mode = #tpu.pipeline_mode<synchronous>, transform_indices = @transform_2, window_bounds = array<i64: 32, 1>}, {pipeline_mode = #tpu.pipeline_mode<synchronous>, transform_indices = @transform_3, window_bounds = array<i64: 32, 48>}, {transform_indices = @transform_4, window_bounds = array<i64: 1, 6, 32, 48>}]} {
    %cst = arith.constant 0.000000e+00 : bf16
    %0 = vector.broadcast %cst : bf16 to vector<32x4xbf16>
    %c0 = arith.constant 0 : index
    %c0_0 = arith.constant 0 : index
    %1 = vector.load %arg6[%c0, %c0_0] : memref<32x56xbf16, #tpu.memory_space<vmem>>, vector<32x4xbf16>
    tpu.vector_store %arg6[%c0, %c0_0], %0 {strides = array<i32>} : memref<32x56xbf16, #tpu.memory_space<vmem>>, vector<32x4xbf16>,
    %cst_1 = arith.constant 0.000000e+00 : bf16
    %2 = vector.broadcast %cst_1 : bf16 to vector<32x4xbf16>
    %c0_2 = arith.constant 0 : index
    %c52 = arith.constant 52 : index
    %3 = vector.load %arg6[%c0_2, %c52] : memref<32x56xbf16, #tpu.memory_space<vmem>>, vector<32x4xbf16>
    tpu.vector_store %arg6[%c0_2, %c52], %2 {strides = array<i32>} : memref<32x56xbf16, #tpu.memory_space<vmem>>, vector<32x4xbf16>,
    %c0_3 = arith.constant 0 : index
    %c0_4 = arith.constant 0 : index
    %4 = vector.load %arg3[%c0_3, %c0_4] : memref<32x1xf32, #tpu.memory_space<vmem>>, vector<32x1xf32>
    %5 = vector.shape_cast %4 : vector<32x1xf32> to vector<32x1xf32>
    %6 = vector.broadcast %5 : vector<32x1xf32> to vector<32x48xf32>
    %c0_5 = arith.constant 0 : index
    %c0_6 = arith.constant 0 : index
    %7 = vector.load %arg4[%c0_5, %c0_6] : memref<32x48xf32, #tpu.memory_space<vmem>>, vector<32x48xf32>
    %c0_7 = arith.constant 0 : index
    %c0_8 = arith.constant 0 : index
    %c0_9 = arith.constant 0 : index
    %c0_10 = arith.constant 0 : index
    %8 = vector.load %arg1[%c0_7, %c0_8, %c0_9, %c0_10] : memref<1x6x32x48xf32, #tpu.memory_space<vmem>>, vector<1x1x32x48xf32>
    %9 = vector.shape_cast %8 : vector<1x1x32x48xf32> to vector<32x48xf32>
    %c0_11 = arith.constant 0 : index
    %c0_12 = arith.constant 0 : index
    %c0_13 = arith.constant 0 : index
    %c0_14 = arith.constant 0 : index
    %10 = vector.load %arg5[%c0_11, %c0_12, %c0_13, %c0_14] : memref<1x6x32x48xf32, #tpu.memory_space<vmem>>, vector<1x1x32x48xf32>
    %11 = vector.shape_cast %10 : vector<1x1x32x48xf32> to vector<32x48xf32>
    %12 = vector.shape_cast %9 : vector<32x48xf32> to vector<1x1x32x48xf32>
    tpu.vector_store %arg5[%c0_11, %c0_12, %c0_13, %c0_14], %12 {strides = array<i32>} : memref<1x6x32x48xf32, #tpu.memory_space<vmem>>, vector<1x1x32x48xf32>,
    %c1_i32 = arith.constant 1 : i32
    %13 = arith.truncf %9 : vector<32x48xf32> to vector<32x48xbf16>
    %c0_15 = arith.constant 0 : index
    %c4 = arith.constant 4 : index
    %14 = vector.load %arg6[%c0_15, %c4] : memref<32x56xbf16, #tpu.memory_space<vmem>>, vector<32x48xbf16>
    tpu.vector_store %arg6[%c0_15, %c4], %13 {strides = array<i32>} : memref<32x56xbf16, #tpu.memory_space<vmem>>, vector<32x48xbf16>,
    %c0_16 = arith.constant 0 : index
    %c0_17 = arith.constant 0 : index
    %c0_18 = arith.constant 0 : index
    %15 = vector.load %arg2[%c0_16, %c0_17, %c0_18] : memref<9x32x32xbf16, #tpu.memory_space<vmem>>, vector<1x32x32xbf16>
    %16 = vector.shape_cast %15 : vector<1x32x32xbf16> to vector<32x32xbf16>
    %c0_19 = arith.constant 0 : index
    %c0_20 = arith.constant 0 : index
    %17 = vector.load %arg6[%c0_19, %c0_20] : memref<32x56xbf16, #tpu.memory_space<vmem>>, vector<32x48xbf16>
    %cst_21 = arith.constant dense<0.000000e+00> : vector<32x48xf32>
    %18 = tpu.matmul %16, %17, %cst_21 {dimension_numbers = #tpu.dot_dimension_numbers<[1], [0], [0], [1], [0, 0, 1, 1], [], []>} : vector<32x32xbf16>, vector<32x48xbf16>, vector<32x48xf32> -> vector<32x48xf32>
    %19 = arith.addf %6, %18 : vector<32x48xf32>
    %c1 = arith.constant 1 : index
    %c0_22 = arith.constant 0 : index
    %c0_23 = arith.constant 0 : index
    %20 = vector.load %arg2[%c1, %c0_22, %c0_23] : memref<9x32x32xbf16, #tpu.memory_space<vmem>>, vector<1x32x32xbf16>
    %21 = vector.shape_cast %20 : vector<1x32x32xbf16> to vector<32x32xbf16>
    %c0_24 = arith.constant 0 : index
    %c1_25 = arith.constant 1 : index
    %22 = vector.load %arg6[%c0_24, %c1_25] : memref<32x56xbf16, #tpu.memory_space<vmem>>, vector<32x48xbf16>
    %cst_26 = arith.constant dense<0.000000e+00> : vector<32x48xf32>
    %23 = tpu.matmul %21, %22, %cst_26 {dimension_numbers = #tpu.dot_dimension_numbers<[1], [0], [0], [1], [0, 0, 1, 1], [], []>} : vector<32x32xbf16>, vector<32x48xbf16>, vector<32x48xf32> -> vector<32x48xf32>
    %24 = arith.addf %19, %23 : vector<32x48xf32>
    %c2 = arith.constant 2 : index
    %c0_27 = arith.constant 0 : index
    %c0_28 = arith.constant 0 : index
    %25 = vector.load %arg2[%c2, %c0_27, %c0_28] : memref<9x32x32xbf16, #tpu.memory_space<vmem>>, vector<1x32x32xbf16>
    %26 = vector.shape_cast %25 : vector<1x32x32xbf16> to vector<32x32xbf16>
    %c0_29 = arith.constant 0 : index
    %c2_30 = arith.constant 2 : index
    %27 = vector.load %arg6[%c0_29, %c2_30] : memref<32x56xbf16, #tpu.memory_space<vmem>>, vector<32x48xbf16>
    %cst_31 = arith.constant dense<0.000000e+00> : vector<32x48xf32>
    %28 = tpu.matmul %26, %27, %cst_31 {dimension_numbers = #tpu.dot_dimension_numbers<[1], [0], [0], [1], [0, 0, 1, 1], [], []>} : vector<32x32xbf16>, vector<32x48xbf16>, vector<32x48xf32> -> vector<32x48xf32>
    %29 = arith.addf %24, %28 : vector<32x48xf32>
    %c3 = arith.constant 3 : index
    %c0_32 = arith.constant 0 : index
    %c0_33 = arith.constant 0 : index
    %30 = vector.load %arg2[%c3, %c0_32, %c0_33] : memref<9x32x32xbf16, #tpu.memory_space<vmem>>, vector<1x32x32xbf16>
    %31 = vector.shape_cast %30 : vector<1x32x32xbf16> to vector<32x32xbf16>
    %c0_34 = arith.constant 0 : index
    %c3_35 = arith.constant 3 : index
    %32 = vector.load %arg6[%c0_34, %c3_35] : memref<32x56xbf16, #tpu.memory_space<vmem>>, vector<32x48xbf16>
    %cst_36 = arith.constant dense<0.000000e+00> : vector<32x48xf32>
    %33 = tpu.matmul %31, %32, %cst_36 {dimension_numbers = #tpu.dot_dimension_numbers<[1], [0], [0], [1], [0, 0, 1, 1], [], []>} : vector<32x32xbf16>, vector<32x48xbf16>, vector<32x48xf32> -> vector<32x48xf32>
    %34 = arith.addf %29, %33 : vector<32x48xf32>
    %c4_37 = arith.constant 4 : index
    %c0_38 = arith.constant 0 : index
    %c0_39 = arith.constant 0 : index
    %35 = vector.load %arg2[%c4_37, %c0_38, %c0_39] : memref<9x32x32xbf16, #tpu.memory_space<vmem>>, vector<1x32x32xbf16>
    %36 = vector.shape_cast %35 : vector<1x32x32xbf16> to vector<32x32xbf16>
    %c0_40 = arith.constant 0 : index
    %c4_41 = arith.constant 4 : index
    %37 = vector.load %arg6[%c0_40, %c4_41] : memref<32x56xbf16, #tpu.memory_space<vmem>>, vector<32x48xbf16>
    %cst_42 = arith.constant dense<0.000000e+00> : vector<32x48xf32>
    %38 = tpu.matmul %36, %37, %cst_42 {dimension_numbers = #tpu.dot_dimension_numbers<[1], [0], [0], [1], [0, 0, 1, 1], [], []>} : vector<32x32xbf16>, vector<32x48xbf16>, vector<32x48xf32> -> vector<32x48xf32>
    %39 = arith.addf %34, %38 : vector<32x48xf32>
    %c5 = arith.constant 5 : index
    %c0_43 = arith.constant 0 : index
    %c0_44 = arith.constant 0 : index
    %40 = vector.load %arg2[%c5, %c0_43, %c0_44] : memref<9x32x32xbf16, #tpu.memory_space<vmem>>, vector<1x32x32xbf16>
    %41 = vector.shape_cast %40 : vector<1x32x32xbf16> to vector<32x32xbf16>
    %c0_45 = arith.constant 0 : index
    %c5_46 = arith.constant 5 : index
    %42 = vector.load %arg6[%c0_45, %c5_46] : memref<32x56xbf16, #tpu.memory_space<vmem>>, vector<32x48xbf16>
    %cst_47 = arith.constant dense<0.000000e+00> : vector<32x48xf32>
    %43 = tpu.matmul %41, %42, %cst_47 {dimension_numbers = #tpu.dot_dimension_numbers<[1], [0], [0], [1], [0, 0, 1, 1], [], []>} : vector<32x32xbf16>, vector<32x48xbf16>, vector<32x48xf32> -> vector<32x48xf32>
    %44 = arith.addf %39, %43 : vector<32x48xf32>
    %c6 = arith.constant 6 : index
    %c0_48 = arith.constant 0 : index
    %c0_49 = arith.constant 0 : index
    %45 = vector.load %arg2[%c6, %c0_48, %c0_49] : memref<9x32x32xbf16, #tpu.memory_space<vmem>>, vector<1x32x32xbf16>
    %46 = vector.shape_cast %45 : vector<1x32x32xbf16> to vector<32x32xbf16>
    %c0_50 = arith.constant 0 : index
    %c6_51 = arith.constant 6 : index
    %47 = vector.load %arg6[%c0_50, %c6_51] : memref<32x56xbf16, #tpu.memory_space<vmem>>, vector<32x48xbf16>
    %cst_52 = arith.constant dense<0.000000e+00> : vector<32x48xf32>
    %48 = tpu.matmul %46, %47, %cst_52 {dimension_numbers = #tpu.dot_dimension_numbers<[1], [0], [0], [1], [0, 0, 1, 1], [], []>} : vector<32x32xbf16>, vector<32x48xbf16>, vector<32x48xf32> -> vector<32x48xf32>
    %49 = arith.addf %44, %48 : vector<32x48xf32>
    %c7 = arith.constant 7 : index
    %c0_53 = arith.constant 0 : index
    %c0_54 = arith.constant 0 : index
    %50 = vector.load %arg2[%c7, %c0_53, %c0_54] : memref<9x32x32xbf16, #tpu.memory_space<vmem>>, vector<1x32x32xbf16>
    %51 = vector.shape_cast %50 : vector<1x32x32xbf16> to vector<32x32xbf16>
    %c0_55 = arith.constant 0 : index
    %c7_56 = arith.constant 7 : index
    %52 = vector.load %arg6[%c0_55, %c7_56] : memref<32x56xbf16, #tpu.memory_space<vmem>>, vector<32x48xbf16>
    %cst_57 = arith.constant dense<0.000000e+00> : vector<32x48xf32>
    %53 = tpu.matmul %51, %52, %cst_57 {dimension_numbers = #tpu.dot_dimension_numbers<[1], [0], [0], [1], [0, 0, 1, 1], [], []>} : vector<32x32xbf16>, vector<32x48xbf16>, vector<32x48xf32> -> vector<32x48xf32>
    %54 = arith.addf %49, %53 : vector<32x48xf32>
    %c8 = arith.constant 8 : index
    %c0_58 = arith.constant 0 : index
    %c0_59 = arith.constant 0 : index
    %55 = vector.load %arg2[%c8, %c0_58, %c0_59] : memref<9x32x32xbf16, #tpu.memory_space<vmem>>, vector<1x32x32xbf16>
    %56 = vector.shape_cast %55 : vector<1x32x32xbf16> to vector<32x32xbf16>
    %c0_60 = arith.constant 0 : index
    %c8_61 = arith.constant 8 : index
    %57 = vector.load %arg6[%c0_60, %c8_61] : memref<32x56xbf16, #tpu.memory_space<vmem>>, vector<32x48xbf16>
    %cst_62 = arith.constant dense<0.000000e+00> : vector<32x48xf32>
    %58 = tpu.matmul %56, %57, %cst_62 {dimension_numbers = #tpu.dot_dimension_numbers<[1], [0], [0], [1], [0, 0, 1, 1], [], []>} : vector<32x32xbf16>, vector<32x48xbf16>, vector<32x48xf32> -> vector<32x48xf32>
    %59 = arith.addf %54, %58 : vector<32x48xf32>
    %cst_63 = arith.constant 0.000000e+00 : f32
    %60 = vector.broadcast %cst_63 : f32 to vector<32x48xf32>
    %61 = arith.maximumf %59, %60 : vector<32x48xf32>
    %62 = arith.mulf %61, %7 : vector<32x48xf32>
    %c0_64 = arith.constant 0 : index
    %63 = arith.index_cast %c1_i32 : i32 to index
    %c0_65 = arith.constant 0 : index
    %c0_66 = arith.constant 0 : index
    %64 = vector.load %arg1[%c0_64, %63, %c0_65, %c0_66] : memref<1x6x32x48xf32, #tpu.memory_space<vmem>>, vector<1x1x32x48xf32>
    %65 = vector.shape_cast %64 : vector<1x1x32x48xf32> to vector<32x48xf32>
    %66 = arith.addf %62, %65 : vector<32x48xf32>
    %c0_67 = arith.constant 0 : index
    %67 = arith.index_cast %c1_i32 : i32 to index
    %c0_68 = arith.constant 0 : index
    %c0_69 = arith.constant 0 : index
    %68 = vector.load %arg5[%c0_67, %67, %c0_68, %c0_69] : memref<1x6x32x48xf32, #tpu.memory_space<vmem>>, vector<1x1x32x48xf32>
    %69 = vector.shape_cast %68 : vector<1x1x32x48xf32> to vector<32x48xf32>
    %70 = vector.shape_cast %66 : vector<32x48xf32> to vector<1x1x32x48xf32>
    tpu.vector_store %arg5[%c0_67, %67, %c0_68, %c0_69], %70 {strides = array<i32>} : memref<1x6x32x48xf32, #tpu.memory_space<vmem>>, vector<1x1x32x48xf32>,
    %c2_i32 = arith.constant 2 : i32
    %71 = arith.truncf %66 : vector<32x48xf32> to vector<32x48xbf16>
    %c0_70 = arith.constant 0 : index
    %c4_71 = arith.constant 4 : index
    %72 = vector.load %arg6[%c0_70, %c4_71] : memref<32x56xbf16, #tpu.memory_space<vmem>>, vector<32x48xbf16>
    tpu.vector_store %arg6[%c0_70, %c4_71], %71 {strides = array<i32>} : memref<32x56xbf16, #tpu.memory_space<vmem>>, vector<32x48xbf16>,
    %c0_72 = arith.constant 0 : index
    %c0_73 = arith.constant 0 : index
    %c0_74 = arith.constant 0 : index
    %73 = vector.load %arg2[%c0_72, %c0_73, %c0_74] : memref<9x32x32xbf16, #tpu.memory_space<vmem>>, vector<1x32x32xbf16>
    %74 = vector.shape_cast %73 : vector<1x32x32xbf16> to vector<32x32xbf16>
    %c0_75 = arith.constant 0 : index
    %c0_76 = arith.constant 0 : index
    %75 = vector.load %arg6[%c0_75, %c0_76] : memref<32x56xbf16, #tpu.memory_space<vmem>>, vector<32x48xbf16>
    %cst_77 = arith.constant dense<0.000000e+00> : vector<32x48xf32>
    %76 = tpu.matmul %74, %75, %cst_77 {dimension_numbers = #tpu.dot_dimension_numbers<[1], [0], [0], [1], [0, 0, 1, 1], [], []>} : vector<32x32xbf16>, vector<32x48xbf16>, vector<32x48xf32> -> vector<32x48xf32>
    %77 = arith.addf %6, %76 : vector<32x48xf32>
    %c1_78 = arith.constant 1 : index
    %c0_79 = arith.constant 0 : index
    %c0_80 = arith.constant 0 : index
    %78 = vector.load %arg2[%c1_78, %c0_79, %c0_80] : memref<9x32x32xbf16, #tpu.memory_space<vmem>>, vector<1x32x32xbf16>
    %79 = vector.shape_cast %78 : vector<1x32x32xbf16> to vector<32x32xbf16>
    %c0_81 = arith.constant 0 : index
    %c1_82 = arith.constant 1 : index
    %80 = vector.load %arg6[%c0_81, %c1_82] : memref<32x56xbf16, #tpu.memory_space<vmem>>, vector<32x48xbf16>
    %cst_83 = arith.constant dense<0.000000e+00> : vector<32x48xf32>
    %81 = tpu.matmul %79, %80, %cst_83 {dimension_numbers = #tpu.dot_dimension_numbers<[1], [0], [0], [1], [0, 0, 1, 1], [], []>} : vector<32x32xbf16>, vector<32x48xbf16>, vector<32x48xf32> -> vector<32x48xf32>
    %82 = arith.addf %77, %81 : vector<32x48xf32>
    %c2_84 = arith.constant 2 : index
    %c0_85 = arith.constant 0 : index
    %c0_86 = arith.constant 0 : index
    %83 = vector.load %arg2[%c2_84, %c0_85, %c0_86] : memref<9x32x32xbf16, #tpu.memory_space<vmem>>, vector<1x32x32xbf16>
    %84 = vector.shape_cast %83 : vector<1x32x32xbf16> to vector<32x32xbf16>
    %c0_87 = arith.constant 0 : index
    %c2_88 = arith.constant 2 : index
    %85 = vector.load %arg6[%c0_87, %c2_88] : memref<32x56xbf16, #tpu.memory_space<vmem>>, vector<32x48xbf16>
    %cst_89 = arith.constant dense<0.000000e+00> : vector<32x48xf32>
    %86 = tpu.matmul %84, %85, %cst_89 {dimension_numbers = #tpu.dot_dimension_numbers<[1], [0], [0], [1], [0, 0, 1, 1], [], []>} : vector<32x32xbf16>, vector<32x48xbf16>, vector<32x48xf32> -> vector<32x48xf32>
    %87 = arith.addf %82, %86 : vector<32x48xf32>
    %c3_90 = arith.constant 3 : index
    %c0_91 = arith.constant 0 : index
    %c0_92 = arith.constant 0 : index
    %88 = vector.load %arg2[%c3_90, %c0_91, %c0_92] : memref<9x32x32xbf16, #tpu.memory_space<vmem>>, vector<1x32x32xbf16>
    %89 = vector.shape_cast %88 : vector<1x32x32xbf16> to vector<32x32xbf16>
    %c0_93 = arith.constant 0 : index
    %c3_94 = arith.constant 3 : index
    %90 = vector.load %arg6[%c0_93, %c3_94] : memref<32x56xbf16, #tpu.memory_space<vmem>>, vector<32x48xbf16>
    %cst_95 = arith.constant dense<0.000000e+00> : vector<32x48xf32>
    %91 = tpu.matmul %89, %90, %cst_95 {dimension_numbers = #tpu.dot_dimension_numbers<[1], [0], [0], [1], [0, 0, 1, 1], [], []>} : vector<32x32xbf16>, vector<32x48xbf16>, vector<32x48xf32> -> vector<32x48xf32>
    %92 = arith.addf %87, %91 : vector<32x48xf32>
    %c4_96 = arith.constant 4 : index
    %c0_97 = arith.constant 0 : index
    %c0_98 = arith.constant 0 : index
    %93 = vector.load %arg2[%c4_96, %c0_97, %c0_98] : memref<9x32x32xbf16, #tpu.memory_space<vmem>>, vector<1x32x32xbf16>
    %94 = vector.shape_cast %93 : vector<1x32x32xbf16> to vector<32x32xbf16>
    %c0_99 = arith.constant 0 : index
    %c4_100 = arith.constant 4 : index
    %95 = vector.load %arg6[%c0_99, %c4_100] : memref<32x56xbf16, #tpu.memory_space<vmem>>, vector<32x48xbf16>
    %cst_101 = arith.constant dense<0.000000e+00> : vector<32x48xf32>
    %96 = tpu.matmul %94, %95, %cst_101 {dimension_numbers = #tpu.dot_dimension_numbers<[1], [0], [0], [1], [0, 0, 1, 1], [], []>} : vector<32x32xbf16>, vector<32x48xbf16>, vector<32x48xf32> -> vector<32x48xf32>
    %97 = arith.addf %92, %96 : vector<32x48xf32>
    %c5_102 = arith.constant 5 : index
    %c0_103 = arith.constant 0 : index
    %c0_104 = arith.constant 0 : index
    %98 = vector.load %arg2[%c5_102, %c0_103, %c0_104] : memref<9x32x32xbf16, #tpu.memory_space<vmem>>, vector<1x32x32xbf16>
    %99 = vector.shape_cast %98 : vector<1x32x32xbf16> to vector<32x32xbf16>
    %c0_105 = arith.constant 0 : index
    %c5_106 = arith.constant 5 : index
    %100 = vector.load %arg6[%c0_105, %c5_106] : memref<32x56xbf16, #tpu.memory_space<vmem>>, vector<32x48xbf16>
    %cst_107 = arith.constant dense<0.000000e+00> : vector<32x48xf32>
    %101 = tpu.matmul %99, %100, %cst_107 {dimension_numbers = #tpu.dot_dimension_numbers<[1], [0], [0], [1], [0, 0, 1, 1], [], []>} : vector<32x32xbf16>, vector<32x48xbf16>, vector<32x48xf32> -> vector<32x48xf32>
    %102 = arith.addf %97, %101 : vector<32x48xf32>
    %c6_108 = arith.constant 6 : index
    %c0_109 = arith.constant 0 : index
    %c0_110 = arith.constant 0 : index
    %103 = vector.load %arg2[%c6_108, %c0_109, %c0_110] : memref<9x32x32xbf16, #tpu.memory_space<vmem>>, vector<1x32x32xbf16>
    %104 = vector.shape_cast %103 : vector<1x32x32xbf16> to vector<32x32xbf16>
    %c0_111 = arith.constant 0 : index
    %c6_112 = arith.constant 6 : index
    %105 = vector.load %arg6[%c0_111, %c6_112] : memref<32x56xbf16, #tpu.memory_space<vmem>>, vector<32x48xbf16>
    %cst_113 = arith.constant dense<0.000000e+00> : vector<32x48xf32>
    %106 = tpu.matmul %104, %105, %cst_113 {dimension_numbers = #tpu.dot_dimension_numbers<[1], [0], [0], [1], [0, 0, 1, 1], [], []>} : vector<32x32xbf16>, vector<32x48xbf16>, vector<32x48xf32> -> vector<32x48xf32>
    %107 = arith.addf %102, %106 : vector<32x48xf32>
    %c7_114 = arith.constant 7 : index
    %c0_115 = arith.constant 0 : index
    %c0_116 = arith.constant 0 : index
    %108 = vector.load %arg2[%c7_114, %c0_115, %c0_116] : memref<9x32x32xbf16, #tpu.memory_space<vmem>>, vector<1x32x32xbf16>
    %109 = vector.shape_cast %108 : vector<1x32x32xbf16> to vector<32x32xbf16>
    %c0_117 = arith.constant 0 : index
    %c7_118 = arith.constant 7 : index
    %110 = vector.load %arg6[%c0_117, %c7_118] : memref<32x56xbf16, #tpu.memory_space<vmem>>, vector<32x48xbf16>
    %cst_119 = arith.constant dense<0.000000e+00> : vector<32x48xf32>
    %111 = tpu.matmul %109, %110, %cst_119 {dimension_numbers = #tpu.dot_dimension_numbers<[1], [0], [0], [1], [0, 0, 1, 1], [], []>} : vector<32x32xbf16>, vector<32x48xbf16>, vector<32x48xf32> -> vector<32x48xf32>
    %112 = arith.addf %107, %111 : vector<32x48xf32>
    %c8_120 = arith.constant 8 : index
    %c0_121 = arith.constant 0 : index
    %c0_122 = arith.constant 0 : index
    %113 = vector.load %arg2[%c8_120, %c0_121, %c0_122] : memref<9x32x32xbf16, #tpu.memory_space<vmem>>, vector<1x32x32xbf16>
    %114 = vector.shape_cast %113 : vector<1x32x32xbf16> to vector<32x32xbf16>
    %c0_123 = arith.constant 0 : index
    %c8_124 = arith.constant 8 : index
    %115 = vector.load %arg6[%c0_123, %c8_124] : memref<32x56xbf16, #tpu.memory_space<vmem>>, vector<32x48xbf16>
    %cst_125 = arith.constant dense<0.000000e+00> : vector<32x48xf32>
    %116 = tpu.matmul %114, %115, %cst_125 {dimension_numbers = #tpu.dot_dimension_numbers<[1], [0], [0], [1], [0, 0, 1, 1], [], []>} : vector<32x32xbf16>, vector<32x48xbf16>, vector<32x48xf32> -> vector<32x48xf32>
    %117 = arith.addf %112, %116 : vector<32x48xf32>
    %cst_126 = arith.constant 0.000000e+00 : f32
    %118 = vector.broadcast %cst_126 : f32 to vector<32x48xf32>
    %119 = arith.maximumf %117, %118 : vector<32x48xf32>
    %120 = arith.mulf %119, %7 : vector<32x48xf32>
    %c0_127 = arith.constant 0 : index
    %121 = arith.index_cast %c2_i32 : i32 to index
    %c0_128 = arith.constant 0 : index
    %c0_129 = arith.constant 0 : index
    %122 = vector.load %arg1[%c0_127, %121, %c0_128, %c0_129] : memref<1x6x32x48xf32, #tpu.memory_space<vmem>>, vector<1x1x32x48xf32>
    %123 = vector.shape_cast %122 : vector<1x1x32x48xf32> to vector<32x48xf32>
    %124 = arith.addf %120, %123 : vector<32x48xf32>
    %c0_130 = arith.constant 0 : index
    %125 = arith.index_cast %c2_i32 : i32 to index
    %c0_131 = arith.constant 0 : index
    %c0_132 = arith.constant 0 : index
    %126 = vector.load %arg5[%c0_130, %125, %c0_131, %c0_132] : memref<1x6x32x48xf32, #tpu.memory_space<vmem>>, vector<1x1x32x48xf32>
    %127 = vector.shape_cast %126 : vector<1x1x32x48xf32> to vector<32x48xf32>
    %128 = vector.shape_cast %124 : vector<32x48xf32> to vector<1x1x32x48xf32>
    tpu.vector_store %arg5[%c0_130, %125, %c0_131, %c0_132], %128 {strides = array<i32>} : memref<1x6x32x48xf32, #tpu.memory_space<vmem>>, vector<1x1x32x48xf32>,
    %c3_i32 = arith.constant 3 : i32
    %129 = arith.truncf %124 : vector<32x48xf32> to vector<32x48xbf16>
    %c0_133 = arith.constant 0 : index
    %c4_134 = arith.constant 4 : index
    %130 = vector.load %arg6[%c0_133, %c4_134] : memref<32x56xbf16, #tpu.memory_space<vmem>>, vector<32x48xbf16>
    tpu.vector_store %arg6[%c0_133, %c4_134], %129 {strides = array<i32>} : memref<32x56xbf16, #tpu.memory_space<vmem>>, vector<32x48xbf16>,
    %c0_135 = arith.constant 0 : index
    %c0_136 = arith.constant 0 : index
    %c0_137 = arith.constant 0 : index
    %131 = vector.load %arg2[%c0_135, %c0_136, %c0_137] : memref<9x32x32xbf16, #tpu.memory_space<vmem>>, vector<1x32x32xbf16>
    %132 = vector.shape_cast %131 : vector<1x32x32xbf16> to vector<32x32xbf16>
    %c0_138 = arith.constant 0 : index
    %c0_139 = arith.constant 0 : index
    %133 = vector.load %arg6[%c0_138, %c0_139] : memref<32x56xbf16, #tpu.memory_space<vmem>>, vector<32x48xbf16>
    %cst_140 = arith.constant dense<0.000000e+00> : vector<32x48xf32>
    %134 = tpu.matmul %132, %133, %cst_140 {dimension_numbers = #tpu.dot_dimension_numbers<[1], [0], [0], [1], [0, 0, 1, 1], [], []>} : vector<32x32xbf16>, vector<32x48xbf16>, vector<32x48xf32> -> vector<32x48xf32>
    %135 = arith.addf %6, %134 : vector<32x48xf32>
    %c1_141 = arith.constant 1 : index
    %c0_142 = arith.constant 0 : index
    %c0_143 = arith.constant 0 : index
    %136 = vector.load %arg2[%c1_141, %c0_142, %c0_143] : memref<9x32x32xbf16, #tpu.memory_space<vmem>>, vector<1x32x32xbf16>
    %137 = vector.shape_cast %136 : vector<1x32x32xbf16> to vector<32x32xbf16>
    %c0_144 = arith.constant 0 : index
    %c1_145 = arith.constant 1 : index
    %138 = vector.load %arg6[%c0_144, %c1_145] : memref<32x56xbf16, #tpu.memory_space<vmem>>, vector<32x48xbf16>
    %cst_146 = arith.constant dense<0.000000e+00> : vector<32x48xf32>
    %139 = tpu.matmul %137, %138, %cst_146 {dimension_numbers = #tpu.dot_dimension_numbers<[1], [0], [0], [1], [0, 0, 1, 1], [], []>} : vector<32x32xbf16>, vector<32x48xbf16>, vector<32x48xf32> -> vector<32x48xf32>
    %140 = arith.addf %135, %139 : vector<32x48xf32>
    %c2_147 = arith.constant 2 : index
    %c0_148 = arith.constant 0 : index
    %c0_149 = arith.constant 0 : index
    %141 = vector.load %arg2[%c2_147, %c0_148, %c0_149] : memref<9x32x32xbf16, #tpu.memory_space<vmem>>, vector<1x32x32xbf16>
    %142 = vector.shape_cast %141 : vector<1x32x32xbf16> to vector<32x32xbf16>
    %c0_150 = arith.constant 0 : index
    %c2_151 = arith.constant 2 : index
    %143 = vector.load %arg6[%c0_150, %c2_151] : memref<32x56xbf16, #tpu.memory_space<vmem>>, vector<32x48xbf16>
    %cst_152 = arith.constant dense<0.000000e+00> : vector<32x48xf32>
    %144 = tpu.matmul %142, %143, %cst_152 {dimension_numbers = #tpu.dot_dimension_numbers<[1], [0], [0], [1], [0, 0, 1, 1], [], []>} : vector<32x32xbf16>, vector<32x48xbf16>, vector<32x48xf32> -> vector<32x48xf32>
    %145 = arith.addf %140, %144 : vector<32x48xf32>
    %c3_153 = arith.constant 3 : index
    %c0_154 = arith.constant 0 : index
    %c0_155 = arith.constant 0 : index
    %146 = vector.load %arg2[%c3_153, %c0_154, %c0_155] : memref<9x32x32xbf16, #tpu.memory_space<vmem>>, vector<1x32x32xbf16>
    %147 = vector.shape_cast %146 : vector<1x32x32xbf16> to vector<32x32xbf16>
    %c0_156 = arith.constant 0 : index
    %c3_157 = arith.constant 3 : index
    %148 = vector.load %arg6[%c0_156, %c3_157] : memref<32x56xbf16, #tpu.memory_space<vmem>>, vector<32x48xbf16>
    %cst_158 = arith.constant dense<0.000000e+00> : vector<32x48xf32>
    %149 = tpu.matmul %147, %148, %cst_158 {dimension_numbers = #tpu.dot_dimension_numbers<[1], [0], [0], [1], [0, 0, 1, 1], [], []>} : vector<32x32xbf16>, vector<32x48xbf16>, vector<32x48xf32> -> vector<32x48xf32>
    %150 = arith.addf %145, %149 : vector<32x48xf32>
    %c4_159 = arith.constant 4 : index
    %c0_160 = arith.constant 0 : index
    %c0_161 = arith.constant 0 : index
    %151 = vector.load %arg2[%c4_159, %c0_160, %c0_161] : memref<9x32x32xbf16, #tpu.memory_space<vmem>>, vector<1x32x32xbf16>
    %152 = vector.shape_cast %151 : vector<1x32x32xbf16> to vector<32x32xbf16>
    %c0_162 = arith.constant 0 : index
    %c4_163 = arith.constant 4 : index
    %153 = vector.load %arg6[%c0_162, %c4_163] : memref<32x56xbf16, #tpu.memory_space<vmem>>, vector<32x48xbf16>
    %cst_164 = arith.constant dense<0.000000e+00> : vector<32x48xf32>
    %154 = tpu.matmul %152, %153, %cst_164 {dimension_numbers = #tpu.dot_dimension_numbers<[1], [0], [0], [1], [0, 0, 1, 1], [], []>} : vector<32x32xbf16>, vector<32x48xbf16>, vector<32x48xf32> -> vector<32x48xf32>
    %155 = arith.addf %150, %154 : vector<32x48xf32>
    %c5_165 = arith.constant 5 : index
    %c0_166 = arith.constant 0 : index
    %c0_167 = arith.constant 0 : index
    %156 = vector.load %arg2[%c5_165, %c0_166, %c0_167] : memref<9x32x32xbf16, #tpu.memory_space<vmem>>, vector<1x32x32xbf16>
    %157 = vector.shape_cast %156 : vector<1x32x32xbf16> to vector<32x32xbf16>
    %c0_168 = arith.constant 0 : index
    %c5_169 = arith.constant 5 : index
    %158 = vector.load %arg6[%c0_168, %c5_169] : memref<32x56xbf16, #tpu.memory_space<vmem>>, vector<32x48xbf16>
    %cst_170 = arith.constant dense<0.000000e+00> : vector<32x48xf32>
    %159 = tpu.matmul %157, %158, %cst_170 {dimension_numbers = #tpu.dot_dimension_numbers<[1], [0], [0], [1], [0, 0, 1, 1], [], []>} : vector<32x32xbf16>, vector<32x48xbf16>, vector<32x48xf32> -> vector<32x48xf32>
    %160 = arith.addf %155, %159 : vector<32x48xf32>
    %c6_171 = arith.constant 6 : index
    %c0_172 = arith.constant 0 : index
    %c0_173 = arith.constant 0 : index
    %161 = vector.load %arg2[%c6_171, %c0_172, %c0_173] : memref<9x32x32xbf16, #tpu.memory_space<vmem>>, vector<1x32x32xbf16>
    %162 = vector.shape_cast %161 : vector<1x32x32xbf16> to vector<32x32xbf16>
    %c0_174 = arith.constant 0 : index
    %c6_175 = arith.constant 6 : index
    %163 = vector.load %arg6[%c0_174, %c6_175] : memref<32x56xbf16, #tpu.memory_space<vmem>>, vector<32x48xbf16>
    %cst_176 = arith.constant dense<0.000000e+00> : vector<32x48xf32>
    %164 = tpu.matmul %162, %163, %cst_176 {dimension_numbers = #tpu.dot_dimension_numbers<[1], [0], [0], [1], [0, 0, 1, 1], [], []>} : vector<32x32xbf16>, vector<32x48xbf16>, vector<32x48xf32> -> vector<32x48xf32>
    %165 = arith.addf %160, %164 : vector<32x48xf32>
    %c7_177 = arith.constant 7 : index
    %c0_178 = arith.constant 0 : index
    %c0_179 = arith.constant 0 : index
    %166 = vector.load %arg2[%c7_177, %c0_178, %c0_179] : memref<9x32x32xbf16, #tpu.memory_space<vmem>>, vector<1x32x32xbf16>
    %167 = vector.shape_cast %166 : vector<1x32x32xbf16> to vector<32x32xbf16>
    %c0_180 = arith.constant 0 : index
    %c7_181 = arith.constant 7 : index
    %168 = vector.load %arg6[%c0_180, %c7_181] : memref<32x56xbf16, #tpu.memory_space<vmem>>, vector<32x48xbf16>
    %cst_182 = arith.constant dense<0.000000e+00> : vector<32x48xf32>
    %169 = tpu.matmul %167, %168, %cst_182 {dimension_numbers = #tpu.dot_dimension_numbers<[1], [0], [0], [1], [0, 0, 1, 1], [], []>} : vector<32x32xbf16>, vector<32x48xbf16>, vector<32x48xf32> -> vector<32x48xf32>
    %170 = arith.addf %165, %169 : vector<32x48xf32>
    %c8_183 = arith.constant 8 : index
    %c0_184 = arith.constant 0 : index
    %c0_185 = arith.constant 0 : index
    %171 = vector.load %arg2[%c8_183, %c0_184, %c0_185] : memref<9x32x32xbf16, #tpu.memory_space<vmem>>, vector<1x32x32xbf16>
    %172 = vector.shape_cast %171 : vector<1x32x32xbf16> to vector<32x32xbf16>
    %c0_186 = arith.constant 0 : index
    %c8_187 = arith.constant 8 : index
    %173 = vector.load %arg6[%c0_186, %c8_187] : memref<32x56xbf16, #tpu.memory_space<vmem>>, vector<32x48xbf16>
    %cst_188 = arith.constant dense<0.000000e+00> : vector<32x48xf32>
    %174 = tpu.matmul %172, %173, %cst_188 {dimension_numbers = #tpu.dot_dimension_numbers<[1], [0], [0], [1], [0, 0, 1, 1], [], []>} : vector<32x32xbf16>, vector<32x48xbf16>, vector<32x48xf32> -> vector<32x48xf32>
    %175 = arith.addf %170, %174 : vector<32x48xf32>
    %cst_189 = arith.constant 0.000000e+00 : f32
    %176 = vector.broadcast %cst_189 : f32 to vector<32x48xf32>
    %177 = arith.maximumf %175, %176 : vector<32x48xf32>
    %178 = arith.mulf %177, %7 : vector<32x48xf32>
    %c0_190 = arith.constant 0 : index
    %179 = arith.index_cast %c3_i32 : i32 to index
    %c0_191 = arith.constant 0 : index
    %c0_192 = arith.constant 0 : index
    %180 = vector.load %arg1[%c0_190, %179, %c0_191, %c0_192] : memref<1x6x32x48xf32, #tpu.memory_space<vmem>>, vector<1x1x32x48xf32>
    %181 = vector.shape_cast %180 : vector<1x1x32x48xf32> to vector<32x48xf32>
    %182 = arith.addf %178, %181 : vector<32x48xf32>
    %c0_193 = arith.constant 0 : index
    %183 = arith.index_cast %c3_i32 : i32 to index
    %c0_194 = arith.constant 0 : index
    %c0_195 = arith.constant 0 : index
    %184 = vector.load %arg5[%c0_193, %183, %c0_194, %c0_195] : memref<1x6x32x48xf32, #tpu.memory_space<vmem>>, vector<1x1x32x48xf32>
    %185 = vector.shape_cast %184 : vector<1x1x32x48xf32> to vector<32x48xf32>
    %186 = vector.shape_cast %182 : vector<32x48xf32> to vector<1x1x32x48xf32>
    tpu.vector_store %arg5[%c0_193, %183, %c0_194, %c0_195], %186 {strides = array<i32>} : memref<1x6x32x48xf32, #tpu.memory_space<vmem>>, vector<1x1x32x48xf32>,
    %c4_i32 = arith.constant 4 : i32
    %187 = arith.truncf %182 : vector<32x48xf32> to vector<32x48xbf16>
    %c0_196 = arith.constant 0 : index
    %c4_197 = arith.constant 4 : index
    %188 = vector.load %arg6[%c0_196, %c4_197] : memref<32x56xbf16, #tpu.memory_space<vmem>>, vector<32x48xbf16>
    tpu.vector_store %arg6[%c0_196, %c4_197], %187 {strides = array<i32>} : memref<32x56xbf16, #tpu.memory_space<vmem>>, vector<32x48xbf16>,
    %c0_198 = arith.constant 0 : index
    %c0_199 = arith.constant 0 : index
    %c0_200 = arith.constant 0 : index
    %189 = vector.load %arg2[%c0_198, %c0_199, %c0_200] : memref<9x32x32xbf16, #tpu.memory_space<vmem>>, vector<1x32x32xbf16>
    %190 = vector.shape_cast %189 : vector<1x32x32xbf16> to vector<32x32xbf16>
    %c0_201 = arith.constant 0 : index
    %c0_202 = arith.constant 0 : index
    %191 = vector.load %arg6[%c0_201, %c0_202] : memref<32x56xbf16, #tpu.memory_space<vmem>>, vector<32x48xbf16>
    %cst_203 = arith.constant dense<0.000000e+00> : vector<32x48xf32>
    %192 = tpu.matmul %190, %191, %cst_203 {dimension_numbers = #tpu.dot_dimension_numbers<[1], [0], [0], [1], [0, 0, 1, 1], [], []>} : vector<32x32xbf16>, vector<32x48xbf16>, vector<32x48xf32> -> vector<32x48xf32>
    %193 = arith.addf %6, %192 : vector<32x48xf32>
    %c1_204 = arith.constant 1 : index
    %c0_205 = arith.constant 0 : index
    %c0_206 = arith.constant 0 : index
    %194 = vector.load %arg2[%c1_204, %c0_205, %c0_206] : memref<9x32x32xbf16, #tpu.memory_space<vmem>>, vector<1x32x32xbf16>
    %195 = vector.shape_cast %194 : vector<1x32x32xbf16> to vector<32x32xbf16>
    %c0_207 = arith.constant 0 : index
    %c1_208 = arith.constant 1 : index
    %196 = vector.load %arg6[%c0_207, %c1_208] : memref<32x56xbf16, #tpu.memory_space<vmem>>, vector<32x48xbf16>
    %cst_209 = arith.constant dense<0.000000e+00> : vector<32x48xf32>
    %197 = tpu.matmul %195, %196, %cst_209 {dimension_numbers = #tpu.dot_dimension_numbers<[1], [0], [0], [1], [0, 0, 1, 1], [], []>} : vector<32x32xbf16>, vector<32x48xbf16>, vector<32x48xf32> -> vector<32x48xf32>
    %198 = arith.addf %193, %197 : vector<32x48xf32>
    %c2_210 = arith.constant 2 : index
    %c0_211 = arith.constant 0 : index
    %c0_212 = arith.constant 0 : index
    %199 = vector.load %arg2[%c2_210, %c0_211, %c0_212] : memref<9x32x32xbf16, #tpu.memory_space<vmem>>, vector<1x32x32xbf16>
    %200 = vector.shape_cast %199 : vector<1x32x32xbf16> to vector<32x32xbf16>
    %c0_213 = arith.constant 0 : index
    %c2_214 = arith.constant 2 : index
    %201 = vector.load %arg6[%c0_213, %c2_214] : memref<32x56xbf16, #tpu.memory_space<vmem>>, vector<32x48xbf16>
    %cst_215 = arith.constant dense<0.000000e+00> : vector<32x48xf32>
    %202 = tpu.matmul %200, %201, %cst_215 {dimension_numbers = #tpu.dot_dimension_numbers<[1], [0], [0], [1], [0, 0, 1, 1], [], []>} : vector<32x32xbf16>, vector<32x48xbf16>, vector<32x48xf32> -> vector<32x48xf32>
    %203 = arith.addf %198, %202 : vector<32x48xf32>
    %c3_216 = arith.constant 3 : index
    %c0_217 = arith.constant 0 : index
    %c0_218 = arith.constant 0 : index
    %204 = vector.load %arg2[%c3_216, %c0_217, %c0_218] : memref<9x32x32xbf16, #tpu.memory_space<vmem>>, vector<1x32x32xbf16>
    %205 = vector.shape_cast %204 : vector<1x32x32xbf16> to vector<32x32xbf16>
    %c0_219 = arith.constant 0 : index
    %c3_220 = arith.constant 3 : index
    %206 = vector.load %arg6[%c0_219, %c3_220] : memref<32x56xbf16, #tpu.memory_space<vmem>>, vector<32x48xbf16>
    %cst_221 = arith.constant dense<0.000000e+00> : vector<32x48xf32>
    %207 = tpu.matmul %205, %206, %cst_221 {dimension_numbers = #tpu.dot_dimension_numbers<[1], [0], [0], [1], [0, 0, 1, 1], [], []>} : vector<32x32xbf16>, vector<32x48xbf16>, vector<32x48xf32> -> vector<32x48xf32>
    %208 = arith.addf %203, %207 : vector<32x48xf32>
    %c4_222 = arith.constant 4 : index
    %c0_223 = arith.constant 0 : index
    %c0_224 = arith.constant 0 : index
    %209 = vector.load %arg2[%c4_222, %c0_223, %c0_224] : memref<9x32x32xbf16, #tpu.memory_space<vmem>>, vector<1x32x32xbf16>
    %210 = vector.shape_cast %209 : vector<1x32x32xbf16> to vector<32x32xbf16>
    %c0_225 = arith.constant 0 : index
    %c4_226 = arith.constant 4 : index
    %211 = vector.load %arg6[%c0_225, %c4_226] : memref<32x56xbf16, #tpu.memory_space<vmem>>, vector<32x48xbf16>
    %cst_227 = arith.constant dense<0.000000e+00> : vector<32x48xf32>
    %212 = tpu.matmul %210, %211, %cst_227 {dimension_numbers = #tpu.dot_dimension_numbers<[1], [0], [0], [1], [0, 0, 1, 1], [], []>} : vector<32x32xbf16>, vector<32x48xbf16>, vector<32x48xf32> -> vector<32x48xf32>
    %213 = arith.addf %208, %212 : vector<32x48xf32>
    %c5_228 = arith.constant 5 : index
    %c0_229 = arith.constant 0 : index
    %c0_230 = arith.constant 0 : index
    %214 = vector.load %arg2[%c5_228, %c0_229, %c0_230] : memref<9x32x32xbf16, #tpu.memory_space<vmem>>, vector<1x32x32xbf16>
    %215 = vector.shape_cast %214 : vector<1x32x32xbf16> to vector<32x32xbf16>
    %c0_231 = arith.constant 0 : index
    %c5_232 = arith.constant 5 : index
    %216 = vector.load %arg6[%c0_231, %c5_232] : memref<32x56xbf16, #tpu.memory_space<vmem>>, vector<32x48xbf16>
    %cst_233 = arith.constant dense<0.000000e+00> : vector<32x48xf32>
    %217 = tpu.matmul %215, %216, %cst_233 {dimension_numbers = #tpu.dot_dimension_numbers<[1], [0], [0], [1], [0, 0, 1, 1], [], []>} : vector<32x32xbf16>, vector<32x48xbf16>, vector<32x48xf32> -> vector<32x48xf32>
    %218 = arith.addf %213, %217 : vector<32x48xf32>
    %c6_234 = arith.constant 6 : index
    %c0_235 = arith.constant 0 : index
    %c0_236 = arith.constant 0 : index
    %219 = vector.load %arg2[%c6_234, %c0_235, %c0_236] : memref<9x32x32xbf16, #tpu.memory_space<vmem>>, vector<1x32x32xbf16>
    %220 = vector.shape_cast %219 : vector<1x32x32xbf16> to vector<32x32xbf16>
    %c0_237 = arith.constant 0 : index
    %c6_238 = arith.constant 6 : index
    %221 = vector.load %arg6[%c0_237, %c6_238] : memref<32x56xbf16, #tpu.memory_space<vmem>>, vector<32x48xbf16>
    %cst_239 = arith.constant dense<0.000000e+00> : vector<32x48xf32>
    %222 = tpu.matmul %220, %221, %cst_239 {dimension_numbers = #tpu.dot_dimension_numbers<[1], [0], [0], [1], [0, 0, 1, 1], [], []>} : vector<32x32xbf16>, vector<32x48xbf16>, vector<32x48xf32> -> vector<32x48xf32>
    %223 = arith.addf %218, %222 : vector<32x48xf32>
    %c7_240 = arith.constant 7 : index
    %c0_241 = arith.constant 0 : index
    %c0_242 = arith.constant 0 : index
    %224 = vector.load %arg2[%c7_240, %c0_241, %c0_242] : memref<9x32x32xbf16, #tpu.memory_space<vmem>>, vector<1x32x32xbf16>
    %225 = vector.shape_cast %224 : vector<1x32x32xbf16> to vector<32x32xbf16>
    %c0_243 = arith.constant 0 : index
    %c7_244 = arith.constant 7 : index
    %226 = vector.load %arg6[%c0_243, %c7_244] : memref<32x56xbf16, #tpu.memory_space<vmem>>, vector<32x48xbf16>
    %cst_245 = arith.constant dense<0.000000e+00> : vector<32x48xf32>
    %227 = tpu.matmul %225, %226, %cst_245 {dimension_numbers = #tpu.dot_dimension_numbers<[1], [0], [0], [1], [0, 0, 1, 1], [], []>} : vector<32x32xbf16>, vector<32x48xbf16>, vector<32x48xf32> -> vector<32x48xf32>
    %228 = arith.addf %223, %227 : vector<32x48xf32>
    %c8_246 = arith.constant 8 : index
    %c0_247 = arith.constant 0 : index
    %c0_248 = arith.constant 0 : index
    %229 = vector.load %arg2[%c8_246, %c0_247, %c0_248] : memref<9x32x32xbf16, #tpu.memory_space<vmem>>, vector<1x32x32xbf16>
    %230 = vector.shape_cast %229 : vector<1x32x32xbf16> to vector<32x32xbf16>
    %c0_249 = arith.constant 0 : index
    %c8_250 = arith.constant 8 : index
    %231 = vector.load %arg6[%c0_249, %c8_250] : memref<32x56xbf16, #tpu.memory_space<vmem>>, vector<32x48xbf16>
    %cst_251 = arith.constant dense<0.000000e+00> : vector<32x48xf32>
    %232 = tpu.matmul %230, %231, %cst_251 {dimension_numbers = #tpu.dot_dimension_numbers<[1], [0], [0], [1], [0, 0, 1, 1], [], []>} : vector<32x32xbf16>, vector<32x48xbf16>, vector<32x48xf32> -> vector<32x48xf32>
    %233 = arith.addf %228, %232 : vector<32x48xf32>
    %cst_252 = arith.constant 0.000000e+00 : f32
    %234 = vector.broadcast %cst_252 : f32 to vector<32x48xf32>
    %235 = arith.maximumf %233, %234 : vector<32x48xf32>
    %236 = arith.mulf %235, %7 : vector<32x48xf32>
    %c0_253 = arith.constant 0 : index
    %237 = arith.index_cast %c4_i32 : i32 to index
    %c0_254 = arith.constant 0 : index
    %c0_255 = arith.constant 0 : index
    %238 = vector.load %arg1[%c0_253, %237, %c0_254, %c0_255] : memref<1x6x32x48xf32, #tpu.memory_space<vmem>>, vector<1x1x32x48xf32>
    %239 = vector.shape_cast %238 : vector<1x1x32x48xf32> to vector<32x48xf32>
    %240 = arith.addf %236, %239 : vector<32x48xf32>
    %c0_256 = arith.constant 0 : index
    %241 = arith.index_cast %c4_i32 : i32 to index
    %c0_257 = arith.constant 0 : index
    %c0_258 = arith.constant 0 : index
    %242 = vector.load %arg5[%c0_256, %241, %c0_257, %c0_258] : memref<1x6x32x48xf32, #tpu.memory_space<vmem>>, vector<1x1x32x48xf32>
    %243 = vector.shape_cast %242 : vector<1x1x32x48xf32> to vector<32x48xf32>
    %244 = vector.shape_cast %240 : vector<32x48xf32> to vector<1x1x32x48xf32>
    tpu.vector_store %arg5[%c0_256, %241, %c0_257, %c0_258], %244 {strides = array<i32>} : memref<1x6x32x48xf32, #tpu.memory_space<vmem>>, vector<1x1x32x48xf32>,
    %c5_i32 = arith.constant 5 : i32
    %245 = arith.truncf %240 : vector<32x48xf32> to vector<32x48xbf16>
    %c0_259 = arith.constant 0 : index
    %c4_260 = arith.constant 4 : index
    %246 = vector.load %arg6[%c0_259, %c4_260] : memref<32x56xbf16, #tpu.memory_space<vmem>>, vector<32x48xbf16>
    tpu.vector_store %arg6[%c0_259, %c4_260], %245 {strides = array<i32>} : memref<32x56xbf16, #tpu.memory_space<vmem>>, vector<32x48xbf16>,
    %c0_261 = arith.constant 0 : index
    %c0_262 = arith.constant 0 : index
    %c0_263 = arith.constant 0 : index
    %247 = vector.load %arg2[%c0_261, %c0_262, %c0_263] : memref<9x32x32xbf16, #tpu.memory_space<vmem>>, vector<1x32x32xbf16>
    %248 = vector.shape_cast %247 : vector<1x32x32xbf16> to vector<32x32xbf16>
    %c0_264 = arith.constant 0 : index
    %c0_265 = arith.constant 0 : index
    %249 = vector.load %arg6[%c0_264, %c0_265] : memref<32x56xbf16, #tpu.memory_space<vmem>>, vector<32x48xbf16>
    %cst_266 = arith.constant dense<0.000000e+00> : vector<32x48xf32>
    %250 = tpu.matmul %248, %249, %cst_266 {dimension_numbers = #tpu.dot_dimension_numbers<[1], [0], [0], [1], [0, 0, 1, 1], [], []>} : vector<32x32xbf16>, vector<32x48xbf16>, vector<32x48xf32> -> vector<32x48xf32>
    %251 = arith.addf %6, %250 : vector<32x48xf32>
    %c1_267 = arith.constant 1 : index
    %c0_268 = arith.constant 0 : index
    %c0_269 = arith.constant 0 : index
    %252 = vector.load %arg2[%c1_267, %c0_268, %c0_269] : memref<9x32x32xbf16, #tpu.memory_space<vmem>>, vector<1x32x32xbf16>
    %253 = vector.shape_cast %252 : vector<1x32x32xbf16> to vector<32x32xbf16>
    %c0_270 = arith.constant 0 : index
    %c1_271 = arith.constant 1 : index
    %254 = vector.load %arg6[%c0_270, %c1_271] : memref<32x56xbf16, #tpu.memory_space<vmem>>, vector<32x48xbf16>
    %cst_272 = arith.constant dense<0.000000e+00> : vector<32x48xf32>
    %255 = tpu.matmul %253, %254, %cst_272 {dimension_numbers = #tpu.dot_dimension_numbers<[1], [0], [0], [1], [0, 0, 1, 1], [], []>} : vector<32x32xbf16>, vector<32x48xbf16>, vector<32x48xf32> -> vector<32x48xf32>
    %256 = arith.addf %251, %255 : vector<32x48xf32>
    %c2_273 = arith.constant 2 : index
    %c0_274 = arith.constant 0 : index
    %c0_275 = arith.constant 0 : index
    %257 = vector.load %arg2[%c2_273, %c0_274, %c0_275] : memref<9x32x32xbf16, #tpu.memory_space<vmem>>, vector<1x32x32xbf16>
    %258 = vector.shape_cast %257 : vector<1x32x32xbf16> to vector<32x32xbf16>
    %c0_276 = arith.constant 0 : index
    %c2_277 = arith.constant 2 : index
    %259 = vector.load %arg6[%c0_276, %c2_277] : memref<32x56xbf16, #tpu.memory_space<vmem>>, vector<32x48xbf16>
    %cst_278 = arith.constant dense<0.000000e+00> : vector<32x48xf32>
    %260 = tpu.matmul %258, %259, %cst_278 {dimension_numbers = #tpu.dot_dimension_numbers<[1], [0], [0], [1], [0, 0, 1, 1], [], []>} : vector<32x32xbf16>, vector<32x48xbf16>, vector<32x48xf32> -> vector<32x48xf32>
    %261 = arith.addf %256, %260 : vector<32x48xf32>
    %c3_279 = arith.constant 3 : index
    %c0_280 = arith.constant 0 : index
    %c0_281 = arith.constant 0 : index
    %262 = vector.load %arg2[%c3_279, %c0_280, %c0_281] : memref<9x32x32xbf16, #tpu.memory_space<vmem>>, vector<1x32x32xbf16>
    %263 = vector.shape_cast %262 : vector<1x32x32xbf16> to vector<32x32xbf16>
    %c0_282 = arith.constant 0 : index
    %c3_283 = arith.constant 3 : index
    %264 = vector.load %arg6[%c0_282, %c3_283] : memref<32x56xbf16, #tpu.memory_space<vmem>>, vector<32x48xbf16>
    %cst_284 = arith.constant dense<0.000000e+00> : vector<32x48xf32>
    %265 = tpu.matmul %263, %264, %cst_284 {dimension_numbers = #tpu.dot_dimension_numbers<[1], [0], [0], [1], [0, 0, 1, 1], [], []>} : vector<32x32xbf16>, vector<32x48xbf16>, vector<32x48xf32> -> vector<32x48xf32>
    %266 = arith.addf %261, %265 : vector<32x48xf32>
    %c4_285 = arith.constant 4 : index
    %c0_286 = arith.constant 0 : index
    %c0_287 = arith.constant 0 : index
    %267 = vector.load %arg2[%c4_285, %c0_286, %c0_287] : memref<9x32x32xbf16, #tpu.memory_space<vmem>>, vector<1x32x32xbf16>
    %268 = vector.shape_cast %267 : vector<1x32x32xbf16> to vector<32x32xbf16>
    %c0_288 = arith.constant 0 : index
    %c4_289 = arith.constant 4 : index
    %269 = vector.load %arg6[%c0_288, %c4_289] : memref<32x56xbf16, #tpu.memory_space<vmem>>, vector<32x48xbf16>
    %cst_290 = arith.constant dense<0.000000e+00> : vector<32x48xf32>
    %270 = tpu.matmul %268, %269, %cst_290 {dimension_numbers = #tpu.dot_dimension_numbers<[1], [0], [0], [1], [0, 0, 1, 1], [], []>} : vector<32x32xbf16>, vector<32x48xbf16>, vector<32x48xf32> -> vector<32x48xf32>
    %271 = arith.addf %266, %270 : vector<32x48xf32>
    %c5_291 = arith.constant 5 : index
    %c0_292 = arith.constant 0 : index
    %c0_293 = arith.constant 0 : index
    %272 = vector.load %arg2[%c5_291, %c0_292, %c0_293] : memref<9x32x32xbf16, #tpu.memory_space<vmem>>, vector<1x32x32xbf16>
    %273 = vector.shape_cast %272 : vector<1x32x32xbf16> to vector<32x32xbf16>
    %c0_294 = arith.constant 0 : index
    %c5_295 = arith.constant 5 : index
    %274 = vector.load %arg6[%c0_294, %c5_295] : memref<32x56xbf16, #tpu.memory_space<vmem>>, vector<32x48xbf16>
    %cst_296 = arith.constant dense<0.000000e+00> : vector<32x48xf32>
    %275 = tpu.matmul %273, %274, %cst_296 {dimension_numbers = #tpu.dot_dimension_numbers<[1], [0], [0], [1], [0, 0, 1, 1], [], []>} : vector<32x32xbf16>, vector<32x48xbf16>, vector<32x48xf32> -> vector<32x48xf32>
    %276 = arith.addf %271, %275 : vector<32x48xf32>
    %c6_297 = arith.constant 6 : index
    %c0_298 = arith.constant 0 : index
    %c0_299 = arith.constant 0 : index
    %277 = vector.load %arg2[%c6_297, %c0_298, %c0_299] : memref<9x32x32xbf16, #tpu.memory_space<vmem>>, vector<1x32x32xbf16>
    %278 = vector.shape_cast %277 : vector<1x32x32xbf16> to vector<32x32xbf16>
    %c0_300 = arith.constant 0 : index
    %c6_301 = arith.constant 6 : index
    %279 = vector.load %arg6[%c0_300, %c6_301] : memref<32x56xbf16, #tpu.memory_space<vmem>>, vector<32x48xbf16>
    %cst_302 = arith.constant dense<0.000000e+00> : vector<32x48xf32>
    %280 = tpu.matmul %278, %279, %cst_302 {dimension_numbers = #tpu.dot_dimension_numbers<[1], [0], [0], [1], [0, 0, 1, 1], [], []>} : vector<32x32xbf16>, vector<32x48xbf16>, vector<32x48xf32> -> vector<32x48xf32>
    %281 = arith.addf %276, %280 : vector<32x48xf32>
    %c7_303 = arith.constant 7 : index
    %c0_304 = arith.constant 0 : index
    %c0_305 = arith.constant 0 : index
    %282 = vector.load %arg2[%c7_303, %c0_304, %c0_305] : memref<9x32x32xbf16, #tpu.memory_space<vmem>>, vector<1x32x32xbf16>
    %283 = vector.shape_cast %282 : vector<1x32x32xbf16> to vector<32x32xbf16>
    %c0_306 = arith.constant 0 : index
    %c7_307 = arith.constant 7 : index
    %284 = vector.load %arg6[%c0_306, %c7_307] : memref<32x56xbf16, #tpu.memory_space<vmem>>, vector<32x48xbf16>
    %cst_308 = arith.constant dense<0.000000e+00> : vector<32x48xf32>
    %285 = tpu.matmul %283, %284, %cst_308 {dimension_numbers = #tpu.dot_dimension_numbers<[1], [0], [0], [1], [0, 0, 1, 1], [], []>} : vector<32x32xbf16>, vector<32x48xbf16>, vector<32x48xf32> -> vector<32x48xf32>
    %286 = arith.addf %281, %285 : vector<32x48xf32>
    %c8_309 = arith.constant 8 : index
    %c0_310 = arith.constant 0 : index
    %c0_311 = arith.constant 0 : index
    %287 = vector.load %arg2[%c8_309, %c0_310, %c0_311] : memref<9x32x32xbf16, #tpu.memory_space<vmem>>, vector<1x32x32xbf16>
    %288 = vector.shape_cast %287 : vector<1x32x32xbf16> to vector<32x32xbf16>
    %c0_312 = arith.constant 0 : index
    %c8_313 = arith.constant 8 : index
    %289 = vector.load %arg6[%c0_312, %c8_313] : memref<32x56xbf16, #tpu.memory_space<vmem>>, vector<32x48xbf16>
    %cst_314 = arith.constant dense<0.000000e+00> : vector<32x48xf32>
    %290 = tpu.matmul %288, %289, %cst_314 {dimension_numbers = #tpu.dot_dimension_numbers<[1], [0], [0], [1], [0, 0, 1, 1], [], []>} : vector<32x32xbf16>, vector<32x48xbf16>, vector<32x48xf32> -> vector<32x48xf32>
    %291 = arith.addf %286, %290 : vector<32x48xf32>
    %cst_315 = arith.constant 0.000000e+00 : f32
    %292 = vector.broadcast %cst_315 : f32 to vector<32x48xf32>
    %293 = arith.maximumf %291, %292 : vector<32x48xf32>
    %294 = arith.mulf %293, %7 : vector<32x48xf32>
    %c0_316 = arith.constant 0 : index
    %295 = arith.index_cast %c5_i32 : i32 to index
    %c0_317 = arith.constant 0 : index
    %c0_318 = arith.constant 0 : index
    %296 = vector.load %arg1[%c0_316, %295, %c0_317, %c0_318] : memref<1x6x32x48xf32, #tpu.memory_space<vmem>>, vector<1x1x32x48xf32>
    %297 = vector.shape_cast %296 : vector<1x1x32x48xf32> to vector<32x48xf32>
    %298 = arith.addf %294, %297 : vector<32x48xf32>
    %c0_319 = arith.constant 0 : index
    %299 = arith.index_cast %c5_i32 : i32 to index
    %c0_320 = arith.constant 0 : index
    %c0_321 = arith.constant 0 : index
    %300 = vector.load %arg5[%c0_319, %299, %c0_320, %c0_321] : memref<1x6x32x48xf32, #tpu.memory_space<vmem>>, vector<1x1x32x48xf32>
    %301 = vector.shape_cast %300 : vector<1x1x32x48xf32> to vector<32x48xf32>
    %302 = vector.shape_cast %298 : vector<32x48xf32> to vector<1x1x32x48xf32>
    tpu.vector_store %arg5[%c0_319, %299, %c0_320, %c0_321], %302 {strides = array<i32>} : memref<1x6x32x48xf32, #tpu.memory_space<vmem>>, vector<1x1x32x48xf32>,
    %c5_i32_322 = arith.constant 5 : i32
    %c0_i32 = arith.constant 0 : i32
    %c4_i32_323 = arith.constant 4 : i32
    %303 = arith.subi %c4_i32_323, %c0_i32 : i32
    %304 = arith.truncf %298 : vector<32x48xf32> to vector<32x48xbf16>
    %c0_324 = arith.constant 0 : index
    %c4_325 = arith.constant 4 : index
    %305 = vector.load %arg6[%c0_324, %c4_325] : memref<32x56xbf16, #tpu.memory_space<vmem>>, vector<32x48xbf16>
    tpu.vector_store %arg6[%c0_324, %c4_325], %304 {strides = array<i32>} : memref<32x56xbf16, #tpu.memory_space<vmem>>, vector<32x48xbf16>,
    %c0_326 = arith.constant 0 : index
    %c0_327 = arith.constant 0 : index
    %c0_328 = arith.constant 0 : index
    %306 = vector.load %arg2[%c0_326, %c0_327, %c0_328] : memref<9x32x32xbf16, #tpu.memory_space<vmem>>, vector<1x32x32xbf16>
    %307 = vector.shape_cast %306 : vector<1x32x32xbf16> to vector<32x32xbf16>
    %c0_329 = arith.constant 0 : index
    %c0_330 = arith.constant 0 : index
    %308 = vector.load %arg6[%c0_329, %c0_330] : memref<32x56xbf16, #tpu.memory_space<vmem>>, vector<32x48xbf16>
    %cst_331 = arith.constant dense<0.000000e+00> : vector<32x48xf32>
    %309 = tpu.matmul %307, %308, %cst_331 {dimension_numbers = #tpu.dot_dimension_numbers<[1], [0], [0], [1], [0, 0, 1, 1], [], []>} : vector<32x32xbf16>, vector<32x48xbf16>, vector<32x48xf32> -> vector<32x48xf32>
    %310 = arith.addf %6, %309 : vector<32x48xf32>
    %c1_332 = arith.constant 1 : index
    %c0_333 = arith.constant 0 : index
    %c0_334 = arith.constant 0 : index
    %311 = vector.load %arg2[%c1_332, %c0_333, %c0_334] : memref<9x32x32xbf16, #tpu.memory_space<vmem>>, vector<1x32x32xbf16>
    %312 = vector.shape_cast %311 : vector<1x32x32xbf16> to vector<32x32xbf16>
    %c0_335 = arith.constant 0 : index
    %c1_336 = arith.constant 1 : index
    %313 = vector.load %arg6[%c0_335, %c1_336] : memref<32x56xbf16, #tpu.memory_space<vmem>>, vector<32x48xbf16>
    %cst_337 = arith.constant dense<0.000000e+00> : vector<32x48xf32>
    %314 = tpu.matmul %312, %313, %cst_337 {dimension_numbers = #tpu.dot_dimension_numbers<[1], [0], [0], [1], [0, 0, 1, 1], [], []>} : vector<32x32xbf16>, vector<32x48xbf16>, vector<32x48xf32> -> vector<32x48xf32>
    %315 = arith.addf %310, %314 : vector<32x48xf32>
    %c2_338 = arith.constant 2 : index
    %c0_339 = arith.constant 0 : index
    %c0_340 = arith.constant 0 : index
    %316 = vector.load %arg2[%c2_338, %c0_339, %c0_340] : memref<9x32x32xbf16, #tpu.memory_space<vmem>>, vector<1x32x32xbf16>
    %317 = vector.shape_cast %316 : vector<1x32x32xbf16> to vector<32x32xbf16>
    %c0_341 = arith.constant 0 : index
    %c2_342 = arith.constant 2 : index
    %318 = vector.load %arg6[%c0_341, %c2_342] : memref<32x56xbf16, #tpu.memory_space<vmem>>, vector<32x48xbf16>
    %cst_343 = arith.constant dense<0.000000e+00> : vector<32x48xf32>
    %319 = tpu.matmul %317, %318, %cst_343 {dimension_numbers = #tpu.dot_dimension_numbers<[1], [0], [0], [1], [0, 0, 1, 1], [], []>} : vector<32x32xbf16>, vector<32x48xbf16>, vector<32x48xf32> -> vector<32x48xf32>
    %320 = arith.addf %315, %319 : vector<32x48xf32>
    %c3_344 = arith.constant 3 : index
    %c0_345 = arith.constant 0 : index
    %c0_346 = arith.constant 0 : index
    %321 = vector.load %arg2[%c3_344, %c0_345, %c0_346] : memref<9x32x32xbf16, #tpu.memory_space<vmem>>, vector<1x32x32xbf16>
    %322 = vector.shape_cast %321 : vector<1x32x32xbf16> to vector<32x32xbf16>
    %c0_347 = arith.constant 0 : index
    %c3_348 = arith.constant 3 : index
    %323 = vector.load %arg6[%c0_347, %c3_348] : memref<32x56xbf16, #tpu.memory_space<vmem>>, vector<32x48xbf16>
    %cst_349 = arith.constant dense<0.000000e+00> : vector<32x48xf32>
    %324 = tpu.matmul %322, %323, %cst_349 {dimension_numbers = #tpu.dot_dimension_numbers<[1], [0], [0], [1], [0, 0, 1, 1], [], []>} : vector<32x32xbf16>, vector<32x48xbf16>, vector<32x48xf32> -> vector<32x48xf32>
    %325 = arith.addf %320, %324 : vector<32x48xf32>
    %c4_350 = arith.constant 4 : index
    %c0_351 = arith.constant 0 : index
    %c0_352 = arith.constant 0 : index
    %326 = vector.load %arg2[%c4_350, %c0_351, %c0_352] : memref<9x32x32xbf16, #tpu.memory_space<vmem>>, vector<1x32x32xbf16>
    %327 = vector.shape_cast %326 : vector<1x32x32xbf16> to vector<32x32xbf16>
    %c0_353 = arith.constant 0 : index
    %c4_354 = arith.constant 4 : index
    %328 = vector.load %arg6[%c0_353, %c4_354] : memref<32x56xbf16, #tpu.memory_space<vmem>>, vector<32x48xbf16>
    %cst_355 = arith.constant dense<0.000000e+00> : vector<32x48xf32>
    %329 = tpu.matmul %327, %328, %cst_355 {dimension_numbers = #tpu.dot_dimension_numbers<[1], [0], [0], [1], [0, 0, 1, 1], [], []>} : vector<32x32xbf16>, vector<32x48xbf16>, vector<32x48xf32> -> vector<32x48xf32>
    %330 = arith.addf %325, %329 : vector<32x48xf32>
    %c5_356 = arith.constant 5 : index
    %c0_357 = arith.constant 0 : index
    %c0_358 = arith.constant 0 : index
    %331 = vector.load %arg2[%c5_356, %c0_357, %c0_358] : memref<9x32x32xbf16, #tpu.memory_space<vmem>>, vector<1x32x32xbf16>
    %332 = vector.shape_cast %331 : vector<1x32x32xbf16> to vector<32x32xbf16>
    %c0_359 = arith.constant 0 : index
    %c5_360 = arith.constant 5 : index
    %333 = vector.load %arg6[%c0_359, %c5_360] : memref<32x56xbf16, #tpu.memory_space<vmem>>, vector<32x48xbf16>
    %cst_361 = arith.constant dense<0.000000e+00> : vector<32x48xf32>
    %334 = tpu.matmul %332, %333, %cst_361 {dimension_numbers = #tpu.dot_dimension_numbers<[1], [0], [0], [1], [0, 0, 1, 1], [], []>} : vector<32x32xbf16>, vector<32x48xbf16>, vector<32x48xf32> -> vector<32x48xf32>
    %335 = arith.addf %330, %334 : vector<32x48xf32>
    %c6_362 = arith.constant 6 : index
    %c0_363 = arith.constant 0 : index
    %c0_364 = arith.constant 0 : index
    %336 = vector.load %arg2[%c6_362, %c0_363, %c0_364] : memref<9x32x32xbf16, #tpu.memory_space<vmem>>, vector<1x32x32xbf16>
    %337 = vector.shape_cast %336 : vector<1x32x32xbf16> to vector<32x32xbf16>
    %c0_365 = arith.constant 0 : index
    %c6_366 = arith.constant 6 : index
    %338 = vector.load %arg6[%c0_365, %c6_366] : memref<32x56xbf16, #tpu.memory_space<vmem>>, vector<32x48xbf16>
    %cst_367 = arith.constant dense<0.000000e+00> : vector<32x48xf32>
    %339 = tpu.matmul %337, %338, %cst_367 {dimension_numbers = #tpu.dot_dimension_numbers<[1], [0], [0], [1], [0, 0, 1, 1], [], []>} : vector<32x32xbf16>, vector<32x48xbf16>, vector<32x48xf32> -> vector<32x48xf32>
    %340 = arith.addf %335, %339 : vector<32x48xf32>
    %c7_368 = arith.constant 7 : index
    %c0_369 = arith.constant 0 : index
    %c0_370 = arith.constant 0 : index
    %341 = vector.load %arg2[%c7_368, %c0_369, %c0_370] : memref<9x32x32xbf16, #tpu.memory_space<vmem>>, vector<1x32x32xbf16>
    %342 = vector.shape_cast %341 : vector<1x32x32xbf16> to vector<32x32xbf16>
    %c0_371 = arith.constant 0 : index
    %c7_372 = arith.constant 7 : index
    %343 = vector.load %arg6[%c0_371, %c7_372] : memref<32x56xbf16, #tpu.memory_space<vmem>>, vector<32x48xbf16>
    %cst_373 = arith.constant dense<0.000000e+00> : vector<32x48xf32>
    %344 = tpu.matmul %342, %343, %cst_373 {dimension_numbers = #tpu.dot_dimension_numbers<[1], [0], [0], [1], [0, 0, 1, 1], [], []>} : vector<32x32xbf16>, vector<32x48xbf16>, vector<32x48xf32> -> vector<32x48xf32>
    %345 = arith.addf %340, %344 : vector<32x48xf32>
    %c8_374 = arith.constant 8 : index
    %c0_375 = arith.constant 0 : index
    %c0_376 = arith.constant 0 : index
    %346 = vector.load %arg2[%c8_374, %c0_375, %c0_376] : memref<9x32x32xbf16, #tpu.memory_space<vmem>>, vector<1x32x32xbf16>
    %347 = vector.shape_cast %346 : vector<1x32x32xbf16> to vector<32x32xbf16>
    %c0_377 = arith.constant 0 : index
    %c8_378 = arith.constant 8 : index
    %348 = vector.load %arg6[%c0_377, %c8_378] : memref<32x56xbf16, #tpu.memory_space<vmem>>, vector<32x48xbf16>
    %cst_379 = arith.constant dense<0.000000e+00> : vector<32x48xf32>
    %349 = tpu.matmul %347, %348, %cst_379 {dimension_numbers = #tpu.dot_dimension_numbers<[1], [0], [0], [1], [0, 0, 1, 1], [], []>} : vector<32x32xbf16>, vector<32x48xbf16>, vector<32x48xf32> -> vector<32x48xf32>
    %350 = arith.addf %345, %349 : vector<32x48xf32>
    %cst_380 = arith.constant 0.000000e+00 : f32
    %351 = vector.broadcast %cst_380 : f32 to vector<32x48xf32>
    %352 = arith.maximumf %350, %351 : vector<32x48xf32>
    %353 = arith.mulf %352, %7 : vector<32x48xf32>
    %c0_381 = arith.constant 0 : index
    %354 = arith.index_cast %303 : i32 to index
    %c0_382 = arith.constant 0 : index
    %c0_383 = arith.constant 0 : index
    %355 = vector.load %arg5[%c0_381, %354, %c0_382, %c0_383] : memref<1x6x32x48xf32, #tpu.memory_space<vmem>>, vector<1x1x32x48xf32>
    %356 = vector.shape_cast %355 : vector<1x1x32x48xf32> to vector<32x48xf32>
    %357 = arith.addf %353, %356 : vector<32x48xf32>
    %c0_384 = arith.constant 0 : index
    %358 = arith.index_cast %303 : i32 to index
    %c0_385 = arith.constant 0 : index
    %c0_386 = arith.constant 0 : index
    %359 = vector.load %arg5[%c0_384, %358, %c0_385, %c0_386] : memref<1x6x32x48xf32, #tpu.memory_space<vmem>>, vector<1x1x32x48xf32>
    %360 = vector.shape_cast %359 : vector<1x1x32x48xf32> to vector<32x48xf32>
    %361 = vector.shape_cast %357 : vector<32x48xf32> to vector<1x1x32x48xf32>
    tpu.vector_store %arg5[%c0_384, %358, %c0_385, %c0_386], %361 {strides = array<i32>} : memref<1x6x32x48xf32, #tpu.memory_space<vmem>>, vector<1x1x32x48xf32>,
    %c1_i32_387 = arith.constant 1 : i32
    %c4_i32_388 = arith.constant 4 : i32
    %362 = arith.subi %c4_i32_388, %c1_i32_387 : i32
    %363 = arith.truncf %357 : vector<32x48xf32> to vector<32x48xbf16>
    %c0_389 = arith.constant 0 : index
    %c4_390 = arith.constant 4 : index
    %364 = vector.load %arg6[%c0_389, %c4_390] : memref<32x56xbf16, #tpu.memory_space<vmem>>, vector<32x48xbf16>
    tpu.vector_store %arg6[%c0_389, %c4_390], %363 {strides = array<i32>} : memref<32x56xbf16, #tpu.memory_space<vmem>>, vector<32x48xbf16>,
    %c0_391 = arith.constant 0 : index
    %c0_392 = arith.constant 0 : index
    %c0_393 = arith.constant 0 : index
    %365 = vector.load %arg2[%c0_391, %c0_392, %c0_393] : memref<9x32x32xbf16, #tpu.memory_space<vmem>>, vector<1x32x32xbf16>
    %366 = vector.shape_cast %365 : vector<1x32x32xbf16> to vector<32x32xbf16>
    %c0_394 = arith.constant 0 : index
    %c0_395 = arith.constant 0 : index
    %367 = vector.load %arg6[%c0_394, %c0_395] : memref<32x56xbf16, #tpu.memory_space<vmem>>, vector<32x48xbf16>
    %cst_396 = arith.constant dense<0.000000e+00> : vector<32x48xf32>
    %368 = tpu.matmul %366, %367, %cst_396 {dimension_numbers = #tpu.dot_dimension_numbers<[1], [0], [0], [1], [0, 0, 1, 1], [], []>} : vector<32x32xbf16>, vector<32x48xbf16>, vector<32x48xf32> -> vector<32x48xf32>
    %369 = arith.addf %6, %368 : vector<32x48xf32>
    %c1_397 = arith.constant 1 : index
    %c0_398 = arith.constant 0 : index
    %c0_399 = arith.constant 0 : index
    %370 = vector.load %arg2[%c1_397, %c0_398, %c0_399] : memref<9x32x32xbf16, #tpu.memory_space<vmem>>, vector<1x32x32xbf16>
    %371 = vector.shape_cast %370 : vector<1x32x32xbf16> to vector<32x32xbf16>
    %c0_400 = arith.constant 0 : index
    %c1_401 = arith.constant 1 : index
    %372 = vector.load %arg6[%c0_400, %c1_401] : memref<32x56xbf16, #tpu.memory_space<vmem>>, vector<32x48xbf16>
    %cst_402 = arith.constant dense<0.000000e+00> : vector<32x48xf32>
    %373 = tpu.matmul %371, %372, %cst_402 {dimension_numbers = #tpu.dot_dimension_numbers<[1], [0], [0], [1], [0, 0, 1, 1], [], []>} : vector<32x32xbf16>, vector<32x48xbf16>, vector<32x48xf32> -> vector<32x48xf32>
    %374 = arith.addf %369, %373 : vector<32x48xf32>
    %c2_403 = arith.constant 2 : index
    %c0_404 = arith.constant 0 : index
    %c0_405 = arith.constant 0 : index
    %375 = vector.load %arg2[%c2_403, %c0_404, %c0_405] : memref<9x32x32xbf16, #tpu.memory_space<vmem>>, vector<1x32x32xbf16>
    %376 = vector.shape_cast %375 : vector<1x32x32xbf16> to vector<32x32xbf16>
    %c0_406 = arith.constant 0 : index
    %c2_407 = arith.constant 2 : index
    %377 = vector.load %arg6[%c0_406, %c2_407] : memref<32x56xbf16, #tpu.memory_space<vmem>>, vector<32x48xbf16>
    %cst_408 = arith.constant dense<0.000000e+00> : vector<32x48xf32>
    %378 = tpu.matmul %376, %377, %cst_408 {dimension_numbers = #tpu.dot_dimension_numbers<[1], [0], [0], [1], [0, 0, 1, 1], [], []>} : vector<32x32xbf16>, vector<32x48xbf16>, vector<32x48xf32> -> vector<32x48xf32>
    %379 = arith.addf %374, %378 : vector<32x48xf32>
    %c3_409 = arith.constant 3 : index
    %c0_410 = arith.constant 0 : index
    %c0_411 = arith.constant 0 : index
    %380 = vector.load %arg2[%c3_409, %c0_410, %c0_411] : memref<9x32x32xbf16, #tpu.memory_space<vmem>>, vector<1x32x32xbf16>
    %381 = vector.shape_cast %380 : vector<1x32x32xbf16> to vector<32x32xbf16>
    %c0_412 = arith.constant 0 : index
    %c3_413 = arith.constant 3 : index
    %382 = vector.load %arg6[%c0_412, %c3_413] : memref<32x56xbf16, #tpu.memory_space<vmem>>, vector<32x48xbf16>
    %cst_414 = arith.constant dense<0.000000e+00> : vector<32x48xf32>
    %383 = tpu.matmul %381, %382, %cst_414 {dimension_numbers = #tpu.dot_dimension_numbers<[1], [0], [0], [1], [0, 0, 1, 1], [], []>} : vector<32x32xbf16>, vector<32x48xbf16>, vector<32x48xf32> -> vector<32x48xf32>
    %384 = arith.addf %379, %383 : vector<32x48xf32>
    %c4_415 = arith.constant 4 : index
    %c0_416 = arith.constant 0 : index
    %c0_417 = arith.constant 0 : index
    %385 = vector.load %arg2[%c4_415, %c0_416, %c0_417] : memref<9x32x32xbf16, #tpu.memory_space<vmem>>, vector<1x32x32xbf16>
    %386 = vector.shape_cast %385 : vector<1x32x32xbf16> to vector<32x32xbf16>
    %c0_418 = arith.constant 0 : index
    %c4_419 = arith.constant 4 : index
    %387 = vector.load %arg6[%c0_418, %c4_419] : memref<32x56xbf16, #tpu.memory_space<vmem>>, vector<32x48xbf16>
    %cst_420 = arith.constant dense<0.000000e+00> : vector<32x48xf32>
    %388 = tpu.matmul %386, %387, %cst_420 {dimension_numbers = #tpu.dot_dimension_numbers<[1], [0], [0], [1], [0, 0, 1, 1], [], []>} : vector<32x32xbf16>, vector<32x48xbf16>, vector<32x48xf32> -> vector<32x48xf32>
    %389 = arith.addf %384, %388 : vector<32x48xf32>
    %c5_421 = arith.constant 5 : index
    %c0_422 = arith.constant 0 : index
    %c0_423 = arith.constant 0 : index
    %390 = vector.load %arg2[%c5_421, %c0_422, %c0_423] : memref<9x32x32xbf16, #tpu.memory_space<vmem>>, vector<1x32x32xbf16>
    %391 = vector.shape_cast %390 : vector<1x32x32xbf16> to vector<32x32xbf16>
    %c0_424 = arith.constant 0 : index
    %c5_425 = arith.constant 5 : index
    %392 = vector.load %arg6[%c0_424, %c5_425] : memref<32x56xbf16, #tpu.memory_space<vmem>>, vector<32x48xbf16>
    %cst_426 = arith.constant dense<0.000000e+00> : vector<32x48xf32>
    %393 = tpu.matmul %391, %392, %cst_426 {dimension_numbers = #tpu.dot_dimension_numbers<[1], [0], [0], [1], [0, 0, 1, 1], [], []>} : vector<32x32xbf16>, vector<32x48xbf16>, vector<32x48xf32> -> vector<32x48xf32>
    %394 = arith.addf %389, %393 : vector<32x48xf32>
    %c6_427 = arith.constant 6 : index
    %c0_428 = arith.constant 0 : index
    %c0_429 = arith.constant 0 : index
    %395 = vector.load %arg2[%c6_427, %c0_428, %c0_429] : memref<9x32x32xbf16, #tpu.memory_space<vmem>>, vector<1x32x32xbf16>
    %396 = vector.shape_cast %395 : vector<1x32x32xbf16> to vector<32x32xbf16>
    %c0_430 = arith.constant 0 : index
    %c6_431 = arith.constant 6 : index
    %397 = vector.load %arg6[%c0_430, %c6_431] : memref<32x56xbf16, #tpu.memory_space<vmem>>, vector<32x48xbf16>
    %cst_432 = arith.constant dense<0.000000e+00> : vector<32x48xf32>
    %398 = tpu.matmul %396, %397, %cst_432 {dimension_numbers = #tpu.dot_dimension_numbers<[1], [0], [0], [1], [0, 0, 1, 1], [], []>} : vector<32x32xbf16>, vector<32x48xbf16>, vector<32x48xf32> -> vector<32x48xf32>
    %399 = arith.addf %394, %398 : vector<32x48xf32>
    %c7_433 = arith.constant 7 : index
    %c0_434 = arith.constant 0 : index
    %c0_435 = arith.constant 0 : index
    %400 = vector.load %arg2[%c7_433, %c0_434, %c0_435] : memref<9x32x32xbf16, #tpu.memory_space<vmem>>, vector<1x32x32xbf16>
    %401 = vector.shape_cast %400 : vector<1x32x32xbf16> to vector<32x32xbf16>
    %c0_436 = arith.constant 0 : index
    %c7_437 = arith.constant 7 : index
    %402 = vector.load %arg6[%c0_436, %c7_437] : memref<32x56xbf16, #tpu.memory_space<vmem>>, vector<32x48xbf16>
    %cst_438 = arith.constant dense<0.000000e+00> : vector<32x48xf32>
    %403 = tpu.matmul %401, %402, %cst_438 {dimension_numbers = #tpu.dot_dimension_numbers<[1], [0], [0], [1], [0, 0, 1, 1], [], []>} : vector<32x32xbf16>, vector<32x48xbf16>, vector<32x48xf32> -> vector<32x48xf32>
    %404 = arith.addf %399, %403 : vector<32x48xf32>
    %c8_439 = arith.constant 8 : index
    %c0_440 = arith.constant 0 : index
    %c0_441 = arith.constant 0 : index
    %405 = vector.load %arg2[%c8_439, %c0_440, %c0_441] : memref<9x32x32xbf16, #tpu.memory_space<vmem>>, vector<1x32x32xbf16>
    %406 = vector.shape_cast %405 : vector<1x32x32xbf16> to vector<32x32xbf16>
    %c0_442 = arith.constant 0 : index
    %c8_443 = arith.constant 8 : index
    %407 = vector.load %arg6[%c0_442, %c8_443] : memref<32x56xbf16, #tpu.memory_space<vmem>>, vector<32x48xbf16>
    %cst_444 = arith.constant dense<0.000000e+00> : vector<32x48xf32>
    %408 = tpu.matmul %406, %407, %cst_444 {dimension_numbers = #tpu.dot_dimension_numbers<[1], [0], [0], [1], [0, 0, 1, 1], [], []>} : vector<32x32xbf16>, vector<32x48xbf16>, vector<32x48xf32> -> vector<32x48xf32>
    %409 = arith.addf %404, %408 : vector<32x48xf32>
    %cst_445 = arith.constant 0.000000e+00 : f32
    %410 = vector.broadcast %cst_445 : f32 to vector<32x48xf32>
    %411 = arith.maximumf %409, %410 : vector<32x48xf32>
    %412 = arith.mulf %411, %7 : vector<32x48xf32>
    %c0_446 = arith.constant 0 : index
    %413 = arith.index_cast %362 : i32 to index
    %c0_447 = arith.constant 0 : index
    %c0_448 = arith.constant 0 : index
    %414 = vector.load %arg5[%c0_446, %413, %c0_447, %c0_448] : memref<1x6x32x48xf32, #tpu.memory_space<vmem>>, vector<1x1x32x48xf32>
    %415 = vector.shape_cast %414 : vector<1x1x32x48xf32> to vector<32x48xf32>
    %416 = arith.addf %412, %415 : vector<32x48xf32>
    %c0_449 = arith.constant 0 : index
    %417 = arith.index_cast %362 : i32 to index
    %c0_450 = arith.constant 0 : index
    %c0_451 = arith.constant 0 : index
    %418 = vector.load %arg5[%c0_449, %417, %c0_450, %c0_451] : memref<1x6x32x48xf32, #tpu.memory_space<vmem>>, vector<1x1x32x48xf32>
    %419 = vector.shape_cast %418 : vector<1x1x32x48xf32> to vector<32x48xf32>
    %420 = vector.shape_cast %416 : vector<32x48xf32> to vector<1x1x32x48xf32>
    tpu.vector_store %arg5[%c0_449, %417, %c0_450, %c0_451], %420 {strides = array<i32>} : memref<1x6x32x48xf32, #tpu.memory_space<vmem>>, vector<1x1x32x48xf32>,
    %c2_i32_452 = arith.constant 2 : i32
    %c4_i32_453 = arith.constant 4 : i32
    %421 = arith.subi %c4_i32_453, %c2_i32_452 : i32
    %422 = arith.truncf %416 : vector<32x48xf32> to vector<32x48xbf16>
    %c0_454 = arith.constant 0 : index
    %c4_455 = arith.constant 4 : index
    %423 = vector.load %arg6[%c0_454, %c4_455] : memref<32x56xbf16, #tpu.memory_space<vmem>>, vector<32x48xbf16>
    tpu.vector_store %arg6[%c0_454, %c4_455], %422 {strides = array<i32>} : memref<32x56xbf16, #tpu.memory_space<vmem>>, vector<32x48xbf16>,
    %c0_456 = arith.constant 0 : index
    %c0_457 = arith.constant 0 : index
    %c0_458 = arith.constant 0 : index
    %424 = vector.load %arg2[%c0_456, %c0_457, %c0_458] : memref<9x32x32xbf16, #tpu.memory_space<vmem>>, vector<1x32x32xbf16>
    %425 = vector.shape_cast %424 : vector<1x32x32xbf16> to vector<32x32xbf16>
    %c0_459 = arith.constant 0 : index
    %c0_460 = arith.constant 0 : index
    %426 = vector.load %arg6[%c0_459, %c0_460] : memref<32x56xbf16, #tpu.memory_space<vmem>>, vector<32x48xbf16>
    %cst_461 = arith.constant dense<0.000000e+00> : vector<32x48xf32>
    %427 = tpu.matmul %425, %426, %cst_461 {dimension_numbers = #tpu.dot_dimension_numbers<[1], [0], [0], [1], [0, 0, 1, 1], [], []>} : vector<32x32xbf16>, vector<32x48xbf16>, vector<32x48xf32> -> vector<32x48xf32>
    %428 = arith.addf %6, %427 : vector<32x48xf32>
    %c1_462 = arith.constant 1 : index
    %c0_463 = arith.constant 0 : index
    %c0_464 = arith.constant 0 : index
    %429 = vector.load %arg2[%c1_462, %c0_463, %c0_464] : memref<9x32x32xbf16, #tpu.memory_space<vmem>>, vector<1x32x32xbf16>
    %430 = vector.shape_cast %429 : vector<1x32x32xbf16> to vector<32x32xbf16>
    %c0_465 = arith.constant 0 : index
    %c1_466 = arith.constant 1 : index
    %431 = vector.load %arg6[%c0_465, %c1_466] : memref<32x56xbf16, #tpu.memory_space<vmem>>, vector<32x48xbf16>
    %cst_467 = arith.constant dense<0.000000e+00> : vector<32x48xf32>
    %432 = tpu.matmul %430, %431, %cst_467 {dimension_numbers = #tpu.dot_dimension_numbers<[1], [0], [0], [1], [0, 0, 1, 1], [], []>} : vector<32x32xbf16>, vector<32x48xbf16>, vector<32x48xf32> -> vector<32x48xf32>
    %433 = arith.addf %428, %432 : vector<32x48xf32>
    %c2_468 = arith.constant 2 : index
    %c0_469 = arith.constant 0 : index
    %c0_470 = arith.constant 0 : index
    %434 = vector.load %arg2[%c2_468, %c0_469, %c0_470] : memref<9x32x32xbf16, #tpu.memory_space<vmem>>, vector<1x32x32xbf16>
    %435 = vector.shape_cast %434 : vector<1x32x32xbf16> to vector<32x32xbf16>
    %c0_471 = arith.constant 0 : index
    %c2_472 = arith.constant 2 : index
    %436 = vector.load %arg6[%c0_471, %c2_472] : memref<32x56xbf16, #tpu.memory_space<vmem>>, vector<32x48xbf16>
    %cst_473 = arith.constant dense<0.000000e+00> : vector<32x48xf32>
    %437 = tpu.matmul %435, %436, %cst_473 {dimension_numbers = #tpu.dot_dimension_numbers<[1], [0], [0], [1], [0, 0, 1, 1], [], []>} : vector<32x32xbf16>, vector<32x48xbf16>, vector<32x48xf32> -> vector<32x48xf32>
    %438 = arith.addf %433, %437 : vector<32x48xf32>
    %c3_474 = arith.constant 3 : index
    %c0_475 = arith.constant 0 : index
    %c0_476 = arith.constant 0 : index
    %439 = vector.load %arg2[%c3_474, %c0_475, %c0_476] : memref<9x32x32xbf16, #tpu.memory_space<vmem>>, vector<1x32x32xbf16>
    %440 = vector.shape_cast %439 : vector<1x32x32xbf16> to vector<32x32xbf16>
    %c0_477 = arith.constant 0 : index
    %c3_478 = arith.constant 3 : index
    %441 = vector.load %arg6[%c0_477, %c3_478] : memref<32x56xbf16, #tpu.memory_space<vmem>>, vector<32x48xbf16>
    %cst_479 = arith.constant dense<0.000000e+00> : vector<32x48xf32>
    %442 = tpu.matmul %440, %441, %cst_479 {dimension_numbers = #tpu.dot_dimension_numbers<[1], [0], [0], [1], [0, 0, 1, 1], [], []>} : vector<32x32xbf16>, vector<32x48xbf16>, vector<32x48xf32> -> vector<32x48xf32>
    %443 = arith.addf %438, %442 : vector<32x48xf32>
    %c4_480 = arith.constant 4 : index
    %c0_481 = arith.constant 0 : index
    %c0_482 = arith.constant 0 : index
    %444 = vector.load %arg2[%c4_480, %c0_481, %c0_482] : memref<9x32x32xbf16, #tpu.memory_space<vmem>>, vector<1x32x32xbf16>
    %445 = vector.shape_cast %444 : vector<1x32x32xbf16> to vector<32x32xbf16>
    %c0_483 = arith.constant 0 : index
    %c4_484 = arith.constant 4 : index
    %446 = vector.load %arg6[%c0_483, %c4_484] : memref<32x56xbf16, #tpu.memory_space<vmem>>, vector<32x48xbf16>
    %cst_485 = arith.constant dense<0.000000e+00> : vector<32x48xf32>
    %447 = tpu.matmul %445, %446, %cst_485 {dimension_numbers = #tpu.dot_dimension_numbers<[1], [0], [0], [1], [0, 0, 1, 1], [], []>} : vector<32x32xbf16>, vector<32x48xbf16>, vector<32x48xf32> -> vector<32x48xf32>
    %448 = arith.addf %443, %447 : vector<32x48xf32>
    %c5_486 = arith.constant 5 : index
    %c0_487 = arith.constant 0 : index
    %c0_488 = arith.constant 0 : index
    %449 = vector.load %arg2[%c5_486, %c0_487, %c0_488] : memref<9x32x32xbf16, #tpu.memory_space<vmem>>, vector<1x32x32xbf16>
    %450 = vector.shape_cast %449 : vector<1x32x32xbf16> to vector<32x32xbf16>
    %c0_489 = arith.constant 0 : index
    %c5_490 = arith.constant 5 : index
    %451 = vector.load %arg6[%c0_489, %c5_490] : memref<32x56xbf16, #tpu.memory_space<vmem>>, vector<32x48xbf16>
    %cst_491 = arith.constant dense<0.000000e+00> : vector<32x48xf32>
    %452 = tpu.matmul %450, %451, %cst_491 {dimension_numbers = #tpu.dot_dimension_numbers<[1], [0], [0], [1], [0, 0, 1, 1], [], []>} : vector<32x32xbf16>, vector<32x48xbf16>, vector<32x48xf32> -> vector<32x48xf32>
    %453 = arith.addf %448, %452 : vector<32x48xf32>
    %c6_492 = arith.constant 6 : index
    %c0_493 = arith.constant 0 : index
    %c0_494 = arith.constant 0 : index
    %454 = vector.load %arg2[%c6_492, %c0_493, %c0_494] : memref<9x32x32xbf16, #tpu.memory_space<vmem>>, vector<1x32x32xbf16>
    %455 = vector.shape_cast %454 : vector<1x32x32xbf16> to vector<32x32xbf16>
    %c0_495 = arith.constant 0 : index
    %c6_496 = arith.constant 6 : index
    %456 = vector.load %arg6[%c0_495, %c6_496] : memref<32x56xbf16, #tpu.memory_space<vmem>>, vector<32x48xbf16>
    %cst_497 = arith.constant dense<0.000000e+00> : vector<32x48xf32>
    %457 = tpu.matmul %455, %456, %cst_497 {dimension_numbers = #tpu.dot_dimension_numbers<[1], [0], [0], [1], [0, 0, 1, 1], [], []>} : vector<32x32xbf16>, vector<32x48xbf16>, vector<32x48xf32> -> vector<32x48xf32>
    %458 = arith.addf %453, %457 : vector<32x48xf32>
    %c7_498 = arith.constant 7 : index
    %c0_499 = arith.constant 0 : index
    %c0_500 = arith.constant 0 : index
    %459 = vector.load %arg2[%c7_498, %c0_499, %c0_500] : memref<9x32x32xbf16, #tpu.memory_space<vmem>>, vector<1x32x32xbf16>
    %460 = vector.shape_cast %459 : vector<1x32x32xbf16> to vector<32x32xbf16>
    %c0_501 = arith.constant 0 : index
    %c7_502 = arith.constant 7 : index
    %461 = vector.load %arg6[%c0_501, %c7_502] : memref<32x56xbf16, #tpu.memory_space<vmem>>, vector<32x48xbf16>
    %cst_503 = arith.constant dense<0.000000e+00> : vector<32x48xf32>
    %462 = tpu.matmul %460, %461, %cst_503 {dimension_numbers = #tpu.dot_dimension_numbers<[1], [0], [0], [1], [0, 0, 1, 1], [], []>} : vector<32x32xbf16>, vector<32x48xbf16>, vector<32x48xf32> -> vector<32x48xf32>
    %463 = arith.addf %458, %462 : vector<32x48xf32>
    %c8_504 = arith.constant 8 : index
    %c0_505 = arith.constant 0 : index
    %c0_506 = arith.constant 0 : index
    %464 = vector.load %arg2[%c8_504, %c0_505, %c0_506] : memref<9x32x32xbf16, #tpu.memory_space<vmem>>, vector<1x32x32xbf16>
    %465 = vector.shape_cast %464 : vector<1x32x32xbf16> to vector<32x32xbf16>
    %c0_507 = arith.constant 0 : index
    %c8_508 = arith.constant 8 : index
    %466 = vector.load %arg6[%c0_507, %c8_508] : memref<32x56xbf16, #tpu.memory_space<vmem>>, vector<32x48xbf16>
    %cst_509 = arith.constant dense<0.000000e+00> : vector<32x48xf32>
    %467 = tpu.matmul %465, %466, %cst_509 {dimension_numbers = #tpu.dot_dimension_numbers<[1], [0], [0], [1], [0, 0, 1, 1], [], []>} : vector<32x32xbf16>, vector<32x48xbf16>, vector<32x48xf32> -> vector<32x48xf32>
    %468 = arith.addf %463, %467 : vector<32x48xf32>
    %cst_510 = arith.constant 0.000000e+00 : f32
    %469 = vector.broadcast %cst_510 : f32 to vector<32x48xf32>
    %470 = arith.maximumf %468, %469 : vector<32x48xf32>
    %471 = arith.mulf %470, %7 : vector<32x48xf32>
    %c0_511 = arith.constant 0 : index
    %472 = arith.index_cast %421 : i32 to index
    %c0_512 = arith.constant 0 : index
    %c0_513 = arith.constant 0 : index
    %473 = vector.load %arg5[%c0_511, %472, %c0_512, %c0_513] : memref<1x6x32x48xf32, #tpu.memory_space<vmem>>, vector<1x1x32x48xf32>
    %474 = vector.shape_cast %473 : vector<1x1x32x48xf32> to vector<32x48xf32>
    %475 = arith.addf %471, %474 : vector<32x48xf32>
    %c0_514 = arith.constant 0 : index
    %476 = arith.index_cast %421 : i32 to index
    %c0_515 = arith.constant 0 : index
    %c0_516 = arith.constant 0 : index
    %477 = vector.load %arg5[%c0_514, %476, %c0_515, %c0_516] : memref<1x6x32x48xf32, #tpu.memory_space<vmem>>, vector<1x1x32x48xf32>
    %478 = vector.shape_cast %477 : vector<1x1x32x48xf32> to vector<32x48xf32>
    %479 = vector.shape_cast %475 : vector<32x48xf32> to vector<1x1x32x48xf32>
    tpu.vector_store %arg5[%c0_514, %476, %c0_515, %c0_516], %479 {strides = array<i32>} : memref<1x6x32x48xf32, #tpu.memory_space<vmem>>, vector<1x1x32x48xf32>,
    %c3_i32_517 = arith.constant 3 : i32
    %c4_i32_518 = arith.constant 4 : i32
    %480 = arith.subi %c4_i32_518, %c3_i32_517 : i32
    %481 = arith.truncf %475 : vector<32x48xf32> to vector<32x48xbf16>
    %c0_519 = arith.constant 0 : index
    %c4_520 = arith.constant 4 : index
    %482 = vector.load %arg6[%c0_519, %c4_520] : memref<32x56xbf16, #tpu.memory_space<vmem>>, vector<32x48xbf16>
    tpu.vector_store %arg6[%c0_519, %c4_520], %481 {strides = array<i32>} : memref<32x56xbf16, #tpu.memory_space<vmem>>, vector<32x48xbf16>,
    %c0_521 = arith.constant 0 : index
    %c0_522 = arith.constant 0 : index
    %c0_523 = arith.constant 0 : index
    %483 = vector.load %arg2[%c0_521, %c0_522, %c0_523] : memref<9x32x32xbf16, #tpu.memory_space<vmem>>, vector<1x32x32xbf16>
    %484 = vector.shape_cast %483 : vector<1x32x32xbf16> to vector<32x32xbf16>
    %c0_524 = arith.constant 0 : index
    %c0_525 = arith.constant 0 : index
    %485 = vector.load %arg6[%c0_524, %c0_525] : memref<32x56xbf16, #tpu.memory_space<vmem>>, vector<32x48xbf16>
    %cst_526 = arith.constant dense<0.000000e+00> : vector<32x48xf32>
    %486 = tpu.matmul %484, %485, %cst_526 {dimension_numbers = #tpu.dot_dimension_numbers<[1], [0], [0], [1], [0, 0, 1, 1], [], []>} : vector<32x32xbf16>, vector<32x48xbf16>, vector<32x48xf32> -> vector<32x48xf32>
    %487 = arith.addf %6, %486 : vector<32x48xf32>
    %c1_527 = arith.constant 1 : index
    %c0_528 = arith.constant 0 : index
    %c0_529 = arith.constant 0 : index
    %488 = vector.load %arg2[%c1_527, %c0_528, %c0_529] : memref<9x32x32xbf16, #tpu.memory_space<vmem>>, vector<1x32x32xbf16>
    %489 = vector.shape_cast %488 : vector<1x32x32xbf16> to vector<32x32xbf16>
    %c0_530 = arith.constant 0 : index
    %c1_531 = arith.constant 1 : index
    %490 = vector.load %arg6[%c0_530, %c1_531] : memref<32x56xbf16, #tpu.memory_space<vmem>>, vector<32x48xbf16>
    %cst_532 = arith.constant dense<0.000000e+00> : vector<32x48xf32>
    %491 = tpu.matmul %489, %490, %cst_532 {dimension_numbers = #tpu.dot_dimension_numbers<[1], [0], [0], [1], [0, 0, 1, 1], [], []>} : vector<32x32xbf16>, vector<32x48xbf16>, vector<32x48xf32> -> vector<32x48xf32>
    %492 = arith.addf %487, %491 : vector<32x48xf32>
    %c2_533 = arith.constant 2 : index
    %c0_534 = arith.constant 0 : index
    %c0_535 = arith.constant 0 : index
    %493 = vector.load %arg2[%c2_533, %c0_534, %c0_535] : memref<9x32x32xbf16, #tpu.memory_space<vmem>>, vector<1x32x32xbf16>
    %494 = vector.shape_cast %493 : vector<1x32x32xbf16> to vector<32x32xbf16>
    %c0_536 = arith.constant 0 : index
    %c2_537 = arith.constant 2 : index
    %495 = vector.load %arg6[%c0_536, %c2_537] : memref<32x56xbf16, #tpu.memory_space<vmem>>, vector<32x48xbf16>
    %cst_538 = arith.constant dense<0.000000e+00> : vector<32x48xf32>
    %496 = tpu.matmul %494, %495, %cst_538 {dimension_numbers = #tpu.dot_dimension_numbers<[1], [0], [0], [1], [0, 0, 1, 1], [], []>} : vector<32x32xbf16>, vector<32x48xbf16>, vector<32x48xf32> -> vector<32x48xf32>
    %497 = arith.addf %492, %496 : vector<32x48xf32>
    %c3_539 = arith.constant 3 : index
    %c0_540 = arith.constant 0 : index
    %c0_541 = arith.constant 0 : index
    %498 = vector.load %arg2[%c3_539, %c0_540, %c0_541] : memref<9x32x32xbf16, #tpu.memory_space<vmem>>, vector<1x32x32xbf16>
    %499 = vector.shape_cast %498 : vector<1x32x32xbf16> to vector<32x32xbf16>
    %c0_542 = arith.constant 0 : index
    %c3_543 = arith.constant 3 : index
    %500 = vector.load %arg6[%c0_542, %c3_543] : memref<32x56xbf16, #tpu.memory_space<vmem>>, vector<32x48xbf16>
    %cst_544 = arith.constant dense<0.000000e+00> : vector<32x48xf32>
    %501 = tpu.matmul %499, %500, %cst_544 {dimension_numbers = #tpu.dot_dimension_numbers<[1], [0], [0], [1], [0, 0, 1, 1], [], []>} : vector<32x32xbf16>, vector<32x48xbf16>, vector<32x48xf32> -> vector<32x48xf32>
    %502 = arith.addf %497, %501 : vector<32x48xf32>
    %c4_545 = arith.constant 4 : index
    %c0_546 = arith.constant 0 : index
    %c0_547 = arith.constant 0 : index
    %503 = vector.load %arg2[%c4_545, %c0_546, %c0_547] : memref<9x32x32xbf16, #tpu.memory_space<vmem>>, vector<1x32x32xbf16>
    %504 = vector.shape_cast %503 : vector<1x32x32xbf16> to vector<32x32xbf16>
    %c0_548 = arith.constant 0 : index
    %c4_549 = arith.constant 4 : index
    %505 = vector.load %arg6[%c0_548, %c4_549] : memref<32x56xbf16, #tpu.memory_space<vmem>>, vector<32x48xbf16>
    %cst_550 = arith.constant dense<0.000000e+00> : vector<32x48xf32>
    %506 = tpu.matmul %504, %505, %cst_550 {dimension_numbers = #tpu.dot_dimension_numbers<[1], [0], [0], [1], [0, 0, 1, 1], [], []>} : vector<32x32xbf16>, vector<32x48xbf16>, vector<32x48xf32> -> vector<32x48xf32>
    %507 = arith.addf %502, %506 : vector<32x48xf32>
    %c5_551 = arith.constant 5 : index
    %c0_552 = arith.constant 0 : index
    %c0_553 = arith.constant 0 : index
    %508 = vector.load %arg2[%c5_551, %c0_552, %c0_553] : memref<9x32x32xbf16, #tpu.memory_space<vmem>>, vector<1x32x32xbf16>
    %509 = vector.shape_cast %508 : vector<1x32x32xbf16> to vector<32x32xbf16>
    %c0_554 = arith.constant 0 : index
    %c5_555 = arith.constant 5 : index
    %510 = vector.load %arg6[%c0_554, %c5_555] : memref<32x56xbf16, #tpu.memory_space<vmem>>, vector<32x48xbf16>
    %cst_556 = arith.constant dense<0.000000e+00> : vector<32x48xf32>
    %511 = tpu.matmul %509, %510, %cst_556 {dimension_numbers = #tpu.dot_dimension_numbers<[1], [0], [0], [1], [0, 0, 1, 1], [], []>} : vector<32x32xbf16>, vector<32x48xbf16>, vector<32x48xf32> -> vector<32x48xf32>
    %512 = arith.addf %507, %511 : vector<32x48xf32>
    %c6_557 = arith.constant 6 : index
    %c0_558 = arith.constant 0 : index
    %c0_559 = arith.constant 0 : index
    %513 = vector.load %arg2[%c6_557, %c0_558, %c0_559] : memref<9x32x32xbf16, #tpu.memory_space<vmem>>, vector<1x32x32xbf16>
    %514 = vector.shape_cast %513 : vector<1x32x32xbf16> to vector<32x32xbf16>
    %c0_560 = arith.constant 0 : index
    %c6_561 = arith.constant 6 : index
    %515 = vector.load %arg6[%c0_560, %c6_561] : memref<32x56xbf16, #tpu.memory_space<vmem>>, vector<32x48xbf16>
    %cst_562 = arith.constant dense<0.000000e+00> : vector<32x48xf32>
    %516 = tpu.matmul %514, %515, %cst_562 {dimension_numbers = #tpu.dot_dimension_numbers<[1], [0], [0], [1], [0, 0, 1, 1], [], []>} : vector<32x32xbf16>, vector<32x48xbf16>, vector<32x48xf32> -> vector<32x48xf32>
    %517 = arith.addf %512, %516 : vector<32x48xf32>
    %c7_563 = arith.constant 7 : index
    %c0_564 = arith.constant 0 : index
    %c0_565 = arith.constant 0 : index
    %518 = vector.load %arg2[%c7_563, %c0_564, %c0_565] : memref<9x32x32xbf16, #tpu.memory_space<vmem>>, vector<1x32x32xbf16>
    %519 = vector.shape_cast %518 : vector<1x32x32xbf16> to vector<32x32xbf16>
    %c0_566 = arith.constant 0 : index
    %c7_567 = arith.constant 7 : index
    %520 = vector.load %arg6[%c0_566, %c7_567] : memref<32x56xbf16, #tpu.memory_space<vmem>>, vector<32x48xbf16>
    %cst_568 = arith.constant dense<0.000000e+00> : vector<32x48xf32>
    %521 = tpu.matmul %519, %520, %cst_568 {dimension_numbers = #tpu.dot_dimension_numbers<[1], [0], [0], [1], [0, 0, 1, 1], [], []>} : vector<32x32xbf16>, vector<32x48xbf16>, vector<32x48xf32> -> vector<32x48xf32>
    %522 = arith.addf %517, %521 : vector<32x48xf32>
    %c8_569 = arith.constant 8 : index
    %c0_570 = arith.constant 0 : index
    %c0_571 = arith.constant 0 : index
    %523 = vector.load %arg2[%c8_569, %c0_570, %c0_571] : memref<9x32x32xbf16, #tpu.memory_space<vmem>>, vector<1x32x32xbf16>
    %524 = vector.shape_cast %523 : vector<1x32x32xbf16> to vector<32x32xbf16>
    %c0_572 = arith.constant 0 : index
    %c8_573 = arith.constant 8 : index
    %525 = vector.load %arg6[%c0_572, %c8_573] : memref<32x56xbf16, #tpu.memory_space<vmem>>, vector<32x48xbf16>
    %cst_574 = arith.constant dense<0.000000e+00> : vector<32x48xf32>
    %526 = tpu.matmul %524, %525, %cst_574 {dimension_numbers = #tpu.dot_dimension_numbers<[1], [0], [0], [1], [0, 0, 1, 1], [], []>} : vector<32x32xbf16>, vector<32x48xbf16>, vector<32x48xf32> -> vector<32x48xf32>
    %527 = arith.addf %522, %526 : vector<32x48xf32>
    %cst_575 = arith.constant 0.000000e+00 : f32
    %528 = vector.broadcast %cst_575 : f32 to vector<32x48xf32>
    %529 = arith.maximumf %527, %528 : vector<32x48xf32>
    %530 = arith.mulf %529, %7 : vector<32x48xf32>
    %c0_576 = arith.constant 0 : index
    %531 = arith.index_cast %480 : i32 to index
    %c0_577 = arith.constant 0 : index
    %c0_578 = arith.constant 0 : index
    %532 = vector.load %arg5[%c0_576, %531, %c0_577, %c0_578] : memref<1x6x32x48xf32, #tpu.memory_space<vmem>>, vector<1x1x32x48xf32>
    %533 = vector.shape_cast %532 : vector<1x1x32x48xf32> to vector<32x48xf32>
    %534 = arith.addf %530, %533 : vector<32x48xf32>
    %c0_579 = arith.constant 0 : index
    %535 = arith.index_cast %480 : i32 to index
    %c0_580 = arith.constant 0 : index
    %c0_581 = arith.constant 0 : index
    %536 = vector.load %arg5[%c0_579, %535, %c0_580, %c0_581] : memref<1x6x32x48xf32, #tpu.memory_space<vmem>>, vector<1x1x32x48xf32>
    %537 = vector.shape_cast %536 : vector<1x1x32x48xf32> to vector<32x48xf32>
    %538 = vector.shape_cast %534 : vector<32x48xf32> to vector<1x1x32x48xf32>
    tpu.vector_store %arg5[%c0_579, %535, %c0_580, %c0_581], %538 {strides = array<i32>} : memref<1x6x32x48xf32, #tpu.memory_space<vmem>>, vector<1x1x32x48xf32>,
    %c4_i32_582 = arith.constant 4 : i32
    return
  }
  func.func @transform_0(%arg0: i32) -> (i32, i32, i32, i32) {
    %c0_i32 = arith.constant 0 : i32
    %c0_i32_0 = arith.constant 0 : i32
    %c0_i32_1 = arith.constant 0 : i32
    %c0_i32_2 = arith.constant 0 : i32
    return %arg0, %c0_i32, %c0_i32_0, %c0_i32_1 : i32, i32, i32, i32
  }
  func.func @transform_1(%arg0: i32) -> (i32, i32, i32) {
    %c0_i32 = arith.constant 0 : i32
    %c0_i32_0 = arith.constant 0 : i32
    %c0_i32_1 = arith.constant 0 : i32
    %c0_i32_2 = arith.constant 0 : i32
    return %c0_i32, %c0_i32_0, %c0_i32_1 : i32, i32, i32
  }
  func.func @transform_2(%arg0: i32) -> (i32, i32) {
    %c0_i32 = arith.constant 0 : i32
    %c0_i32_0 = arith.constant 0 : i32
    %c0_i32_1 = arith.constant 0 : i32
    return %c0_i32, %c0_i32_0 : i32, i32
  }
  func.func @transform_3(%arg0: i32) -> (i32, i32) {
    %c0_i32 = arith.constant 0 : i32
    %c0_i32_0 = arith.constant 0 : i32
    %c0_i32_1 = arith.constant 0 : i32
    return %c0_i32, %c0_i32_0 : i32, i32
  }
  func.func @transform_4(%arg0: i32) -> (i32, i32, i32, i32) {
    %c0_i32 = arith.constant 0 : i32
    %c0_i32_0 = arith.constant 0 : i32
    %c0_i32_1 = arith.constant 0 : i32
    %c0_i32_2 = arith.constant 0 : i32
    return %arg0, %c0_i32, %c0_i32_0, %c0_i32_1 : i32, i32, i32, i32
  }
}

</mosaic_0001>

<llo_original>
// kernel: convlr_pallas.1
$region0: #{convlr_pallas.1}
  #allocation0 [shape = 'u32[]', space=smem, size = 0x4, offset = 0x4, fixed_abs, tag = 'smem constant byte address 0x4 - core index']
  #allocation1 [shape = 'u32[72,128]{1,0:T(1,128)}', space=vmem, size = 0x9000, scoped, tag = 'internal scratch']
  #allocation2 [shape = 'bf16[32,56]{1,0:T(8,128)(2,1)}', space=vmem, size = 0x2000, scoped, tag = 'scratch operand']
  %s0 = inlined_call_operand.vmem [shape: f32[1,6,32,48], index: 0, kind: input, shape index: {}, may-alias: {0,4}]
  %s1 = inlined_call_operand.vmem [shape: bf16[9,32,32], index: 1, kind: input, shape index: {}]
  %s2 = inlined_call_operand.vmem [shape: f32[32,1], index: 2, kind: input, shape index: {}]
  %s3 = inlined_call_operand.vmem [shape: f32[32,48], index: 3, kind: input, shape index: {}]
  %s4 = inlined_call_operand.vmem [shape: f32[1,6,32,48], index: 4, kind: output, shape index: {}, may-alias: {0,4}]
  %s5 = sld [smem:[#allocation0]]
  $region26: #{convlr_pallas.1} parent=0
    _
  %s7 = ssub.s32 1, %s5
  %s8 = scalar_select 0, %s7, %s5
  // Predicated region
  $region2: #{convlr_pallas.1} parent=0 // pred_check
    _
  $region3: #{convlr_pallas.1} parent=0 // pred_check_branch
    %10 = sbr.rel (0) target = $region5
  $region4: #{convlr_pallas.1} parent=0 // pred_region
    _
  $region5: #{convlr_pallas.1} parent=0 // pred_fallthru
    _
  // Predicated region
  $region6: #{convlr_pallas.1} parent=0 // pred_check
    _
  $region7: #{convlr_pallas.1} parent=0 // pred_check_branch
    %12 = sbr.rel (0) target = $region9
  $region8: #{convlr_pallas.1} parent=0 // pred_region
    _
  $region9: #{convlr_pallas.1} parent=0 // pred_fallthru
    _
  // Predicated region
  $region10: #{convlr_pallas.1} parent=0 // pred_check
    _
  $region11: #{convlr_pallas.1} parent=0 // pred_check_branch
    %14 = sbr.rel (0) target = $region13
  $region12: #{convlr_pallas.1} parent=0 // pred_region
    _
  $region13: #{convlr_pallas.1} parent=0 // pred_fallthru
    _
  // Predicated region
  $region14: #{convlr_pallas.1} parent=0 // pred_check
    _
  $region15: #{convlr_pallas.1} parent=0 // pred_check_branch
    %16 = sbr.rel (0) target = $region17
  $region16: #{convlr_pallas.1} parent=0 // pred_region
    _
  $region17: #{convlr_pallas.1} parent=0 // pred_fallthru
    _
  %vm18 = vcmask 27648
  %19 = vst.msk [vmem:[#allocation2] sm:$0xf] %vm18, 0
  %20 = vst.msk [vmem:[#allocation2 + $0x4] sm:$0xf] %vm18, 0
  %21 = vst.msk [vmem:[#allocation2 + $0x8] sm:$0xf] %vm18, 0
  %22 = vst.msk [vmem:[#allocation2 + $0xc] sm:$0xf] %vm18, 0
  %vm23 = vcmask 454048
  %24 = vst.msk [vmem:[#allocation2] sm:$0xf] %vm23, 0
  %25 = vst.msk [vmem:[#allocation2 + $0x4] sm:$0xf] %vm23, 0
  %26 = vst.msk [vmem:[#allocation2 + $0x8] sm:$0xf] %vm23, 0
  %27 = vst.msk [vmem:[#allocation2 + $0xc] sm:$0xf] %vm23, 0
  %v28 = vld [vmem:[%s2] sm:$0xff]
  %v29 = vld [vmem:[%s2 + $0x8] sm:$0xff]
  %v30 = vld [vmem:[%s2 + $0x10] sm:$0xff]
  %v31 = vld [vmem:[%s2 + $0x18] sm:$0xff]
  %33 = vset.pattern.permute.xlu0 0
  %34 = vperm.xlu0 %33, %v28
  %v35 = vpop.permute.xlu0 %34
  %38 = vset.pattern.permute.xlu0 0
  %39 = vperm.xlu0 %38, %v29
  %v40 = vpop.permute.xlu0 %39
  %43 = vset.pattern.permute.xlu0 0
  %44 = vperm.xlu0 %43, %v30
  %v45 = vpop.permute.xlu0 %44
  %48 = vset.pattern.permute.xlu0 0
  %49 = vperm.xlu0 %48, %v31
  %v50 = vpop.permute.xlu0 %49
  %v52 = vld [vmem:[%s3] sm:$0xff]
  %v53 = vld [vmem:[%s3 + $0x8] sm:$0xff]
  %v54 = vld [vmem:[%s3 + $0x10] sm:$0xff]
  %v55 = vld [vmem:[%s3 + $0x18] sm:$0xff]
  %v56 = vld [vmem:[%s0] sm:$0xff]
  %v57 = vld [vmem:[%s0 + $0x8] sm:$0xff]
  %v58 = vld [vmem:[%s0 + $0x10] sm:$0xff]
  %v59 = vld [vmem:[%s0 + $0x18] sm:$0xff]
  %vm60 = vcmask 392192
  %61 = vst.msk [vmem:[%s4] sm:$0xff] %vm60, %v56
  %62 = vst.msk [vmem:[%s4 + $0x8] sm:$0xff] %vm60, %v57
  %63 = vst.msk [vmem:[%s4 + $0x10] sm:$0xff] %vm60, %v58
  %64 = vst.msk [vmem:[%s4 + $0x18] sm:$0xff] %vm60, %v59
  %v65 = vpack.c.bf16 %v56, %v56
  %v66 = vpack.c.bf16 %v57, %v57
  %v67 = vpack.c.bf16 %v58, %v58
  %v68 = vpack.c.bf16 %v59, %v59
  %73 = vrot.lane.b32.xlu0 %v65, 4
  %v74 = vpop.permute.xlu0 %73
  %75 = vrot.lane.b32.xlu0 %v66, 4
  %v76 = vpop.permute.xlu0 %75
  %77 = vrot.lane.b32.xlu0 %v67, 4
  %v78 = vpop.permute.xlu0 %77
  %79 = vrot.lane.b32.xlu0 %v68, 4
  %v80 = vpop.permute.xlu0 %79
  %vm85 = vcmask 420896
  %86 = vst.msk [vmem:[#allocation2] sm:$0xf] %vm85, %v74
  %87 = vst.msk [vmem:[#allocation2 + $0x4] sm:$0xf] %vm85, %v76
  %88 = vst.msk [vmem:[#allocation2 + $0x8] sm:$0xf] %vm85, %v78
  %89 = vst.msk [vmem:[#allocation2 + $0xc] sm:$0xf] %vm85, %v80
  %v90 = vld [vmem:[%s1] sm:$0xf]
  %v91 = vld [vmem:[%s1 + $0x4] sm:$0xf]
  %v92 = vld [vmem:[%s1 + $0x8] sm:$0xf]
  %v93 = vld [vmem:[%s1 + $0xc] sm:$0xf]
  %v94 = vld [vmem:[#allocation2] sm:$0xf]
  %v95 = vld [vmem:[#allocation2 + $0x4] sm:$0xf]
  %v96 = vld [vmem:[#allocation2 + $0x8] sm:$0xf]
  %v97 = vld [vmem:[#allocation2 + $0xc] sm:$0xf]
  %v102 = vunpack.c.l.b16 %v90
  %v103 = vunpack.c.l.b16 %v91
  %v104 = vunpack.c.l.b16 %v92
  %v105 = vunpack.c.l.b16 %v93
  %v106 = vpack.c.b16 %v103, %v102
  %v107 = vpack.c.b16 %v105, %v104
  %v112 = vunpack.c.l.b16 %v94
  %v113 = vunpack.c.l.b16 %v95
  %v114 = vunpack.c.l.b16 %v96
  %v115 = vunpack.c.l.b16 %v97
  %v116 = vpack.c.b16 %v113, %v112
  %v117 = vpack.c.b16 %v115, %v114
  %vm120 = vcmask 261120
  %v122 = vsel %vm120, %v106, 0
  %v125 = vsel %vm120, %v107, 0
  %127 = vmatpush.bf16.msra.mxu0 0
  %128 = vmatpush.bf16.msra.mxu0 0
  %129 = vmatpush.bf16.msra.mxu0 0
  %130 = vmatpush.bf16.msra.mxu0 0
  %131 = vmatpush.bf16.msra.mxu0 0
  %132 = vmatpush.bf16.msra.mxu0 0
  %133 = vmatpush.bf16.msra.mxu0 %v117
  %134 = vmatpush.bf16.msra.mxu0 %v116
  %135 = vmatmul.bf16.gmra.mxu0 %v122
  %v136 = vpop.f32.mrf.mxu0
  %v137 = vadd.f32 0.0, %v136
  %v138 = vpop.f32.mrf.mxu0
  %v139 = vadd.f32 0.0, %v138
  %140 = vmatmul.bf16.gmra.mxu0 %v125
  %v141 = vpop.f32.mrf.mxu0
  %v142 = vadd.f32 0.0, %v141
  %v143 = vpop.f32.mrf.mxu0
  %v144 = vadd.f32 0.0, %v143
  %145 = vdwg.mxu0
  %v146 = vadd.f32 %v35, %v137
  %v147 = vadd.f32 %v40, %v139
  %v148 = vadd.f32 %v45, %v142
  %v149 = vadd.f32 %v50, %v144
  %s150 = scalar_lea.vmem %s1, 16
  %v151 = vld [vmem:[%s150] sm:$0xf]
  %v152 = vld [vmem:[%s150 + $0x4] sm:$0xf]
  %v153 = vld [vmem:[%s150 + $0x8] sm:$0xf]
  %v154 = vld [vmem:[%s150 + $0xc] sm:$0xf]
  %v159 = vunpack.c.l.b16 %v151
  %v160 = vunpack.c.l.b16 %v152
  %v161 = vunpack.c.l.b16 %v153
  %v162 = vunpack.c.l.b16 %v154
  %v163 = vpack.c.b16 %v160, %v159
  %v164 = vpack.c.b16 %v162, %v161
  %165 = vrot.lane.b32.xlu0 %v116, 127
  %v166 = vpop.permute.xlu0 %165
  %167 = vrot.lane.b32.xlu0 %v117, 127
  %v168 = vpop.permute.xlu0 %167
  %v172 = vsel %vm120, %v163, 0
  %v175 = vsel %vm120, %v164, 0
  %177 = vmatpush.bf16.msra.mxu0 0
  %178 = vmatpush.bf16.msra.mxu0 0
  %179 = vmatpush.bf16.msra.mxu0 0
  %180 = vmatpush.bf16.msra.mxu0 0
  %181 = vmatpush.bf16.msra.mxu0 0
  %182 = vmatpush.bf16.msra.mxu0 0
  %183 = vmatpush.bf16.msra.mxu0 %v168
  %184 = vmatpush.bf16.msra.mxu0 %v166
  %185 = vmatmul.bf16.gmra.mxu0 %v172
  %v186 = vpop.f32.mrf.mxu0
  %v187 = vadd.f32 0.0, %v186
  %v188 = vpop.f32.mrf.mxu0
  %v189 = vadd.f32 0.0, %v188
  %190 = vmatmul.bf16.gmra.mxu0 %v175
  %v191 = vpop.f32.mrf.mxu0
  %v192 = vadd.f32 0.0, %v191
  %v193 = vpop.f32.mrf.mxu0
  %v194 = vadd.f32 0.0, %v193
  %195 = vdwg.mxu0
  %v196 = vadd.f32 %v146, %v187
  %v197 = vadd.f32 %v147, %v189
  %v198 = vadd.f32 %v148, %v192
  %v199 = vadd.f32 %v149, %v194
  %s200 = scalar_lea.vmem %s1, 32
  %v201 = vld [vmem:[%s200] sm:$0xf]
  %v202 = vld [vmem:[%s200 + $0x4] sm:$0xf]
  %v203 = vld [vmem:[%s200 + $0x8] sm:$0xf]
  %v204 = vld [vmem:[%s200 + $0xc] sm:$0xf]
  %v209 = vunpack.c.l.b16 %v201
  %v210 = vunpack.c.l.b16 %v202
  %v211 = vunpack.c.l.b16 %v203
  %v212 = vunpack.c.l.b16 %v204
  %v213 = vpack.c.b16 %v210, %v209
  %v214 = vpack.c.b16 %v212, %v211
  %215 = vrot.lane.b32.xlu0 %v116, 126
  %v216 = vpop.permute.xlu0 %215
  %217 = vrot.lane.b32.xlu0 %v117, 126
  %v218 = vpop.permute.xlu0 %217
  %v222 = vsel %vm120, %v213, 0
  %v225 = vsel %vm120, %v214, 0
  %227 = vmatpush.bf16.msra.mxu0 0
  %228 = vmatpush.bf16.msra.mxu0 0
  %229 = vmatpush.bf16.msra.mxu0 0
  %230 = vmatpush.bf16.msra.mxu0 0
  %231 = vmatpush.bf16.msra.mxu0 0
  %232 = vmatpush.bf16.msra.mxu0 0
  %233 = vmatpush.bf16.msra.mxu0 %v218
  %234 = vmatpush.bf16.msra.mxu0 %v216
  %235 = vmatmul.bf16.gmra.mxu0 %v222
  %v236 = vpop.f32.mrf.mxu0
  %v237 = vadd.f32 0.0, %v236
  %v238 = vpop.f32.mrf.mxu0
  %v239 = vadd.f32 0.0, %v238
  %240 = vmatmul.bf16.gmra.mxu0 %v225
  %v241 = vpop.f32.mrf.mxu0
  %v242 = vadd.f32 0.0, %v241
  %v243 = vpop.f32.mrf.mxu0
  %v244 = vadd.f32 0.0, %v243
  %245 = vdwg.mxu0
  %v246 = vadd.f32 %v196, %v237
  %v247 = vadd.f32 %v197, %v239
  %v248 = vadd.f32 %v198, %v242
  %v249 = vadd.f32 %v199, %v244
  %s250 = scalar_lea.vmem %s1, 48
  %v251 = vld [vmem:[%s250] sm:$0xf]
  %v252 = vld [vmem:[%s250 + $0x4] sm:$0xf]
  %v253 = vld [vmem:[%s250 + $0x8] sm:$0xf]
  %v254 = vld [vmem:[%s250 + $0xc] sm:$0xf]
  %v259 = vunpack.c.l.b16 %v251
  %v260 = vunpack.c.l.b16 %v252
  %v261 = vunpack.c.l.b16 %v253
  %v262 = vunpack.c.l.b16 %v254
  %v263 = vpack.c.b16 %v260, %v259
  %v264 = vpack.c.b16 %v262, %v261
  %265 = vrot.lane.b32.xlu0 %v116, 125
  %v266 = vpop.permute.xlu0 %265
  %267 = vrot.lane.b32.xlu0 %v117, 125
  %v268 = vpop.permute.xlu0 %267
  %v272 = vsel %vm120, %v263, 0
  %v275 = vsel %vm120, %v264, 0
  %277 = vmatpush.bf16.msra.mxu0 0
  %278 = vmatpush.bf16.msra.mxu0 0
  %279 = vmatpush.bf16.msra.mxu0 0
  %280 = vmatpush.bf16.msra.mxu0 0
  %281 = vmatpush.bf16.msra.mxu0 0
  %282 = vmatpush.bf16.msra.mxu0 0
  %283 = vmatpush.bf16.msra.mxu0 %v268
  %284 = vmatpush.bf16.msra.mxu0 %v266
  %285 = vmatmul.bf16.gmra.mxu0 %v272
  %v286 = vpop.f32.mrf.mxu0
  %v287 = vadd.f32 0.0, %v286
  %v288 = vpop.f32.mrf.mxu0
  %v289 = vadd.f32 0.0, %v288
  %290 = vmatmul.bf16.gmra.mxu0 %v275
  %v291 = vpop.f32.mrf.mxu0
  %v292 = vadd.f32 0.0, %v291
  %v293 = vpop.f32.mrf.mxu0
  %v294 = vadd.f32 0.0, %v293
  %295 = vdwg.mxu0
  %v296 = vadd.f32 %v246, %v287
  %v297 = vadd.f32 %v247, %v289
  %v298 = vadd.f32 %v248, %v292
  %v299 = vadd.f32 %v249, %v294
  %s300 = scalar_lea.vmem %s1, 64
  %v301 = vld [vmem:[%s300] sm:$0xf]
  %v302 = vld [vmem:[%s300 + $0x4] sm:$0xf]
  %v303 = vld [vmem:[%s300 + $0x8] sm:$0xf]
  %v304 = vld [vmem:[%s300 + $0xc] sm:$0xf]
  %v309 = vunpack.c.l.b16 %v301
  %v310 = vunpack.c.l.b16 %v302
  %v311 = vunpack.c.l.b16 %v303
  %v312 = vunpack.c.l.b16 %v304
  %v313 = vpack.c.b16 %v310, %v309
  %v314 = vpack.c.b16 %v312, %v311
  %315 = vrot.lane.b32.xlu0 %v116, 124
  %v316 = vpop.permute.xlu0 %315
  %317 = vrot.lane.b32.xlu0 %v117, 124
  %v318 = vpop.permute.xlu0 %317
  %v322 = vsel %vm120, %v313, 0
  %v325 = vsel %vm120, %v314, 0
  %327 = vmatpush.bf16.msra.mxu0 0
  %328 = vmatpush.bf16.msra.mxu0 0
  %329 = vmatpush.bf16.msra.mxu0 0
  %330 = vmatpush.bf16.msra.mxu0 0
  %331 = vmatpush.bf16.msra.mxu0 0
  %332 = vmatpush.bf16.msra.mxu0 0
  %333 = vmatpush.bf16.msra.mxu0 %v318
  %334 = vmatpush.bf16.msra.mxu0 %v316
  %335 = vmatmul.bf16.gmra.mxu0 %v322
  %v336 = vpop.f32.mrf.mxu0
  %v337 = vadd.f32 0.0, %v336
  %v338 = vpop.f32.mrf.mxu0
  %v339 = vadd.f32 0.0, %v338
  %340 = vmatmul.bf16.gmra.mxu0 %v325
  %v341 = vpop.f32.mrf.mxu0
  %v342 = vadd.f32 0.0, %v341
  %v343 = vpop.f32.mrf.mxu0
  %v344 = vadd.f32 0.0, %v343
  %345 = vdwg.mxu0
  %v346 = vadd.f32 %v296, %v337
  %v347 = vadd.f32 %v297, %v339
  %v348 = vadd.f32 %v298, %v342
  %v349 = vadd.f32 %v299, %v344
  %s350 = scalar_lea.vmem %s1, 80
  %v351 = vld [vmem:[%s350] sm:$0xf]
  %v352 = vld [vmem:[%s350 + $0x4] sm:$0xf]
  %v353 = vld [vmem:[%s350 + $0x8] sm:$0xf]
  %v354 = vld [vmem:[%s350 + $0xc] sm:$0xf]
  %v359 = vunpack.c.l.b16 %v351
  %v360 = vunpack.c.l.b16 %v352
  %v361 = vunpack.c.l.b16 %v353
  %v362 = vunpack.c.l.b16 %v354
  %v363 = vpack.c.b16 %v360, %v359
  %v364 = vpack.c.b16 %v362, %v361
  %365 = vrot.lane.b32.xlu0 %v116, 123
  %v366 = vpop.permute.xlu0 %365
  %367 = vrot.lane.b32.xlu0 %v117, 123
  %v368 = vpop.permute.xlu0 %367
  %v372 = vsel %vm120, %v363, 0
  %v375 = vsel %vm120, %v364, 0
  %377 = vmatpush.bf16.msra.mxu0 0
  %378 = vmatpush.bf16.msra.mxu0 0
  %379 = vmatpush.bf16.msra.mxu0 0
  %380 = vmatpush.bf16.msra.mxu0 0
  %381 = vmatpush.bf16.msra.mxu0 0
  %382 = vmatpush.bf16.msra.mxu0 0
  %383 = vmatpush.bf16.msra.mxu0 %v368
  %384 = vmatpush.bf16.msra.mxu0 %v366
  %385 = vmatmul.bf16.gmra.mxu0 %v372
  %v386 = vpop.f32.mrf.mxu0
  %v387 = vadd.f32 0.0, %v386
  %v388 = vpop.f32.mrf.mxu0
  %v389 = vadd.f32 0.0, %v388
  %390 = vmatmul.bf16.gmra.mxu0 %v375
  %v391 = vpop.f32.mrf.mxu0
  %v392 = vadd.f32 0.0, %v391
  %v393 = vpop.f32.mrf.mxu0
  %v394 = vadd.f32 0.0, %v393
  %395 = vdwg.mxu0
  %v396 = vadd.f32 %v346, %v387
  %v397 = vadd.f32 %v347, %v389
  %v398 = vadd.f32 %v348, %v392
  %v399 = vadd.f32 %v349, %v394
  %s400 = scalar_lea.vmem %s1, 96
  %v401 = vld [vmem:[%s400] sm:$0xf]
  %v402 = vld [vmem:[%s400 + $0x4] sm:$0xf]
  %v403 = vld [vmem:[%s400 + $0x8] sm:$0xf]
  %v404 = vld [vmem:[%s400 + $0xc] sm:$0xf]
  %v409 = vunpack.c.l.b16 %v401
  %v410 = vunpack.c.l.b16 %v402
  %v411 = vunpack.c.l.b16 %v403
  %v412 = vunpack.c.l.b16 %v404
  %v413 = vpack.c.b16 %v410, %v409
  %v414 = vpack.c.b16 %v412, %v411
  %415 = vrot.lane.b32.xlu0 %v116, 122
  %v416 = vpop.permute.xlu0 %415
  %417 = vrot.lane.b32.xlu0 %v117, 122
  %v418 = vpop.permute.xlu0 %417
  %v422 = vsel %vm120, %v413, 0
  %v425 = vsel %vm120, %v414, 0
  %427 = vmatpush.bf16.msra.mxu0 0
  %428 = vmatpush.bf16.msra.mxu0 0
  %429 = vmatpush.bf16.msra.mxu0 0
  %430 = vmatpush.bf16.msra.mxu0 0
  %431 = vmatpush.bf16.msra.mxu0 0
  %432 = vmatpush.bf16.msra.mxu0 0
  %433 = vmatpush.bf16.msra.mxu0 %v418
  %434 = vmatpush.bf16.msra.mxu0 %v416
  %435 = vmatmul.bf16.gmra.mxu0 %v422
  %v436 = vpop.f32.mrf.mxu0
  %v437 = vadd.f32 0.0, %v436
  %v438 = vpop.f32.mrf.mxu0
  %v439 = vadd.f32 0.0, %v438
  %440 = vmatmul.bf16.gmra.mxu0 %v425
  %v441 = vpop.f32.mrf.mxu0
  %v442 = vadd.f32 0.0, %v441
  %v443 = vpop.f32.mrf.mxu0
  %v444 = vadd.f32 0.0, %v443
  %445 = vdwg.mxu0
  %v446 = vadd.f32 %v396, %v437
  %v447 = vadd.f32 %v397, %v439
  %v448 = vadd.f32 %v398, %v442
  %v449 = vadd.f32 %v399, %v444
  %s450 = scalar_lea.vmem %s1, 112
  %v451 = vld [vmem:[%s450] sm:$0xf]
  %v452 = vld [vmem:[%s450 + $0x4] sm:$0xf]
  %v453 = vld [vmem:[%s450 + $0x8] sm:$0xf]
  %v454 = vld [vmem:[%s450 + $0xc] sm:$0xf]
  %v459 = vunpack.c.l.b16 %v451
  %v460 = vunpack.c.l.b16 %v452
  %v461 = vunpack.c.l.b16 %v453
  %v462 = vunpack.c.l.b16 %v454
  %v463 = vpack.c.b16 %v460, %v459
  %v464 = vpack.c.b16 %v462, %v461
  %465 = vrot.lane.b32.xlu0 %v116, 121
  %v466 = vpop.permute.xlu0 %465
  %467 = vrot.lane.b32.xlu0 %v117, 121
  %v468 = vpop.permute.xlu0 %467
  %v472 = vsel %vm120, %v463, 0
  %v475 = vsel %vm120, %v464, 0
  %477 = vmatpush.bf16.msra.mxu0 0
  %478 = vmatpush.bf16.msra.mxu0 0
  %479 = vmatpush.bf16.msra.mxu0 0
  %480 = vmatpush.bf16.msra.mxu0 0
  %481 = vmatpush.bf16.msra.mxu0 0
  %482 = vmatpush.bf16.msra.mxu0 0
  %483 = vmatpush.bf16.msra.mxu0 %v468
  %484 = vmatpush.bf16.msra.mxu0 %v466
  %485 = vmatmul.bf16.gmra.mxu0 %v472
  %v486 = vpop.f32.mrf.mxu0
  %v487 = vadd.f32 0.0, %v486
  %v488 = vpop.f32.mrf.mxu0
  %v489 = vadd.f32 0.0, %v488
  %490 = vmatmul.bf16.gmra.mxu0 %v475
  %v491 = vpop.f32.mrf.mxu0
  %v492 = vadd.f32 0.0, %v491
  %v493 = vpop.f32.mrf.mxu0
  %v494 = vadd.f32 0.0, %v493
  %495 = vdwg.mxu0
  %v496 = vadd.f32 %v446, %v487
  %v497 = vadd.f32 %v447, %v489
  %v498 = vadd.f32 %v448, %v492
  %v499 = vadd.f32 %v449, %v494
  %s500 = scalar_lea.vmem %s1, 128
  %v501 = vld [vmem:[%s500] sm:$0xf]
  %v502 = vld [vmem:[%s500 + $0x4] sm:$0xf]
  %v503 = vld [vmem:[%s500 + $0x8] sm:$0xf]
  %v504 = vld [vmem:[%s500 + $0xc] sm:$0xf]
  %v509 = vunpack.c.l.b16 %v501
  %v510 = vunpack.c.l.b16 %v502
  %v511 = vunpack.c.l.b16 %v503
  %v512 = vunpack.c.l.b16 %v504
  %v513 = vpack.c.b16 %v510, %v509
  %v514 = vpack.c.b16 %v512, %v511
  %515 = vrot.lane.b32.xlu0 %v116, 120
  %v516 = vpop.permute.xlu0 %515
  %517 = vrot.lane.b32.xlu0 %v117, 120
  %v518 = vpop.permute.xlu0 %517
  %v522 = vsel %vm120, %v513, 0
  %v525 = vsel %vm120, %v514, 0
  %527 = vmatpush.bf16.msra.mxu0 0
  %528 = vmatpush.bf16.msra.mxu0 0
  %529 = vmatpush.bf16.msra.mxu0 0
  %530 = vmatpush.bf16.msra.mxu0 0
  %531 = vmatpush.bf16.msra.mxu0 0
  %532 = vmatpush.bf16.msra.mxu0 0
  %533 = vmatpush.bf16.msra.mxu0 %v518
  %534 = vmatpush.bf16.msra.mxu0 %v516
  %535 = vmatmul.bf16.gmra.mxu0 %v522
  %v536 = vpop.f32.mrf.mxu0
  %v537 = vadd.f32 0.0, %v536
  %v538 = vpop.f32.mrf.mxu0
  %v539 = vadd.f32 0.0, %v538
  %540 = vmatmul.bf16.gmra.mxu0 %v525
  %v541 = vpop.f32.mrf.mxu0
  %v542 = vadd.f32 0.0, %v541
  %v543 = vpop.f32.mrf.mxu0
  %v544 = vadd.f32 0.0, %v543
  %545 = vdwg.mxu0
  %v546 = vadd.f32 %v496, %v537
  %v547 = vadd.f32 %v497, %v539
  %v548 = vadd.f32 %v498, %v542
  %v549 = vadd.f32 %v499, %v544
  %v550 = vmax.f32 %v546, 0.0
  %v551 = vmax.f32 %v547, 0.0
  %v552 = vmax.f32 %v548, 0.0
  %v553 = vmax.f32 %v549, 0.0
  %v554 = vmul.f32 %v550, %v52
  %v555 = vmul.f32 %v551, %v53
  %v556 = vmul.f32 %v552, %v54
  %v557 = vmul.f32 %v553, %v55
  %s558 = scalar_lea.vmem %s0, 32
  %v559 = vld [vmem:[%s558] sm:$0xff]
  %v560 = vld [vmem:[%s558 + $0x8] sm:$0xff]
  %v561 = vld [vmem:[%s558 + $0x10] sm:$0xff]
  %v562 = vld [vmem:[%s558 + $0x18] sm:$0xff]
  %v563 = vadd.f32 %v554, %v559
  %v564 = vadd.f32 %v555, %v560
  %v565 = vadd.f32 %v556, %v561
  %v566 = vadd.f32 %v557, %v562
  %s567 = scalar_lea.vmem %s4, 32
  %568 = vst.msk [vmem:[%s567] sm:$0xff] %vm60, %v563
  %569 = vst.msk [vmem:[%s567 + $0x8] sm:$0xff] %vm60, %v564
  %570 = vst.msk [vmem:[%s567 + $0x10] sm:$0xff] %vm60, %v565
  %571 = vst.msk [vmem:[%s567 + $0x18] sm:$0xff] %vm60, %v566
  %v572 = vpack.c.bf16 %v563, %v563
  %v573 = vpack.c.bf16 %v564, %v564
  %v574 = vpack.c.bf16 %v565, %v565
  %v575 = vpack.c.bf16 %v566, %v566
  %580 = vrot.lane.b32.xlu0 %v572, 4
  %v581 = vpop.permute.xlu0 %580
  %582 = vrot.lane.b32.xlu0 %v573, 4
  %v583 = vpop.permute.xlu0 %582
  %584 = vrot.lane.b32.xlu0 %v574, 4
  %v585 = vpop.permute.xlu0 %584
  %586 = vrot.lane.b32.xlu0 %v575, 4
  %v587 = vpop.permute.xlu0 %586
  %592 = vst.msk [vmem:[#allocation2] sm:$0xf] %vm85, %v581
  %593 = vst.msk [vmem:[#allocation2 + $0x4] sm:$0xf] %vm85, %v583
  %594 = vst.msk [vmem:[#allocation2 + $0x8] sm:$0xf] %vm85, %v585
  %595 = vst.msk [vmem:[#allocation2 + $0xc] sm:$0xf] %vm85, %v587
  %v596 = vld [vmem:[%s1] sm:$0xf]
  %v597 = vld [vmem:[%s1 + $0x4] sm:$0xf]
  %v598 = vld [vmem:[%s1 + $0x8] sm:$0xf]
  %v599 = vld [vmem:[%s1 + $0xc] sm:$0xf]
  %v600 = vld [vmem:[#allocation2] sm:$0xf]
  %v601 = vld [vmem:[#allocation2 + $0x4] sm:$0xf]
  %v602 = vld [vmem:[#allocation2 + $0x8] sm:$0xf]
  %v603 = vld [vmem:[#allocation2 + $0xc] sm:$0xf]
  %v608 = vunpack.c.l.b16 %v596
  %v609 = vunpack.c.l.b16 %v597
  %v610 = vunpack.c.l.b16 %v598
  %v611 = vunpack.c.l.b16 %v599
  %v612 = vpack.c.b16 %v609, %v608
  %v613 = vpack.c.b16 %v611, %v610
  %v618 = vunpack.c.l.b16 %v600
  %v619 = vunpack.c.l.b16 %v601
  %v620 = vunpack.c.l.b16 %v602
  %v621 = vunpack.c.l.b16 %v603
  %v622 = vpack.c.b16 %v619, %v618
  %v623 = vpack.c.b16 %v621, %v620
  %v627 = vsel %vm120, %v612, 0
  %v630 = vsel %vm120, %v613, 0
  %632 = vmatpush.bf16.msra.mxu0 0
  %633 = vmatpush.bf16.msra.mxu0 0
  %634 = vmatpush.bf16.msra.mxu0 0
  %635 = vmatpush.bf16.msra.mxu0 0
  %636 = vmatpush.bf16.msra.mxu0 0
  %637 = vmatpush.bf16.msra.mxu0 0
  %638 = vmatpush.bf16.msra.mxu0 %v623
  %639 = vmatpush.bf16.msra.mxu0 %v622
  %640 = vmatmul.bf16.gmra.mxu0 %v627
  %v641 = vpop.f32.mrf.mxu0
  %v642 = vadd.f32 0.0, %v641
  %v643 = vpop.f32.mrf.mxu0
  %v644 = vadd.f32 0.0, %v643
  %645 = vmatmul.bf16.gmra.mxu0 %v630
  %v646 = vpop.f32.mrf.mxu0
  %v647 = vadd.f32 0.0, %v646
  %v648 = vpop.f32.mrf.mxu0
  %v649 = vadd.f32 0.0, %v648
  %650 = vdwg.mxu0
  %v651 = vadd.f32 %v35, %v642
  %v652 = vadd.f32 %v40, %v644
  %v653 = vadd.f32 %v45, %v647
  %v654 = vadd.f32 %v50, %v649
  %v655 = vld [vmem:[%s150] sm:$0xf]
  %v656 = vld [vmem:[%s150 + $0x4] sm:$0xf]
  %v657 = vld [vmem:[%s150 + $0x8] sm:$0xf]
  %v658 = vld [vmem:[%s150 + $0xc] sm:$0xf]
  %v663 = vunpack.c.l.b16 %v655
  %v664 = vunpack.c.l.b16 %v656
  %v665 = vunpack.c.l.b16 %v657
  %v666 = vunpack.c.l.b16 %v658
  %v667 = vpack.c.b16 %v664, %v663
  %v668 = vpack.c.b16 %v666, %v665
  %669 = vrot.lane.b32.xlu0 %v622, 127
  %v670 = vpop.permute.xlu0 %669
  %671 = vrot.lane.b32.xlu0 %v623, 127
  %v672 = vpop.permute.xlu0 %671
  %v676 = vsel %vm120, %v667, 0
  %v679 = vsel %vm120, %v668, 0
  %681 = vmatpush.bf16.msra.mxu0 0
  %682 = vmatpush.bf16.msra.mxu0 0
  %683 = vmatpush.bf16.msra.mxu0 0
  %684 = vmatpush.bf16.msra.mxu0 0
  %685 = vmatpush.bf16.msra.mxu0 0
  %686 = vmatpush.bf16.msra.mxu0 0
  %687 = vmatpush.bf16.msra.mxu0 %v672
  %688 = vmatpush.bf16.msra.mxu0 %v670
  %689 = vmatmul.bf16.gmra.mxu0 %v676
  %v690 = vpop.f32.mrf.mxu0
  %v691 = vadd.f32 0.0, %v690
  %v692 = vpop.f32.mrf.mxu0
  %v693 = vadd.f32 0.0, %v692
  %694 = vmatmul.bf16.gmra.mxu0 %v679
  %v695 = vpop.f32.mrf.mxu0
  %v696 = vadd.f32 0.0, %v695
  %v697 = vpop.f32.mrf.mxu0
  %v698 = vadd.f32 0.0, %v697
  %699 = vdwg.mxu0
  %v700 = vadd.f32 %v651, %v691
  %v701 = vadd.f32 %v652, %v693
  %v702 = vadd.f32 %v653, %v696
  %v703 = vadd.f32 %v654, %v698
  %v704 = vld [vmem:[%s200] sm:$0xf]
  %v705 = vld [vmem:[%s200 + $0x4] sm:$0xf]
  %v706 = vld [vmem:[%s200 + $0x8] sm:$0xf]
  %v707 = vld [vmem:[%s200 + $0xc] sm:$0xf]
  %v712 = vunpack.c.l.b16 %v704
  %v713 = vunpack.c.l.b16 %v705
  %v714 = vunpack.c.l.b16 %v706
  %v715 = vunpack.c.l.b16 %v707
  %v716 = vpack.c.b16 %v713, %v712
  %v717 = vpack.c.b16 %v715, %v714
  %718 = vrot.lane.b32.xlu0 %v622, 126
  %v719 = vpop.permute.xlu0 %718
  %720 = vrot.lane.b32.xlu0 %v623, 126
  %v721 = vpop.permute.xlu0 %720
  %v725 = vsel %vm120, %v716, 0
  %v728 = vsel %vm120, %v717, 0
  %730 = vmatpush.bf16.msra.mxu0 0
  %731 = vmatpush.bf16.msra.mxu0 0
  %732 = vmatpush.bf16.msra.mxu0 0
  %733 = vmatpush.bf16.msra.mxu0 0
  %734 = vmatpush.bf16.msra.mxu0 0
  %735 = vmatpush.bf16.msra.mxu0 0
  %736 = vmatpush.bf16.msra.mxu0 %v721
  %737 = vmatpush.bf16.msra.mxu0 %v719
  %738 = vmatmul.bf16.gmra.mxu0 %v725
  %v739 = vpop.f32.mrf.mxu0
  %v740 = vadd.f32 0.0, %v739
  %v741 = vpop.f32.mrf.mxu0
  %v742 = vadd.f32 0.0, %v741
  %743 = vmatmul.bf16.gmra.mxu0 %v728
  %v744 = vpop.f32.mrf.mxu0
  %v745 = vadd.f32 0.0, %v744
  %v746 = vpop.f32.mrf.mxu0
  %v747 = vadd.f32 0.0, %v746
  %748 = vdwg.mxu0
  %v749 = vadd.f32 %v700, %v740
  %v750 = vadd.f32 %v701, %v742
  %v751 = vadd.f32 %v702, %v745
  %v752 = vadd.f32 %v703, %v747
  %v753 = vld [vmem:[%s250] sm:$0xf]
  %v754 = vld [vmem:[%s250 + $0x4] sm:$0xf]
  %v755 = vld [vmem:[%s250 + $0x8] sm:$0xf]
  %v756 = vld [vmem:[%s250 + $0xc] sm:$0xf]
  %v761 = vunpack.c.l.b16 %v753
  %v762 = vunpack.c.l.b16 %v754
  %v763 = vunpack.c.l.b16 %v755
  %v764 = vunpack.c.l.b16 %v756
  %v765 = vpack.c.b16 %v762, %v761
  %v766 = vpack.c.b16 %v764, %v763
  %767 = vrot.lane.b32.xlu0 %v622, 125
  %v768 = vpop.permute.xlu0 %767
  %769 = vrot.lane.b32.xlu0 %v623, 125
  %v770 = vpop.permute.xlu0 %769
  %v774 = vsel %vm120, %v765, 0
  %v777 = vsel %vm120, %v766, 0
  %779 = vmatpush.bf16.msra.mxu0 0
  %780 = vmatpush.bf16.msra.mxu0 0
  %781 = vmatpush.bf16.msra.mxu0 0
  %782 = vmatpush.bf16.msra.mxu0 0
  %783 = vmatpush.bf16.msra.mxu0 0
  %784 = vmatpush.bf16.msra.mxu0 0
  %785 = vmatpush.bf16.msra.mxu0 %v770
  %786 = vmatpush.bf16.msra.mxu0 %v768
  %787 = vmatmul.bf16.gmra.mxu0 %v774
  %v788 = vpop.f32.mrf.mxu0
  %v789 = vadd.f32 0.0, %v788
  %v790 = vpop.f32.mrf.mxu0
  %v791 = vadd.f32 0.0, %v790
  %792 = vmatmul.bf16.gmra.mxu0 %v777
  %v793 = vpop.f32.mrf.mxu0
  %v794 = vadd.f32 0.0, %v793
  %v795 = vpop.f32.mrf.mxu0
  %v796 = vadd.f32 0.0, %v795
  %797 = vdwg.mxu0
  %v798 = vadd.f32 %v749, %v789
  %v799 = vadd.f32 %v750, %v791
  %v800 = vadd.f32 %v751, %v794
  %v801 = vadd.f32 %v752, %v796
  %v802 = vld [vmem:[%s300] sm:$0xf]
  %v803 = vld [vmem:[%s300 + $0x4] sm:$0xf]
  %v804 = vld [vmem:[%s300 + $0x8] sm:$0xf]
  %v805 = vld [vmem:[%s300 + $0xc] sm:$0xf]
  %v810 = vunpack.c.l.b16 %v802
  %v811 = vunpack.c.l.b16 %v803
  %v812 = vunpack.c.l.b16 %v804
  %v813 = vunpack.c.l.b16 %v805
  %v814 = vpack.c.b16 %v811, %v810
  %v815 = vpack.c.b16 %v813, %v812
  %816 = vrot.lane.b32.xlu0 %v622, 124
  %v817 = vpop.permute.xlu0 %816
  %818 = vrot.lane.b32.xlu0 %v623, 124
  %v819 = vpop.permute.xlu0 %818
  %v823 = vsel %vm120, %v814, 0
  %v826 = vsel %vm120, %v815, 0
  %828 = vmatpush.bf16.msra.mxu0 0
  %829 = vmatpush.bf16.msra.mxu0 0
  %830 = vmatpush.bf16.msra.mxu0 0
  %831 = vmatpush.bf16.msra.mxu0 0
  %832 = vmatpush.bf16.msra.mxu0 0
  %833 = vmatpush.bf16.msra.mxu0 0
  %834 = vmatpush.bf16.msra.mxu0 %v819
  %835 = vmatpush.bf16.msra.mxu0 %v817
  %836 = vmatmul.bf16.gmra.mxu0 %v823
  %v837 = vpop.f32.mrf.mxu0
  %v838 = vadd.f32 0.0, %v837
  %v839 = vpop.f32.mrf.mxu0
  %v840 = vadd.f32 0.0, %v839
  %841 = vmatmul.bf16.gmra.mxu0 %v826
  %v842 = vpop.f32.mrf.mxu0
  %v843 = vadd.f32 0.0, %v842
  %v844 = vpop.f32.mrf.mxu0
  %v845 = vadd.f32 0.0, %v844
  %846 = vdwg.mxu0
  %v847 = vadd.f32 %v798, %v838
  %v848 = vadd.f32 %v799, %v840
  %v849 = vadd.f32 %v800, %v843
  %v850 = vadd.f32 %v801, %v845
  %v851 = vld [vmem:[%s350] sm:$0xf]
  %v852 = vld [vmem:[%s350 + $0x4] sm:$0xf]
  %v853 = vld [vmem:[%s350 + $0x8] sm:$0xf]
  %v854 = vld [vmem:[%s350 + $0xc] sm:$0xf]
  %v859 = vunpack.c.l.b16 %v851
  %v860 = vunpack.c.l.b16 %v852
  %v861 = vunpack.c.l.b16 %v853
  %v862 = vunpack.c.l.b16 %v854
  %v863 = vpack.c.b16 %v860, %v859
  %v864 = vpack.c.b16 %v862, %v861
  %865 = vrot.lane.b32.xlu0 %v622, 123
  %v866 = vpop.permute.xlu0 %865
  %867 = vrot.lane.b32.xlu0 %v623, 123
  %v868 = vpop.permute.xlu0 %867
  %v872 = vsel %vm120, %v863, 0
  %v875 = vsel %vm120, %v864, 0
  %877 = vmatpush.bf16.msra.mxu0 0
  %878 = vmatpush.bf16.msra.mxu0 0
  %879 = vmatpush.bf16.msra.mxu0 0
  %880 = vmatpush.bf16.msra.mxu0 0
  %881 = vmatpush.bf16.msra.mxu0 0
  %882 = vmatpush.bf16.msra.mxu0 0
  %883 = vmatpush.bf16.msra.mxu0 %v868
  %884 = vmatpush.bf16.msra.mxu0 %v866
  %885 = vmatmul.bf16.gmra.mxu0 %v872
  %v886 = vpop.f32.mrf.mxu0
  %v887 = vadd.f32 0.0, %v886
  %v888 = vpop.f32.mrf.mxu0
  %v889 = vadd.f32 0.0, %v888
  %890 = vmatmul.bf16.gmra.mxu0 %v875
  %v891 = vpop.f32.mrf.mxu0
  %v892 = vadd.f32 0.0, %v891
  %v893 = vpop.f32.mrf.mxu0
  %v894 = vadd.f32 0.0, %v893
  %895 = vdwg.mxu0
  %v896 = vadd.f32 %v847, %v887
  %v897 = vadd.f32 %v848, %v889
  %v898 = vadd.f32 %v849, %v892
  %v899 = vadd.f32 %v850, %v894
  %v900 = vld [vmem:[%s400] sm:$0xf]
  %v901 = vld [vmem:[%s400 + $0x4] sm:$0xf]
  %v902 = vld [vmem:[%s400 + $0x8] sm:$0xf]
  %v903 = vld [vmem:[%s400 + $0xc] sm:$0xf]
  %v908 = vunpack.c.l.b16 %v900
  %v909 = vunpack.c.l.b16 %v901
  %v910 = vunpack.c.l.b16 %v902
  %v911 = vunpack.c.l.b16 %v903
  %v912 = vpack.c.b16 %v909, %v908
  %v913 = vpack.c.b16 %v911, %v910
  %914 = vrot.lane.b32.xlu0 %v622, 122
  %v915 = vpop.permute.xlu0 %914
  %916 = vrot.lane.b32.xlu0 %v623, 122
  %v917 = vpop.permute.xlu0 %916
  %v921 = vsel %vm120, %v912, 0
  %v924 = vsel %vm120, %v913, 0
  %926 = vmatpush.bf16.msra.mxu0 0
  %927 = vmatpush.bf16.msra.mxu0 0
  %928 = vmatpush.bf16.msra.mxu0 0
  %929 = vmatpush.bf16.msra.mxu0 0
  %930 = vmatpush.bf16.msra.mxu0 0
  %931 = vmatpush.bf16.msra.mxu0 0
  %932 = vmatpush.bf16.msra.mxu0 %v917
  %933 = vmatpush.bf16.msra.mxu0 %v915
  %934 = vmatmul.bf16.gmra.mxu0 %v921
  %v935 = vpop.f32.mrf.mxu0
  %v936 = vadd.f32 0.0, %v935
  %v937 = vpop.f32.mrf.mxu0
  %v938 = vadd.f32 0.0, %v937
  %939 = vmatmul.bf16.gmra.mxu0 %v924
  %v940 = vpop.f32.mrf.mxu0
  %v941 = vadd.f32 0.0, %v940
  %v942 = vpop.f32.mrf.mxu0
  %v943 = vadd.f32 0.0, %v942
  %944 = vdwg.mxu0
  %v945 = vadd.f32 %v896, %v936
  %v946 = vadd.f32 %v897, %v938
  %v947 = vadd.f32 %v898, %v941
  %v948 = vadd.f32 %v899, %v943
  %v949 = vld [vmem:[%s450] sm:$0xf]
  %v950 = vld [vmem:[%s450 + $0x4] sm:$0xf]
  %v951 = vld [vmem:[%s450 + $0x8] sm:$0xf]
  %v952 = vld [vmem:[%s450 + $0xc] sm:$0xf]
  %v957 = vunpack.c.l.b16 %v949
  %v958 = vunpack.c.l.b16 %v950
  %v959 = vunpack.c.l.b16 %v951
  %v960 = vunpack.c.l.b16 %v952
  %v961 = vpack.c.b16 %v958, %v957
  %v962 = vpack.c.b16 %v960, %v959
  %963 = vrot.lane.b32.xlu0 %v622, 121
  %v964 = vpop.permute.xlu0 %963
  %965 = vrot.lane.b32.xlu0 %v623, 121
  %v966 = vpop.permute.xlu0 %965
  %v970 = vsel %vm120, %v961, 0
  %v973 = vsel %vm120, %v962, 0
  %975 = vmatpush.bf16.msra.mxu0 0
  %976 = vmatpush.bf16.msra.mxu0 0
  %977 = vmatpush.bf16.msra.mxu0 0
  %978 = vmatpush.bf16.msra.mxu0 0
  %979 = vmatpush.bf16.msra.mxu0 0
  %980 = vmatpush.bf16.msra.mxu0 0
  %981 = vmatpush.bf16.msra.mxu0 %v966
  %982 = vmatpush.bf16.msra.mxu0 %v964
  %983 = vmatmul.bf16.gmra.mxu0 %v970
  %v984 = vpop.f32.mrf.mxu0
  %v985 = vadd.f32 0.0, %v984
  %v986 = vpop.f32.mrf.mxu0
  %v987 = vadd.f32 0.0, %v986
  %988 = vmatmul.bf16.gmra.mxu0 %v973
  %v989 = vpop.f32.mrf.mxu0
  %v990 = vadd.f32 0.0, %v989
  %v991 = vpop.f32.mrf.mxu0
  %v992 = vadd.f32 0.0, %v991
  %993 = vdwg.mxu0
  %v994 = vadd.f32 %v945, %v985
  %v995 = vadd.f32 %v946, %v987
  %v996 = vadd.f32 %v947, %v990
  %v997 = vadd.f32 %v948, %v992
  %v998 = vld [vmem:[%s500] sm:$0xf]
  %v999 = vld [vmem:[%s500 + $0x4] sm:$0xf]
  %v1000 = vld [vmem:[%s500 + $0x8] sm:$0xf]
  %v1001 = vld [vmem:[%s500 + $0xc] sm:$0xf]
  %v1006 = vunpack.c.l.b16 %v998
  %v1007 = vunpack.c.l.b16 %v999
  %v1008 = vunpack.c.l.b16 %v1000
  %v1009 = vunpack.c.l.b16 %v1001
  %v1010 = vpack.c.b16 %v1007, %v1006
  %v1011 = vpack.c.b16 %v1009, %v1008
  %1012 = vrot.lane.b32.xlu0 %v622, 120
  %v1013 = vpop.permute.xlu0 %1012
  %1014 = vrot.lane.b32.xlu0 %v623, 120
  %v1015 = vpop.permute.xlu0 %1014
  %v1019 = vsel %vm120, %v1010, 0
  %v1022 = vsel %vm120, %v1011, 0
  %1024 = vmatpush.bf16.msra.mxu0 0
  %1025 = vmatpush.bf16.msra.mxu0 0
  %1026 = vmatpush.bf16.msra.mxu0 0
  %1027 = vmatpush.bf16.msra.mxu0 0
  %1028 = vmatpush.bf16.msra.mxu0 0
  %1029 = vmatpush.bf16.msra.mxu0 0
  %1030 = vmatpush.bf16.msra.mxu0 %v1015
  %1031 = vmatpush.bf16.msra.mxu0 %v1013
  %1032 = vmatmul.bf16.gmra.mxu0 %v1019
  %v1033 = vpop.f32.mrf.mxu0
  %v1034 = vadd.f32 0.0, %v1033
  %v1035 = vpop.f32.mrf.mxu0
  %v1036 = vadd.f32 0.0, %v1035
  %1037 = vmatmul.bf16.gmra.mxu0 %v1022
  %v1038 = vpop.f32.mrf.mxu0
  %v1039 = vadd.f32 0.0, %v1038
  %v1040 = vpop.f32.mrf.mxu0
  %v1041 = vadd.f32 0.0, %v1040
  %1042 = vdwg.mxu0
  %v1043 = vadd.f32 %v994, %v1034
  %v1044 = vadd.f32 %v995, %v1036
  %v1045 = vadd.f32 %v996, %v1039
  %v1046 = vadd.f32 %v997, %v1041
  %v1047 = vmax.f32 %v1043, 0.0
  %v1048 = vmax.f32 %v1044, 0.0
  %v1049 = vmax.f32 %v1045, 0.0
  %v1050 = vmax.f32 %v1046, 0.0
  %v1051 = vmul.f32 %v1047, %v52
  %v1052 = vmul.f32 %v1048, %v53
  %v1053 = vmul.f32 %v1049, %v54
  %v1054 = vmul.f32 %v1050, %v55
  %s1055 = scalar_lea.vmem %s0, 64
  %v1056 = vld [vmem:[%s1055] sm:$0xff]
  %v1057 = vld [vmem:[%s1055 + $0x8] sm:$0xff]
  %v1058 = vld [vmem:[%s1055 + $0x10] sm:$0xff]
  %v1059 = vld [vmem:[%s1055 + $0x18] sm:$0xff]
  %v1060 = vadd.f32 %v1051, %v1056
  %v1061 = vadd.f32 %v1052, %v1057
  %v1062 = vadd.f32 %v1053, %v1058
  %v1063 = vadd.f32 %v1054, %v1059
  %s1064 = scalar_lea.vmem %s4, 64
  %1065 = vst.msk [vmem:[%s1064] sm:$0xff] %vm60, %v1060
  %1066 = vst.msk [vmem:[%s1064 + $0x8] sm:$0xff] %vm60, %v1061
  %1067 = vst.msk [vmem:[%s1064 + $0x10] sm:$0xff] %vm60, %v1062
  %1068 = vst.msk [vmem:[%s1064 + $0x18] sm:$0xff] %vm60, %v1063
  %v1069 = vpack.c.bf16 %v1060, %v1060
  %v1070 = vpack.c.bf16 %v1061, %v1061
  %v1071 = vpack.c.bf16 %v1062, %v1062
  %v1072 = vpack.c.bf16 %v1063, %v1063
  %1077 = vrot.lane.b32.xlu0 %v1069, 4
  %v1078 = vpop.permute.xlu0 %1077
  %1079 = vrot.lane.b32.xlu0 %v1070, 4
  %v1080 = vpop.permute.xlu0 %1079
  %1081 = vrot.lane.b32.xlu0 %v1071, 4
  %v1082 = vpop.permute.xlu0 %1081
  %1083 = vrot.lane.b32.xlu0 %v1072, 4
  %v1084 = vpop.permute.xlu0 %1083
  %1089 = vst.msk [vmem:[#allocation2] sm:$0xf] %vm85, %v1078
  %1090 = vst.msk [vmem:[#allocation2 + $0x4] sm:$0xf] %vm85, %v1080
  %1091 = vst.msk [vmem:[#allocation2 + $0x8] sm:$0xf] %vm85, %v1082
  %1092 = vst.msk [vmem:[#allocation2 + $0xc] sm:$0xf] %vm85, %v1084
  %v1093 = vld [vmem:[%s1] sm:$0xf]
  %v1094 = vld [vmem:[%s1 + $0x4] sm:$0xf]
  %v1095 = vld [vmem:[%s1 + $0x8] sm:$0xf]
  %v1096 = vld [vmem:[%s1 + $0xc] sm:$0xf]
  %v1097 = vld [vmem:[#allocation2] sm:$0xf]
  %v1098 = vld [vmem:[#allocation2 + $0x4] sm:$0xf]
  %v1099 = vld [vmem:[#allocation2 + $0x8] sm:$0xf]
  %v1100 = vld [vmem:[#allocation2 + $0xc] sm:$0xf]
  %v1105 = vunpack.c.l.b16 %v1093
  %v1106 = vunpack.c.l.b16 %v1094
  %v1107 = vunpack.c.l.b16 %v1095
  %v1108 = vunpack.c.l.b16 %v1096
  %v1109 = vpack.c.b16 %v1106, %v1105
  %v1110 = vpack.c.b16 %v1108, %v1107
  %v1115 = vunpack.c.l.b16 %v1097
  %v1116 = vunpack.c.l.b16 %v1098
  %v1117 = vunpack.c.l.b16 %v1099
  %v1118 = vunpack.c.l.b16 %v1100
  %v1119 = vpack.c.b16 %v1116, %v1115
  %v1120 = vpack.c.b16 %v1118, %v1117
  %v1124 = vsel %vm120, %v1109, 0
  %v1127 = vsel %vm120, %v1110, 0
  %1129 = vmatpush.bf16.msra.mxu0 0
  %1130 = vmatpush.bf16.msra.mxu0 0
  %1131 = vmatpush.bf16.msra.mxu0 0
  %1132 = vmatpush.bf16.msra.mxu0 0
  %1133 = vmatpush.bf16.msra.mxu0 0
  %1134 = vmatpush.bf16.msra.mxu0 0
  %1135 = vmatpush.bf16.msra.mxu0 %v1120
  %1136 = vmatpush.bf16.msra.mxu0 %v1119
  %1137 = vmatmul.bf16.gmra.mxu0 %v1124
  %v1138 = vpop.f32.mrf.mxu0
  %v1139 = vadd.f32 0.0, %v1138
  %v1140 = vpop.f32.mrf.mxu0
  %v1141 = vadd.f32 0.0, %v1140
  %1142 = vmatmul.bf16.gmra.mxu0 %v1127
  %v1143 = vpop.f32.mrf.mxu0
  %v1144 = vadd.f32 0.0, %v1143
  %v1145 = vpop.f32.mrf.mxu0
  %v1146 = vadd.f32 0.0, %v1145
  %1147 = vdwg.mxu0
  %v1148 = vadd.f32 %v35, %v1139
  %v1149 = vadd.f32 %v40, %v1141
  %v1150 = vadd.f32 %v45, %v1144
  %v1151 = vadd.f32 %v50, %v1146
  %v1152 = vld [vmem:[%s150] sm:$0xf]
  %v1153 = vld [vmem:[%s150 + $0x4] sm:$0xf]
  %v1154 = vld [vmem:[%s150 + $0x8] sm:$0xf]
  %v1155 = vld [vmem:[%s150 + $0xc] sm:$0xf]
  %v1160 = vunpack.c.l.b16 %v1152
  %v1161 = vunpack.c.l.b16 %v1153
  %v1162 = vunpack.c.l.b16 %v1154
  %v1163 = vunpack.c.l.b16 %v1155
  %v1164 = vpack.c.b16 %v1161, %v1160
  %v1165 = vpack.c.b16 %v1163, %v1162
  %1166 = vrot.lane.b32.xlu0 %v1119, 127
  %v1167 = vpop.permute.xlu0 %1166
  %1168 = vrot.lane.b32.xlu0 %v1120, 127
  %v1169 = vpop.permute.xlu0 %1168
  %v1173 = vsel %vm120, %v1164, 0
  %v1176 = vsel %vm120, %v1165, 0
  %1178 = vmatpush.bf16.msra.mxu0 0
  %1179 = vmatpush.bf16.msra.mxu0 0
  %1180 = vmatpush.bf16.msra.mxu0 0
  %1181 = vmatpush.bf16.msra.mxu0 0
  %1182 = vmatpush.bf16.msra.mxu0 0
  %1183 = vmatpush.bf16.msra.mxu0 0
  %1184 = vmatpush.bf16.msra.mxu0 %v1169
  %1185 = vmatpush.bf16.msra.mxu0 %v1167
  %1186 = vmatmul.bf16.gmra.mxu0 %v1173
  %v1187 = vpop.f32.mrf.mxu0
  %v1188 = vadd.f32 0.0, %v1187
  %v1189 = vpop.f32.mrf.mxu0
  %v1190 = vadd.f32 0.0, %v1189
  %1191 = vmatmul.bf16.gmra.mxu0 %v1176
  %v1192 = vpop.f32.mrf.mxu0
  %v1193 = vadd.f32 0.0, %v1192
  %v1194 = vpop.f32.mrf.mxu0
  %v1195 = vadd.f32 0.0, %v1194
  %1196 = vdwg.mxu0
  %v1197 = vadd.f32 %v1148, %v1188
  %v1198 = vadd.f32 %v1149, %v1190
  %v1199 = vadd.f32 %v1150, %v1193
  %v1200 = vadd.f32 %v1151, %v1195
  %v1201 = vld [vmem:[%s200] sm:$0xf]
  %v1202 = vld [vmem:[%s200 + $0x4] sm:$0xf]
  %v1203 = vld [vmem:[%s200 + $0x8] sm:$0xf]
  %v1204 = vld [vmem:[%s200 + $0xc] sm:$0xf]
  %v1209 = vunpack.c.l.b16 %v1201
  %v1210 = vunpack.c.l.b16 %v1202
  %v1211 = vunpack.c.l.b16 %v1203
  %v1212 = vunpack.c.l.b16 %v1204
  %v1213 = vpack.c.b16 %v1210, %v1209
  %v1214 = vpack.c.b16 %v1212, %v1211
  %1215 = vrot.lane.b32.xlu0 %v1119, 126
  %v1216 = vpop.permute.xlu0 %1215
  %1217 = vrot.lane.b32.xlu0 %v1120, 126
  %v1218 = vpop.permute.xlu0 %1217
  %v1222 = vsel %vm120, %v1213, 0
  %v1225 = vsel %vm120, %v1214, 0
  %1227 = vmatpush.bf16.msra.mxu0 0
  %1228 = vmatpush.bf16.msra.mxu0 0
  %1229 = vmatpush.bf16.msra.mxu0 0
  %1230 = vmatpush.bf16.msra.mxu0 0
  %1231 = vmatpush.bf16.msra.mxu0 0
  %1232 = vmatpush.bf16.msra.mxu0 0
  %1233 = vmatpush.bf16.msra.mxu0 %v1218
  %1234 = vmatpush.bf16.msra.mxu0 %v1216
  %1235 = vmatmul.bf16.gmra.mxu0 %v1222
  %v1236 = vpop.f32.mrf.mxu0
  %v1237 = vadd.f32 0.0, %v1236
  %v1238 = vpop.f32.mrf.mxu0
  %v1239 = vadd.f32 0.0, %v1238
  %1240 = vmatmul.bf16.gmra.mxu0 %v1225
  %v1241 = vpop.f32.mrf.mxu0
  %v1242 = vadd.f32 0.0, %v1241
  %v1243 = vpop.f32.mrf.mxu0
  %v1244 = vadd.f32 0.0, %v1243
  %1245 = vdwg.mxu0
  %v1246 = vadd.f32 %v1197, %v1237
  %v1247 = vadd.f32 %v1198, %v1239
  %v1248 = vadd.f32 %v1199, %v1242
  %v1249 = vadd.f32 %v1200, %v1244
  %v1250 = vld [vmem:[%s250] sm:$0xf]
  %v1251 = vld [vmem:[%s250 + $0x4] sm:$0xf]
  %v1252 = vld [vmem:[%s250 + $0x8] sm:$0xf]
  %v1253 = vld [vmem:[%s250 + $0xc] sm:$0xf]
  %v1258 = vunpack.c.l.b16 %v1250
  %v1259 = vunpack.c.l.b16 %v1251
  %v1260 = vunpack.c.l.b16 %v1252
  %v1261 = vunpack.c.l.b16 %v1253
  %v1262 = vpack.c.b16 %v1259, %v1258
  %v1263 = vpack.c.b16 %v1261, %v1260
  %1264 = vrot.lane.b32.xlu0 %v1119, 125
  %v1265 = vpop.permute.xlu0 %1264
  %1266 = vrot.lane.b32.xlu0 %v1120, 125
  %v1267 = vpop.permute.xlu0 %1266
  %v1271 = vsel %vm120, %v1262, 0
  %v1274 = vsel %vm120, %v1263, 0
  %1276 = vmatpush.bf16.msra.mxu0 0
  %1277 = vmatpush.bf16.msra.mxu0 0
  %1278 = vmatpush.bf16.msra.mxu0 0
  %1279 = vmatpush.bf16.msra.mxu0 0
  %1280 = vmatpush.bf16.msra.mxu0 0
  %1281 = vmatpush.bf16.msra.mxu0 0
  %1282 = vmatpush.bf16.msra.mxu0 %v1267
  %1283 = vmatpush.bf16.msra.mxu0 %v1265
  %1284 = vmatmul.bf16.gmra.mxu0 %v1271
  %v1285 = vpop.f32.mrf.mxu0
  %v1286 = vadd.f32 0.0, %v1285
  %v1287 = vpop.f32.mrf.mxu0
  %v1288 = vadd.f32 0.0, %v1287
  %1289 = vmatmul.bf16.gmra.mxu0 %v1274
  %v1290 = vpop.f32.mrf.mxu0
  %v1291 = vadd.f32 0.0, %v1290
  %v1292 = vpop.f32.mrf.mxu0
  %v1293 = vadd.f32 0.0, %v1292
  %1294 = vdwg.mxu0
  %v1295 = vadd.f32 %v1246, %v1286
  %v1296 = vadd.f32 %v1247, %v1288
  %v1297 = vadd.f32 %v1248, %v1291
  %v1298 = vadd.f32 %v1249, %v1293
  %v1299 = vld [vmem:[%s300] sm:$0xf]
  %v1300 = vld [vmem:[%s300 + $0x4] sm:$0xf]
  %v1301 = vld [vmem:[%s300 + $0x8] sm:$0xf]
  %v1302 = vld [vmem:[%s300 + $0xc] sm:$0xf]
  %v1307 = vunpack.c.l.b16 %v1299
  %v1308 = vunpack.c.l.b16 %v1300
  %v1309 = vunpack.c.l.b16 %v1301
  %v1310 = vunpack.c.l.b16 %v1302
  %v1311 = vpack.c.b16 %v1308, %v1307
  %v1312 = vpack.c.b16 %v1310, %v1309
  %1313 = vrot.lane.b32.xlu0 %v1119, 124
  %v1314 = vpop.permute.xlu0 %1313
  %1315 = vrot.lane.b32.xlu0 %v1120, 124
  %v1316 = vpop.permute.xlu0 %1315
  %v1320 = vsel %vm120, %v1311, 0
  %v1323 = vsel %vm120, %v1312, 0
  %1325 = vmatpush.bf16.msra.mxu0 0
  %1326 = vmatpush.bf16.msra.mxu0 0
  %1327 = vmatpush.bf16.msra.mxu0 0
  %1328 = vmatpush.bf16.msra.mxu0 0
  %1329 = vmatpush.bf16.msra.mxu0 0
  %1330 = vmatpush.bf16.msra.mxu0 0
  %1331 = vmatpush.bf16.msra.mxu0 %v1316
  %1332 = vmatpush.bf16.msra.mxu0 %v1314
  %1333 = vmatmul.bf16.gmra.mxu0 %v1320
  %v1334 = vpop.f32.mrf.mxu0
  %v1335 = vadd.f32 0.0, %v1334
  %v1336 = vpop.f32.mrf.mxu0
  %v1337 = vadd.f32 0.0, %v1336
  %1338 = vmatmul.bf16.gmra.mxu0 %v1323
  %v1339 = vpop.f32.mrf.mxu0
  %v1340 = vadd.f32 0.0, %v1339
  %v1341 = vpop.f32.mrf.mxu0
  %v1342 = vadd.f32 0.0, %v1341
  %1343 = vdwg.mxu0
  %v1344 = vadd.f32 %v1295, %v1335
  %v1345 = vadd.f32 %v1296, %v1337
  %v1346 = vadd.f32 %v1297, %v1340
  %v1347 = vadd.f32 %v1298, %v1342
  %v1348 = vld [vmem:[%s350] sm:$0xf]
  %v1349 = vld [vmem:[%s350 + $0x4] sm:$0xf]
  %v1350 = vld [vmem:[%s350 + $0x8] sm:$0xf]
  %v1351 = vld [vmem:[%s350 + $0xc] sm:$0xf]
  %v1356 = vunpack.c.l.b16 %v1348
  %v1357 = vunpack.c.l.b16 %v1349
  %v1358 = vunpack.c.l.b16 %v1350
  %v1359 = vunpack.c.l.b16 %v1351
  %v1360 = vpack.c.b16 %v1357, %v1356
  %v1361 = vpack.c.b16 %v1359, %v1358
  %1362 = vrot.lane.b32.xlu0 %v1119, 123
  %v1363 = vpop.permute.xlu0 %1362
  %1364 = vrot.lane.b32.xlu0 %v1120, 123
  %v1365 = vpop.permute.xlu0 %1364
  %v1369 = vsel %vm120, %v1360, 0
  %v1372 = vsel %vm120, %v1361, 0
  %1374 = vmatpush.bf16.msra.mxu0 0
  %1375 = vmatpush.bf16.msra.mxu0 0
  %1376 = vmatpush.bf16.msra.mxu0 0
  %1377 = vmatpush.bf16.msra.mxu0 0
  %1378 = vmatpush.bf16.msra.mxu0 0
  %1379 = vmatpush.bf16.msra.mxu0 0
  %1380 = vmatpush.bf16.msra.mxu0 %v1365
  %1381 = vmatpush.bf16.msra.mxu0 %v1363
  %1382 = vmatmul.bf16.gmra.mxu0 %v1369
  %v1383 = vpop.f32.mrf.mxu0
  %v1384 = vadd.f32 0.0, %v1383
  %v1385 = vpop.f32.mrf.mxu0
  %v1386 = vadd.f32 0.0, %v1385
  %1387 = vmatmul.bf16.gmra.mxu0 %v1372
  %v1388 = vpop.f32.mrf.mxu0
  %v1389 = vadd.f32 0.0, %v1388
  %v1390 = vpop.f32.mrf.mxu0
  %v1391 = vadd.f32 0.0, %v1390
  %1392 = vdwg.mxu0
  %v1393 = vadd.f32 %v1344, %v1384
  %v1394 = vadd.f32 %v1345, %v1386
  %v1395 = vadd.f32 %v1346, %v1389
  %v1396 = vadd.f32 %v1347, %v1391
  %v1397 = vld [vmem:[%s400] sm:$0xf]
  %v1398 = vld [vmem:[%s400 + $0x4] sm:$0xf]
  %v1399 = vld [vmem:[%s400 + $0x8] sm:$0xf]
  %v1400 = vld [vmem:[%s400 + $0xc] sm:$0xf]
  %v1405 = vunpack.c.l.b16 %v1397
  %v1406 = vunpack.c.l.b16 %v1398
  %v1407 = vunpack.c.l.b16 %v1399
  %v1408 = vunpack.c.l.b16 %v1400
  %v1409 = vpack.c.b16 %v1406, %v1405
  %v1410 = vpack.c.b16 %v1408, %v1407
  %1411 = vrot.lane.b32.xlu0 %v1119, 122
  %v1412 = vpop.permute.xlu0 %1411
  %1413 = vrot.lane.b32.xlu0 %v1120, 122
  %v1414 = vpop.permute.xlu0 %1413
  %v1418 = vsel %vm120, %v1409, 0
  %v1421 = vsel %vm120, %v1410, 0
  %1423 = vmatpush.bf16.msra.mxu0 0
  %1424 = vmatpush.bf16.msra.mxu0 0
  %1425 = vmatpush.bf16.msra.mxu0 0
  %1426 = vmatpush.bf16.msra.mxu0 0
  %1427 = vmatpush.bf16.msra.mxu0 0
  %1428 = vmatpush.bf16.msra.mxu0 0
  %1429 = vmatpush.bf16.msra.mxu0 %v1414
  %1430 = vmatpush.bf16.msra.mxu0 %v1412
  %1431 = vmatmul.bf16.gmra.mxu0 %v1418
  %v1432 = vpop.f32.mrf.mxu0
  %v1433 = vadd.f32 0.0, %v1432
  %v1434 = vpop.f32.mrf.mxu0
  %v1435 = vadd.f32 0.0, %v1434
  %1436 = vmatmul.bf16.gmra.mxu0 %v1421
  %v1437 = vpop.f32.mrf.mxu0
  %v1438 = vadd.f32 0.0, %v1437
  %v1439 = vpop.f32.mrf.mxu0
  %v1440 = vadd.f32 0.0, %v1439
  %1441 = vdwg.mxu0
  %v1442 = vadd.f32 %v1393, %v1433
  %v1443 = vadd.f32 %v1394, %v1435
  %v1444 = vadd.f32 %v1395, %v1438
  %v1445 = vadd.f32 %v1396, %v1440
  %v1446 = vld [vmem:[%s450] sm:$0xf]
  %v1447 = vld [vmem:[%s450 + $0x4] sm:$0xf]
  %v1448 = vld [vmem:[%s450 + $0x8] sm:$0xf]
  %v1449 = vld [vmem:[%s450 + $0xc] sm:$0xf]
  %v1454 = vunpack.c.l.b16 %v1446
  %v1455 = vunpack.c.l.b16 %v1447
  %v1456 = vunpack.c.l.b16 %v1448
  %v1457 = vunpack.c.l.b16 %v1449
  %v1458 = vpack.c.b16 %v1455, %v1454
  %v1459 = vpack.c.b16 %v1457, %v1456
  %1460 = vrot.lane.b32.xlu0 %v1119, 121
  %v1461 = vpop.permute.xlu0 %1460
  %1462 = vrot.lane.b32.xlu0 %v1120, 121
  %v1463 = vpop.permute.xlu0 %1462
  %v1467 = vsel %vm120, %v1458, 0
  %v1470 = vsel %vm120, %v1459, 0
  %1472 = vmatpush.bf16.msra.mxu0 0
  %1473 = vmatpush.bf16.msra.mxu0 0
  %1474 = vmatpush.bf16.msra.mxu0 0
  %1475 = vmatpush.bf16.msra.mxu0 0
  %1476 = vmatpush.bf16.msra.mxu0 0
  %1477 = vmatpush.bf16.msra.mxu0 0
  %1478 = vmatpush.bf16.msra.mxu0 %v1463
  %1479 = vmatpush.bf16.msra.mxu0 %v1461
  %1480 = vmatmul.bf16.gmra.mxu0 %v1467
  %v1481 = vpop.f32.mrf.mxu0
  %v1482 = vadd.f32 0.0, %v1481
  %v1483 = vpop.f32.mrf.mxu0
  %v1484 = vadd.f32 0.0, %v1483
  %1485 = vmatmul.bf16.gmra.mxu0 %v1470
  %v1486 = vpop.f32.mrf.mxu0
  %v1487 = vadd.f32 0.0, %v1486
  %v1488 = vpop.f32.mrf.mxu0
  %v1489 = vadd.f32 0.0, %v1488
  %1490 = vdwg.mxu0
  %v1491 = vadd.f32 %v1442, %v1482
  %v1492 = vadd.f32 %v1443, %v1484
  %v1493 = vadd.f32 %v1444, %v1487
  %v1494 = vadd.f32 %v1445, %v1489
  %v1495 = vld [vmem:[%s500] sm:$0xf]
  %v1496 = vld [vmem:[%s500 + $0x4] sm:$0xf]
  %v1497 = vld [vmem:[%s500 + $0x8] sm:$0xf]
  %v1498 = vld [vmem:[%s500 + $0xc] sm:$0xf]
  %v1503 = vunpack.c.l.b16 %v1495
  %v1504 = vunpack.c.l.b16 %v1496
  %v1505 = vunpack.c.l.b16 %v1497
  %v1506 = vunpack.c.l.b16 %v1498
  %v1507 = vpack.c.b16 %v1504, %v1503
  %v1508 = vpack.c.b16 %v1506, %v1505
  %1509 = vrot.lane.b32.xlu0 %v1119, 120
  %v1510 = vpop.permute.xlu0 %1509
  %1511 = vrot.lane.b32.xlu0 %v1120, 120
  %v1512 = vpop.permute.xlu0 %1511
  %v1516 = vsel %vm120, %v1507, 0
  %v1519 = vsel %vm120, %v1508, 0
  %1521 = vmatpush.bf16.msra.mxu0 0
  %1522 = vmatpush.bf16.msra.mxu0 0
  %1523 = vmatpush.bf16.msra.mxu0 0
  %1524 = vmatpush.bf16.msra.mxu0 0
  %1525 = vmatpush.bf16.msra.mxu0 0
  %1526 = vmatpush.bf16.msra.mxu0 0
  %1527 = vmatpush.bf16.msra.mxu0 %v1512
  %1528 = vmatpush.bf16.msra.mxu0 %v1510
  %1529 = vmatmul.bf16.gmra.mxu0 %v1516
  %v1530 = vpop.f32.mrf.mxu0
  %v1531 = vadd.f32 0.0, %v1530
  %v1532 = vpop.f32.mrf.mxu0
  %v1533 = vadd.f32 0.0, %v1532
  %1534 = vmatmul.bf16.gmra.mxu0 %v1519
  %v1535 = vpop.f32.mrf.mxu0
  %v1536 = vadd.f32 0.0, %v1535
  %v1537 = vpop.f32.mrf.mxu0
  %v1538 = vadd.f32 0.0, %v1537
  %1539 = vdwg.mxu0
  %v1540 = vadd.f32 %v1491, %v1531
  %v1541 = vadd.f32 %v1492, %v1533
  %v1542 = vadd.f32 %v1493, %v1536
  %v1543 = vadd.f32 %v1494, %v1538
  %v1544 = vmax.f32 %v1540, 0.0
  %v1545 = vmax.f32 %v1541, 0.0
  %v1546 = vmax.f32 %v1542, 0.0
  %v1547 = vmax.f32 %v1543, 0.0
  %v1548 = vmul.f32 %v1544, %v52
  %v1549 = vmul.f32 %v1545, %v53
  %v1550 = vmul.f32 %v1546, %v54
  %v1551 = vmul.f32 %v1547, %v55
  %s1552 = scalar_lea.vmem %s0, 96
  %v1553 = vld [vmem:[%s1552] sm:$0xff]
  %v1554 = vld [vmem:[%s1552 + $0x8] sm:$0xff]
  %v1555 = vld [vmem:[%s1552 + $0x10] sm:$0xff]
  %v1556 = vld [vmem:[%s1552 + $0x18] sm:$0xff]
  %v1557 = vadd.f32 %v1548, %v1553
  %v1558 = vadd.f32 %v1549, %v1554
  %v1559 = vadd.f32 %v1550, %v1555
  %v1560 = vadd.f32 %v1551, %v1556
  %s1561 = scalar_lea.vmem %s4, 96
  %1562 = vst.msk [vmem:[%s1561] sm:$0xff] %vm60, %v1557
  %1563 = vst.msk [vmem:[%s1561 + $0x8] sm:$0xff] %vm60, %v1558
  %1564 = vst.msk [vmem:[%s1561 + $0x10] sm:$0xff] %vm60, %v1559
  %1565 = vst.msk [vmem:[%s1561 + $0x18] sm:$0xff] %vm60, %v1560
  %v1566 = vpack.c.bf16 %v1557, %v1557
  %v1567 = vpack.c.bf16 %v1558, %v1558
  %v1568 = vpack.c.bf16 %v1559, %v1559
  %v1569 = vpack.c.bf16 %v1560, %v1560
  %1574 = vrot.lane.b32.xlu0 %v1566, 4
  %v1575 = vpop.permute.xlu0 %1574
  %1576 = vrot.lane.b32.xlu0 %v1567, 4
  %v1577 = vpop.permute.xlu0 %1576
  %1578 = vrot.lane.b32.xlu0 %v1568, 4
  %v1579 = vpop.permute.xlu0 %1578
  %1580 = vrot.lane.b32.xlu0 %v1569, 4
  %v1581 = vpop.permute.xlu0 %1580
  %1586 = vst.msk [vmem:[#allocation2] sm:$0xf] %vm85, %v1575
  %1587 = vst.msk [vmem:[#allocation2 + $0x4] sm:$0xf] %vm85, %v1577
  %1588 = vst.msk [vmem:[#allocation2 + $0x8] sm:$0xf] %vm85, %v1579
  %1589 = vst.msk [vmem:[#allocation2 + $0xc] sm:$0xf] %vm85, %v1581
  %v1590 = vld [vmem:[%s1] sm:$0xf]
  %v1591 = vld [vmem:[%s1 + $0x4] sm:$0xf]
  %v1592 = vld [vmem:[%s1 + $0x8] sm:$0xf]
  %v1593 = vld [vmem:[%s1 + $0xc] sm:$0xf]
  %v1594 = vld [vmem:[#allocation2] sm:$0xf]
  %v1595 = vld [vmem:[#allocation2 + $0x4] sm:$0xf]
  %v1596 = vld [vmem:[#allocation2 + $0x8] sm:$0xf]
  %v1597 = vld [vmem:[#allocation2 + $0xc] sm:$0xf]
  %v1602 = vunpack.c.l.b16 %v1590
  %v1603 = vunpack.c.l.b16 %v1591
  %v1604 = vunpack.c.l.b16 %v1592
  %v1605 = vunpack.c.l.b16 %v1593
  %v1606 = vpack.c.b16 %v1603, %v1602
  %v1607 = vpack.c.b16 %v1605, %v1604
  %v1612 = vunpack.c.l.b16 %v1594
  %v1613 = vunpack.c.l.b16 %v1595
  %v1614 = vunpack.c.l.b16 %v1596
  %v1615 = vunpack.c.l.b16 %v1597
  %v1616 = vpack.c.b16 %v1613, %v1612
  %v1617 = vpack.c.b16 %v1615, %v1614
  %v1621 = vsel %vm120, %v1606, 0
  %v1624 = vsel %vm120, %v1607, 0
  %1626 = vmatpush.bf16.msra.mxu0 0
  %1627 = vmatpush.bf16.msra.mxu0 0
  %1628 = vmatpush.bf16.msra.mxu0 0
  %1629 = vmatpush.bf16.msra.mxu0 0
  %1630 = vmatpush.bf16.msra.mxu0 0
  %1631 = vmatpush.bf16.msra.mxu0 0
  %1632 = vmatpush.bf16.msra.mxu0 %v1617
  %1633 = vmatpush.bf16.msra.mxu0 %v1616
  %1634 = vmatmul.bf16.gmra.mxu0 %v1621
  %v1635 = vpop.f32.mrf.mxu0
  %v1636 = vadd.f32 0.0, %v1635
  %v1637 = vpop.f32.mrf.mxu0
  %v1638 = vadd.f32 0.0, %v1637
  %1639 = vmatmul.bf16.gmra.mxu0 %v1624
  %v1640 = vpop.f32.mrf.mxu0
  %v1641 = vadd.f32 0.0, %v1640
  %v1642 = vpop.f32.mrf.mxu0
  %v1643 = vadd.f32 0.0, %v1642
  %1644 = vdwg.mxu0
  %v1645 = vadd.f32 %v35, %v1636
  %v1646 = vadd.f32 %v40, %v1638
  %v1647 = vadd.f32 %v45, %v1641
  %v1648 = vadd.f32 %v50, %v1643
  %v1649 = vld [vmem:[%s150] sm:$0xf]
  %v1650 = vld [vmem:[%s150 + $0x4] sm:$0xf]
  %v1651 = vld [vmem:[%s150 + $0x8] sm:$0xf]
  %v1652 = vld [vmem:[%s150 + $0xc] sm:$0xf]
  %v1657 = vunpack.c.l.b16 %v1649
  %v1658 = vunpack.c.l.b16 %v1650
  %v1659 = vunpack.c.l.b16 %v1651
  %v1660 = vunpack.c.l.b16 %v1652
  %v1661 = vpack.c.b16 %v1658, %v1657
  %v1662 = vpack.c.b16 %v1660, %v1659
  %1663 = vrot.lane.b32.xlu0 %v1616, 127
  %v1664 = vpop.permute.xlu0 %1663
  %1665 = vrot.lane.b32.xlu0 %v1617, 127
  %v1666 = vpop.permute.xlu0 %1665
  %v1670 = vsel %vm120, %v1661, 0
  %v1673 = vsel %vm120, %v1662, 0
  %1675 = vmatpush.bf16.msra.mxu0 0
  %1676 = vmatpush.bf16.msra.mxu0 0
  %1677 = vmatpush.bf16.msra.mxu0 0
  %1678 = vmatpush.bf16.msra.mxu0 0
  %1679 = vmatpush.bf16.msra.mxu0 0
  %1680 = vmatpush.bf16.msra.mxu0 0
  %1681 = vmatpush.bf16.msra.mxu0 %v1666
  %1682 = vmatpush.bf16.msra.mxu0 %v1664
  %1683 = vmatmul.bf16.gmra.mxu0 %v1670
  %v1684 = vpop.f32.mrf.mxu0
  %v1685 = vadd.f32 0.0, %v1684
  %v1686 = vpop.f32.mrf.mxu0
  %v1687 = vadd.f32 0.0, %v1686
  %1688 = vmatmul.bf16.gmra.mxu0 %v1673
  %v1689 = vpop.f32.mrf.mxu0
  %v1690 = vadd.f32 0.0, %v1689
  %v1691 = vpop.f32.mrf.mxu0
  %v1692 = vadd.f32 0.0, %v1691
  %1693 = vdwg.mxu0
  %v1694 = vadd.f32 %v1645, %v1685
  %v1695 = vadd.f32 %v1646, %v1687
  %v1696 = vadd.f32 %v1647, %v1690
  %v1697 = vadd.f32 %v1648, %v1692
  %v1698 = vld [vmem:[%s200] sm:$0xf]
  %v1699 = vld [vmem:[%s200 + $0x4] sm:$0xf]
  %v1700 = vld [vmem:[%s200 + $0x8] sm:$0xf]
  %v1701 = vld [vmem:[%s200 + $0xc] sm:$0xf]
  %v1706 = vunpack.c.l.b16 %v1698
  %v1707 = vunpack.c.l.b16 %v1699
  %v1708 = vunpack.c.l.b16 %v1700
  %v1709 = vunpack.c.l.b16 %v1701
  %v1710 = vpack.c.b16 %v1707, %v1706
  %v1711 = vpack.c.b16 %v1709, %v1708
  %1712 = vrot.lane.b32.xlu0 %v1616, 126
  %v1713 = vpop.permute.xlu0 %1712
  %1714 = vrot.lane.b32.xlu0 %v1617, 126
  %v1715 = vpop.permute.xlu0 %1714
  %v1719 = vsel %vm120, %v1710, 0
  %v1722 = vsel %vm120, %v1711, 0
  %1724 = vmatpush.bf16.msra.mxu0 0
  %1725 = vmatpush.bf16.msra.mxu0 0
  %1726 = vmatpush.bf16.msra.mxu0 0
  %1727 = vmatpush.bf16.msra.mxu0 0
  %1728 = vmatpush.bf16.msra.mxu0 0
  %1729 = vmatpush.bf16.msra.mxu0 0
  %1730 = vmatpush.bf16.msra.mxu0 %v1715
  %1731 = vmatpush.bf16.msra.mxu0 %v1713
  %1732 = vmatmul.bf16.gmra.mxu0 %v1719
  %v1733 = vpop.f32.mrf.mxu0
  %v1734 = vadd.f32 0.0, %v1733
  %v1735 = vpop.f32.mrf.mxu0
  %v1736 = vadd.f32 0.0, %v1735
  %1737 = vmatmul.bf16.gmra.mxu0 %v1722
  %v1738 = vpop.f32.mrf.mxu0
  %v1739 = vadd.f32 0.0, %v1738
  %v1740 = vpop.f32.mrf.mxu0
  %v1741 = vadd.f32 0.0, %v1740
  %1742 = vdwg.mxu0
  %v1743 = vadd.f32 %v1694, %v1734
  %v1744 = vadd.f32 %v1695, %v1736
  %v1745 = vadd.f32 %v1696, %v1739
  %v1746 = vadd.f32 %v1697, %v1741
  %v1747 = vld [vmem:[%s250] sm:$0xf]
  %v1748 = vld [vmem:[%s250 + $0x4] sm:$0xf]
  %v1749 = vld [vmem:[%s250 + $0x8] sm:$0xf]
  %v1750 = vld [vmem:[%s250 + $0xc] sm:$0xf]
  %v1755 = vunpack.c.l.b16 %v1747
  %v1756 = vunpack.c.l.b16 %v1748
  %v1757 = vunpack.c.l.b16 %v1749
  %v1758 = vunpack.c.l.b16 %v1750
  %v1759 = vpack.c.b16 %v1756, %v1755
  %v1760 = vpack.c.b16 %v1758, %v1757
  %1761 = vrot.lane.b32.xlu0 %v1616, 125
  %v1762 = vpop.permute.xlu0 %1761
  %1763 = vrot.lane.b32.xlu0 %v1617, 125
  %v1764 = vpop.permute.xlu0 %1763
  %v1768 = vsel %vm120, %v1759, 0
  %v1771 = vsel %vm120, %v1760, 0
  %1773 = vmatpush.bf16.msra.mxu0 0
  %1774 = vmatpush.bf16.msra.mxu0 0
  %1775 = vmatpush.bf16.msra.mxu0 0
  %1776 = vmatpush.bf16.msra.mxu0 0
  %1777 = vmatpush.bf16.msra.mxu0 0
  %1778 = vmatpush.bf16.msra.mxu0 0
  %1779 = vmatpush.bf16.msra.mxu0 %v1764
  %1780 = vmatpush.bf16.msra.mxu0 %v1762
  %1781 = vmatmul.bf16.gmra.mxu0 %v1768
  %v1782 = vpop.f32.mrf.mxu0
  %v1783 = vadd.f32 0.0, %v1782
  %v1784 = vpop.f32.mrf.mxu0
  %v1785 = vadd.f32 0.0, %v1784
  %1786 = vmatmul.bf16.gmra.mxu0 %v1771
  %v1787 = vpop.f32.mrf.mxu0
  %v1788 = vadd.f32 0.0, %v1787
  %v1789 = vpop.f32.mrf.mxu0
  %v1790 = vadd.f32 0.0, %v1789
  %1791 = vdwg.mxu0
  %v1792 = vadd.f32 %v1743, %v1783
  %v1793 = vadd.f32 %v1744, %v1785
  %v1794 = vadd.f32 %v1745, %v1788
  %v1795 = vadd.f32 %v1746, %v1790
  %v1796 = vld [vmem:[%s300] sm:$0xf]
  %v1797 = vld [vmem:[%s300 + $0x4] sm:$0xf]
  %v1798 = vld [vmem:[%s300 + $0x8] sm:$0xf]
  %v1799 = vld [vmem:[%s300 + $0xc] sm:$0xf]
  %v1804 = vunpack.c.l.b16 %v1796
  %v1805 = vunpack.c.l.b16 %v1797
  %v1806 = vunpack.c.l.b16 %v1798
  %v1807 = vunpack.c.l.b16 %v1799
  %v1808 = vpack.c.b16 %v1805, %v1804
  %v1809 = vpack.c.b16 %v1807, %v1806
  %1810 = vrot.lane.b32.xlu0 %v1616, 124
  %v1811 = vpop.permute.xlu0 %1810
  %1812 = vrot.lane.b32.xlu0 %v1617, 124
  %v1813 = vpop.permute.xlu0 %1812
  %v1817 = vsel %vm120, %v1808, 0
  %v1820 = vsel %vm120, %v1809, 0
  %1822 = vmatpush.bf16.msra.mxu0 0
  %1823 = vmatpush.bf16.msra.mxu0 0
  %1824 = vmatpush.bf16.msra.mxu0 0
  %1825 = vmatpush.bf16.msra.mxu0 0
  %1826 = vmatpush.bf16.msra.mxu0 0
  %1827 = vmatpush.bf16.msra.mxu0 0
  %1828 = vmatpush.bf16.msra.mxu0 %v1813
  %1829 = vmatpush.bf16.msra.mxu0 %v1811
  %1830 = vmatmul.bf16.gmra.mxu0 %v1817
  %v1831 = vpop.f32.mrf.mxu0
  %v1832 = vadd.f32 0.0, %v1831
  %v1833 = vpop.f32.mrf.mxu0
  %v1834 = vadd.f32 0.0, %v1833
  %1835 = vmatmul.bf16.gmra.mxu0 %v1820
  %v1836 = vpop.f32.mrf.mxu0
  %v1837 = vadd.f32 0.0, %v1836
  %v1838 = vpop.f32.mrf.mxu0
  %v1839 = vadd.f32 0.0, %v1838
  %1840 = vdwg.mxu0
  %v1841 = vadd.f32 %v1792, %v1832
  %v1842 = vadd.f32 %v1793, %v1834
  %v1843 = vadd.f32 %v1794, %v1837
  %v1844 = vadd.f32 %v1795, %v1839
  %v1845 = vld [vmem:[%s350] sm:$0xf]
  %v1846 = vld [vmem:[%s350 + $0x4] sm:$0xf]
  %v1847 = vld [vmem:[%s350 + $0x8] sm:$0xf]
  %v1848 = vld [vmem:[%s350 + $0xc] sm:$0xf]
  %v1853 = vunpack.c.l.b16 %v1845
  %v1854 = vunpack.c.l.b16 %v1846
  %v1855 = vunpack.c.l.b16 %v1847
  %v1856 = vunpack.c.l.b16 %v1848
  %v1857 = vpack.c.b16 %v1854, %v1853
  %v1858 = vpack.c.b16 %v1856, %v1855
  %1859 = vrot.lane.b32.xlu0 %v1616, 123
  %v1860 = vpop.permute.xlu0 %1859
  %1861 = vrot.lane.b32.xlu0 %v1617, 123
  %v1862 = vpop.permute.xlu0 %1861
  %v1866 = vsel %vm120, %v1857, 0
  %v1869 = vsel %vm120, %v1858, 0
  %1871 = vmatpush.bf16.msra.mxu0 0
  %1872 = vmatpush.bf16.msra.mxu0 0
  %1873 = vmatpush.bf16.msra.mxu0 0
  %1874 = vmatpush.bf16.msra.mxu0 0
  %1875 = vmatpush.bf16.msra.mxu0 0
  %1876 = vmatpush.bf16.msra.mxu0 0
  %1877 = vmatpush.bf16.msra.mxu0 %v1862
  %1878 = vmatpush.bf16.msra.mxu0 %v1860
  %1879 = vmatmul.bf16.gmra.mxu0 %v1866
  %v1880 = vpop.f32.mrf.mxu0
  %v1881 = vadd.f32 0.0, %v1880
  %v1882 = vpop.f32.mrf.mxu0
  %v1883 = vadd.f32 0.0, %v1882
  %1884 = vmatmul.bf16.gmra.mxu0 %v1869
  %v1885 = vpop.f32.mrf.mxu0
  %v1886 = vadd.f32 0.0, %v1885
  %v1887 = vpop.f32.mrf.mxu0
  %v1888 = vadd.f32 0.0, %v1887
  %1889 = vdwg.mxu0
  %v1890 = vadd.f32 %v1841, %v1881
  %v1891 = vadd.f32 %v1842, %v1883
  %v1892 = vadd.f32 %v1843, %v1886
  %v1893 = vadd.f32 %v1844, %v1888
  %v1894 = vld [vmem:[%s400] sm:$0xf]
  %v1895 = vld [vmem:[%s400 + $0x4] sm:$0xf]
  %v1896 = vld [vmem:[%s400 + $0x8] sm:$0xf]
  %v1897 = vld [vmem:[%s400 + $0xc] sm:$0xf]
  %v1902 = vunpack.c.l.b16 %v1894
  %v1903 = vunpack.c.l.b16 %v1895
  %v1904 = vunpack.c.l.b16 %v1896
  %v1905 = vunpack.c.l.b16 %v1897
  %v1906 = vpack.c.b16 %v1903, %v1902
  %v1907 = vpack.c.b16 %v1905, %v1904
  %1908 = vrot.lane.b32.xlu0 %v1616, 122
  %v1909 = vpop.permute.xlu0 %1908
  %1910 = vrot.lane.b32.xlu0 %v1617, 122
  %v1911 = vpop.permute.xlu0 %1910
  %v1915 = vsel %vm120, %v1906, 0
  %v1918 = vsel %vm120, %v1907, 0
  %1920 = vmatpush.bf16.msra.mxu0 0
  %1921 = vmatpush.bf16.msra.mxu0 0
  %1922 = vmatpush.bf16.msra.mxu0 0
  %1923 = vmatpush.bf16.msra.mxu0 0
  %1924 = vmatpush.bf16.msra.mxu0 0
  %1925 = vmatpush.bf16.msra.mxu0 0
  %1926 = vmatpush.bf16.msra.mxu0 %v1911
  %1927 = vmatpush.bf16.msra.mxu0 %v1909
  %1928 = vmatmul.bf16.gmra.mxu0 %v1915
  %v1929 = vpop.f32.mrf.mxu0
  %v1930 = vadd.f32 0.0, %v1929
  %v1931 = vpop.f32.mrf.mxu0
  %v1932 = vadd.f32 0.0, %v1931
  %1933 = vmatmul.bf16.gmra.mxu0 %v1918
  %v1934 = vpop.f32.mrf.mxu0
  %v1935 = vadd.f32 0.0, %v1934
  %v1936 = vpop.f32.mrf.mxu0
  %v1937 = vadd.f32 0.0, %v1936
  %1938 = vdwg.mxu0
  %v1939 = vadd.f32 %v1890, %v1930
  %v1940 = vadd.f32 %v1891, %v1932
  %v1941 = vadd.f32 %v1892, %v1935
  %v1942 = vadd.f32 %v1893, %v1937
  %v1943 = vld [vmem:[%s450] sm:$0xf]
  %v1944 = vld [vmem:[%s450 + $0x4] sm:$0xf]
  %v1945 = vld [vmem:[%s450 + $0x8] sm:$0xf]
  %v1946 = vld [vmem:[%s450 + $0xc] sm:$0xf]
  %v1951 = vunpack.c.l.b16 %v1943
  %v1952 = vunpack.c.l.b16 %v1944
  %v1953 = vunpack.c.l.b16 %v1945
  %v1954 = vunpack.c.l.b16 %v1946
  %v1955 = vpack.c.b16 %v1952, %v1951
  %v1956 = vpack.c.b16 %v1954, %v1953
  %1957 = vrot.lane.b32.xlu0 %v1616, 121
  %v1958 = vpop.permute.xlu0 %1957
  %1959 = vrot.lane.b32.xlu0 %v1617, 121
  %v1960 = vpop.permute.xlu0 %1959
  %v1964 = vsel %vm120, %v1955, 0
  %v1967 = vsel %vm120, %v1956, 0
  %1969 = vmatpush.bf16.msra.mxu0 0
  %1970 = vmatpush.bf16.msra.mxu0 0
  %1971 = vmatpush.bf16.msra.mxu0 0
  %1972 = vmatpush.bf16.msra.mxu0 0
  %1973 = vmatpush.bf16.msra.mxu0 0
  %1974 = vmatpush.bf16.msra.mxu0 0
  %1975 = vmatpush.bf16.msra.mxu0 %v1960
  %1976 = vmatpush.bf16.msra.mxu0 %v1958
  %1977 = vmatmul.bf16.gmra.mxu0 %v1964
  %v1978 = vpop.f32.mrf.mxu0
  %v1979 = vadd.f32 0.0, %v1978
  %v1980 = vpop.f32.mrf.mxu0
  %v1981 = vadd.f32 0.0, %v1980
  %1982 = vmatmul.bf16.gmra.mxu0 %v1967
  %v1983 = vpop.f32.mrf.mxu0
  %v1984 = vadd.f32 0.0, %v1983
  %v1985 = vpop.f32.mrf.mxu0
  %v1986 = vadd.f32 0.0, %v1985
  %1987 = vdwg.mxu0
  %v1988 = vadd.f32 %v1939, %v1979
  %v1989 = vadd.f32 %v1940, %v1981
  %v1990 = vadd.f32 %v1941, %v1984
  %v1991 = vadd.f32 %v1942, %v1986
  %v1992 = vld [vmem:[%s500] sm:$0xf]
  %v1993 = vld [vmem:[%s500 + $0x4] sm:$0xf]
  %v1994 = vld [vmem:[%s500 + $0x8] sm:$0xf]
  %v1995 = vld [vmem:[%s500 + $0xc] sm:$0xf]
  %v2000 = vunpack.c.l.b16 %v1992
  %v2001 = vunpack.c.l.b16 %v1993
  %v2002 = vunpack.c.l.b16 %v1994
  %v2003 = vunpack.c.l.b16 %v1995
  %v2004 = vpack.c.b16 %v2001, %v2000
  %v2005 = vpack.c.b16 %v2003, %v2002
  %2006 = vrot.lane.b32.xlu0 %v1616, 120
  %v2007 = vpop.permute.xlu0 %2006
  %2008 = vrot.lane.b32.xlu0 %v1617, 120
  %v2009 = vpop.permute.xlu0 %2008
  %v2013 = vsel %vm120, %v2004, 0
  %v2016 = vsel %vm120, %v2005, 0
  %2018 = vmatpush.bf16.msra.mxu0 0
  %2019 = vmatpush.bf16.msra.mxu0 0
  %2020 = vmatpush.bf16.msra.mxu0 0
  %2021 = vmatpush.bf16.msra.mxu0 0
  %2022 = vmatpush.bf16.msra.mxu0 0
  %2023 = vmatpush.bf16.msra.mxu0 0
  %2024 = vmatpush.bf16.msra.mxu0 %v2009
  %2025 = vmatpush.bf16.msra.mxu0 %v2007
  %2026 = vmatmul.bf16.gmra.mxu0 %v2013
  %v2027 = vpop.f32.mrf.mxu0
  %v2028 = vadd.f32 0.0, %v2027
  %v2029 = vpop.f32.mrf.mxu0
  %v2030 = vadd.f32 0.0, %v2029
  %2031 = vmatmul.bf16.gmra.mxu0 %v2016
  %v2032 = vpop.f32.mrf.mxu0
  %v2033 = vadd.f32 0.0, %v2032
  %v2034 = vpop.f32.mrf.mxu0
  %v2035 = vadd.f32 0.0, %v2034
  %2036 = vdwg.mxu0
  %v2037 = vadd.f32 %v1988, %v2028
  %v2038 = vadd.f32 %v1989, %v2030
  %v2039 = vadd.f32 %v1990, %v2033
  %v2040 = vadd.f32 %v1991, %v2035
  %v2041 = vmax.f32 %v2037, 0.0
  %v2042 = vmax.f32 %v2038, 0.0
  %v2043 = vmax.f32 %v2039, 0.0
  %v2044 = vmax.f32 %v2040, 0.0
  %v2045 = vmul.f32 %v2041, %v52
  %v2046 = vmul.f32 %v2042, %v53
  %v2047 = vmul.f32 %v2043, %v54
  %v2048 = vmul.f32 %v2044, %v55
  %s2049 = scalar_lea.vmem %s0, 128
  %v2050 = vld [vmem:[%s2049] sm:$0xff]
  %v2051 = vld [vmem:[%s2049 + $0x8] sm:$0xff]
  %v2052 = vld [vmem:[%s2049 + $0x10] sm:$0xff]
  %v2053 = vld [vmem:[%s2049 + $0x18] sm:$0xff]
  %v2054 = vadd.f32 %v2045, %v2050
  %v2055 = vadd.f32 %v2046, %v2051
  %v2056 = vadd.f32 %v2047, %v2052
  %v2057 = vadd.f32 %v2048, %v2053
  %s2058 = scalar_lea.vmem %s4, 128
  %2059 = vst.msk [vmem:[%s2058] sm:$0xff] %vm60, %v2054
  %2060 = vst.msk [vmem:[%s2058 + $0x8] sm:$0xff] %vm60, %v2055
  %2061 = vst.msk [vmem:[%s2058 + $0x10] sm:$0xff] %vm60, %v2056
  %2062 = vst.msk [vmem:[%s2058 + $0x18] sm:$0xff] %vm60, %v2057
  %v2063 = vpack.c.bf16 %v2054, %v2054
  %v2064 = vpack.c.bf16 %v2055, %v2055
  %v2065 = vpack.c.bf16 %v2056, %v2056
  %v2066 = vpack.c.bf16 %v2057, %v2057
  %2071 = vrot.lane.b32.xlu0 %v2063, 4
  %v2072 = vpop.permute.xlu0 %2071
  %2073 = vrot.lane.b32.xlu0 %v2064, 4
  %v2074 = vpop.permute.xlu0 %2073
  %2075 = vrot.lane.b32.xlu0 %v2065, 4
  %v2076 = vpop.permute.xlu0 %2075
  %2077 = vrot.lane.b32.xlu0 %v2066, 4
  %v2078 = vpop.permute.xlu0 %2077
  %2083 = vst.msk [vmem:[#allocation2] sm:$0xf] %vm85, %v2072
  %2084 = vst.msk [vmem:[#allocation2 + $0x4] sm:$0xf] %vm85, %v2074
  %2085 = vst.msk [vmem:[#allocation2 + $0x8] sm:$0xf] %vm85, %v2076
  %2086 = vst.msk [vmem:[#allocation2 + $0xc] sm:$0xf] %vm85, %v2078
  %v2087 = vld [vmem:[%s1] sm:$0xf]
  %v2088 = vld [vmem:[%s1 + $0x4] sm:$0xf]
  %v2089 = vld [vmem:[%s1 + $0x8] sm:$0xf]
  %v2090 = vld [vmem:[%s1 + $0xc] sm:$0xf]
  %v2091 = vld [vmem:[#allocation2] sm:$0xf]
  %v2092 = vld [vmem:[#allocation2 + $0x4] sm:$0xf]
  %v2093 = vld [vmem:[#allocation2 + $0x8] sm:$0xf]
  %v2094 = vld [vmem:[#allocation2 + $0xc] sm:$0xf]
  %v2099 = vunpack.c.l.b16 %v2087
  %v2100 = vunpack.c.l.b16 %v2088
  %v2101 = vunpack.c.l.b16 %v2089
  %v2102 = vunpack.c.l.b16 %v2090
  %v2103 = vpack.c.b16 %v2100, %v2099
  %v2104 = vpack.c.b16 %v2102, %v2101
  %v2109 = vunpack.c.l.b16 %v2091
  %v2110 = vunpack.c.l.b16 %v2092
  %v2111 = vunpack.c.l.b16 %v2093
  %v2112 = vunpack.c.l.b16 %v2094
  %v2113 = vpack.c.b16 %v2110, %v2109
  %v2114 = vpack.c.b16 %v2112, %v2111
  %v2118 = vsel %vm120, %v2103, 0
  %v2121 = vsel %vm120, %v2104, 0
  %2123 = vmatpush.bf16.msra.mxu0 0
  %2124 = vmatpush.bf16.msra.mxu0 0
  %2125 = vmatpush.bf16.msra.mxu0 0
  %2126 = vmatpush.bf16.msra.mxu0 0
  %2127 = vmatpush.bf16.msra.mxu0 0
  %2128 = vmatpush.bf16.msra.mxu0 0
  %2129 = vmatpush.bf16.msra.mxu0 %v2114
  %2130 = vmatpush.bf16.msra.mxu0 %v2113
  %2131 = vmatmul.bf16.gmra.mxu0 %v2118
  %v2132 = vpop.f32.mrf.mxu0
  %v2133 = vadd.f32 0.0, %v2132
  %v2134 = vpop.f32.mrf.mxu0
  %v2135 = vadd.f32 0.0, %v2134
  %2136 = vmatmul.bf16.gmra.mxu0 %v2121
  %v2137 = vpop.f32.mrf.mxu0
  %v2138 = vadd.f32 0.0, %v2137
  %v2139 = vpop.f32.mrf.mxu0
  %v2140 = vadd.f32 0.0, %v2139
  %2141 = vdwg.mxu0
  %v2142 = vadd.f32 %v35, %v2133
  %v2143 = vadd.f32 %v40, %v2135
  %v2144 = vadd.f32 %v45, %v2138
  %v2145 = vadd.f32 %v50, %v2140
  %v2146 = vld [vmem:[%s150] sm:$0xf]
  %v2147 = vld [vmem:[%s150 + $0x4] sm:$0xf]
  %v2148 = vld [vmem:[%s150 + $0x8] sm:$0xf]
  %v2149 = vld [vmem:[%s150 + $0xc] sm:$0xf]
  %v2154 = vunpack.c.l.b16 %v2146
  %v2155 = vunpack.c.l.b16 %v2147
  %v2156 = vunpack.c.l.b16 %v2148
  %v2157 = vunpack.c.l.b16 %v2149
  %v2158 = vpack.c.b16 %v2155, %v2154
  %v2159 = vpack.c.b16 %v2157, %v2156
  %2160 = vrot.lane.b32.xlu0 %v2113, 127
  %v2161 = vpop.permute.xlu0 %2160
  %2162 = vrot.lane.b32.xlu0 %v2114, 127
  %v2163 = vpop.permute.xlu0 %2162
  %v2167 = vsel %vm120, %v2158, 0
  %v2170 = vsel %vm120, %v2159, 0
  %2172 = vmatpush.bf16.msra.mxu0 0
  %2173 = vmatpush.bf16.msra.mxu0 0
  %2174 = vmatpush.bf16.msra.mxu0 0
  %2175 = vmatpush.bf16.msra.mxu0 0
  %2176 = vmatpush.bf16.msra.mxu0 0
  %2177 = vmatpush.bf16.msra.mxu0 0
  %2178 = vmatpush.bf16.msra.mxu0 %v2163
  %2179 = vmatpush.bf16.msra.mxu0 %v2161
  %2180 = vmatmul.bf16.gmra.mxu0 %v2167
  %v2181 = vpop.f32.mrf.mxu0
  %v2182 = vadd.f32 0.0, %v2181
  %v2183 = vpop.f32.mrf.mxu0
  %v2184 = vadd.f32 0.0, %v2183
  %2185 = vmatmul.bf16.gmra.mxu0 %v2170
  %v2186 = vpop.f32.mrf.mxu0
  %v2187 = vadd.f32 0.0, %v2186
  %v2188 = vpop.f32.mrf.mxu0
  %v2189 = vadd.f32 0.0, %v2188
  %2190 = vdwg.mxu0
  %v2191 = vadd.f32 %v2142, %v2182
  %v2192 = vadd.f32 %v2143, %v2184
  %v2193 = vadd.f32 %v2144, %v2187
  %v2194 = vadd.f32 %v2145, %v2189
  %v2195 = vld [vmem:[%s200] sm:$0xf]
  %v2196 = vld [vmem:[%s200 + $0x4] sm:$0xf]
  %v2197 = vld [vmem:[%s200 + $0x8] sm:$0xf]
  %v2198 = vld [vmem:[%s200 + $0xc] sm:$0xf]
  %v2203 = vunpack.c.l.b16 %v2195
  %v2204 = vunpack.c.l.b16 %v2196
  %v2205 = vunpack.c.l.b16 %v2197
  %v2206 = vunpack.c.l.b16 %v2198
  %v2207 = vpack.c.b16 %v2204, %v2203
  %v2208 = vpack.c.b16 %v2206, %v2205
  %2209 = vrot.lane.b32.xlu0 %v2113, 126
  %v2210 = vpop.permute.xlu0 %2209
  %2211 = vrot.lane.b32.xlu0 %v2114, 126
  %v2212 = vpop.permute.xlu0 %2211
  %v2216 = vsel %vm120, %v2207, 0
  %v2219 = vsel %vm120, %v2208, 0
  %2221 = vmatpush.bf16.msra.mxu0 0
  %2222 = vmatpush.bf16.msra.mxu0 0
  %2223 = vmatpush.bf16.msra.mxu0 0
  %2224 = vmatpush.bf16.msra.mxu0 0
  %2225 = vmatpush.bf16.msra.mxu0 0
  %2226 = vmatpush.bf16.msra.mxu0 0
  %2227 = vmatpush.bf16.msra.mxu0 %v2212
  %2228 = vmatpush.bf16.msra.mxu0 %v2210
  %2229 = vmatmul.bf16.gmra.mxu0 %v2216
  %v2230 = vpop.f32.mrf.mxu0
  %v2231 = vadd.f32 0.0, %v2230
  %v2232 = vpop.f32.mrf.mxu0
  %v2233 = vadd.f32 0.0, %v2232
  %2234 = vmatmul.bf16.gmra.mxu0 %v2219
  %v2235 = vpop.f32.mrf.mxu0
  %v2236 = vadd.f32 0.0, %v2235
  %v2237 = vpop.f32.mrf.mxu0
  %v2238 = vadd.f32 0.0, %v2237
  %2239 = vdwg.mxu0
  %v2240 = vadd.f32 %v2191, %v2231
  %v2241 = vadd.f32 %v2192, %v2233
  %v2242 = vadd.f32 %v2193, %v2236
  %v2243 = vadd.f32 %v2194, %v2238
  %v2244 = vld [vmem:[%s250] sm:$0xf]
  %v2245 = vld [vmem:[%s250 + $0x4] sm:$0xf]
  %v2246 = vld [vmem:[%s250 + $0x8] sm:$0xf]
  %v2247 = vld [vmem:[%s250 + $0xc] sm:$0xf]
  %v2252 = vunpack.c.l.b16 %v2244
  %v2253 = vunpack.c.l.b16 %v2245
  %v2254 = vunpack.c.l.b16 %v2246
  %v2255 = vunpack.c.l.b16 %v2247
  %v2256 = vpack.c.b16 %v2253, %v2252
  %v2257 = vpack.c.b16 %v2255, %v2254
  %2258 = vrot.lane.b32.xlu0 %v2113, 125
  %v2259 = vpop.permute.xlu0 %2258
  %2260 = vrot.lane.b32.xlu0 %v2114, 125
  %v2261 = vpop.permute.xlu0 %2260
  %v2265 = vsel %vm120, %v2256, 0
  %v2268 = vsel %vm120, %v2257, 0
  %2270 = vmatpush.bf16.msra.mxu0 0
  %2271 = vmatpush.bf16.msra.mxu0 0
  %2272 = vmatpush.bf16.msra.mxu0 0
  %2273 = vmatpush.bf16.msra.mxu0 0
  %2274 = vmatpush.bf16.msra.mxu0 0
  %2275 = vmatpush.bf16.msra.mxu0 0
  %2276 = vmatpush.bf16.msra.mxu0 %v2261
  %2277 = vmatpush.bf16.msra.mxu0 %v2259
  %2278 = vmatmul.bf16.gmra.mxu0 %v2265
  %v2279 = vpop.f32.mrf.mxu0
  %v2280 = vadd.f32 0.0, %v2279
  %v2281 = vpop.f32.mrf.mxu0
  %v2282 = vadd.f32 0.0, %v2281
  %2283 = vmatmul.bf16.gmra.mxu0 %v2268
  %v2284 = vpop.f32.mrf.mxu0
  %v2285 = vadd.f32 0.0, %v2284
  %v2286 = vpop.f32.mrf.mxu0
  %v2287 = vadd.f32 0.0, %v2286
  %2288 = vdwg.mxu0
  %v2289 = vadd.f32 %v2240, %v2280
  %v2290 = vadd.f32 %v2241, %v2282
  %v2291 = vadd.f32 %v2242, %v2285
  %v2292 = vadd.f32 %v2243, %v2287
  %v2293 = vld [vmem:[%s300] sm:$0xf]
  %v2294 = vld [vmem:[%s300 + $0x4] sm:$0xf]
  %v2295 = vld [vmem:[%s300 + $0x8] sm:$0xf]
  %v2296 = vld [vmem:[%s300 + $0xc] sm:$0xf]
  %v2301 = vunpack.c.l.b16 %v2293
  %v2302 = vunpack.c.l.b16 %v2294
  %v2303 = vunpack.c.l.b16 %v2295
  %v2304 = vunpack.c.l.b16 %v2296
  %v2305 = vpack.c.b16 %v2302, %v2301
  %v2306 = vpack.c.b16 %v2304, %v2303
  %2307 = vrot.lane.b32.xlu0 %v2113, 124
  %v2308 = vpop.permute.xlu0 %2307
  %2309 = vrot.lane.b32.xlu0 %v2114, 124
  %v2310 = vpop.permute.xlu0 %2309
  %v2314 = vsel %vm120, %v2305, 0
  %v2317 = vsel %vm120, %v2306, 0
  %2319 = vmatpush.bf16.msra.mxu0 0
  %2320 = vmatpush.bf16.msra.mxu0 0
  %2321 = vmatpush.bf16.msra.mxu0 0
  %2322 = vmatpush.bf16.msra.mxu0 0
  %2323 = vmatpush.bf16.msra.mxu0 0
  %2324 = vmatpush.bf16.msra.mxu0 0
  %2325 = vmatpush.bf16.msra.mxu0 %v2310
  %2326 = vmatpush.bf16.msra.mxu0 %v2308
  %2327 = vmatmul.bf16.gmra.mxu0 %v2314
  %v2328 = vpop.f32.mrf.mxu0
  %v2329 = vadd.f32 0.0, %v2328
  %v2330 = vpop.f32.mrf.mxu0
  %v2331 = vadd.f32 0.0, %v2330
  %2332 = vmatmul.bf16.gmra.mxu0 %v2317
  %v2333 = vpop.f32.mrf.mxu0
  %v2334 = vadd.f32 0.0, %v2333
  %v2335 = vpop.f32.mrf.mxu0
  %v2336 = vadd.f32 0.0, %v2335
  %2337 = vdwg.mxu0
  %v2338 = vadd.f32 %v2289, %v2329
  %v2339 = vadd.f32 %v2290, %v2331
  %v2340 = vadd.f32 %v2291, %v2334
  %v2341 = vadd.f32 %v2292, %v2336
  %v2342 = vld [vmem:[%s350] sm:$0xf]
  %v2343 = vld [vmem:[%s350 + $0x4] sm:$0xf]
  %v2344 = vld [vmem:[%s350 + $0x8] sm:$0xf]
  %v2345 = vld [vmem:[%s350 + $0xc] sm:$0xf]
  %v2350 = vunpack.c.l.b16 %v2342
  %v2351 = vunpack.c.l.b16 %v2343
  %v2352 = vunpack.c.l.b16 %v2344
  %v2353 = vunpack.c.l.b16 %v2345
  %v2354 = vpack.c.b16 %v2351, %v2350
  %v2355 = vpack.c.b16 %v2353, %v2352
  %2356 = vrot.lane.b32.xlu0 %v2113, 123
  %v2357 = vpop.permute.xlu0 %2356
  %2358 = vrot.lane.b32.xlu0 %v2114, 123
  %v2359 = vpop.permute.xlu0 %2358
  %v2363 = vsel %vm120, %v2354, 0
  %v2366 = vsel %vm120, %v2355, 0
  %2368 = vmatpush.bf16.msra.mxu0 0
  %2369 = vmatpush.bf16.msra.mxu0 0
  %2370 = vmatpush.bf16.msra.mxu0 0
  %2371 = vmatpush.bf16.msra.mxu0 0
  %2372 = vmatpush.bf16.msra.mxu0 0
  %2373 = vmatpush.bf16.msra.mxu0 0
  %2374 = vmatpush.bf16.msra.mxu0 %v2359
  %2375 = vmatpush.bf16.msra.mxu0 %v2357
  %2376 = vmatmul.bf16.gmra.mxu0 %v2363
  %v2377 = vpop.f32.mrf.mxu0
  %v2378 = vadd.f32 0.0, %v2377
  %v2379 = vpop.f32.mrf.mxu0
  %v2380 = vadd.f32 0.0, %v2379
  %2381 = vmatmul.bf16.gmra.mxu0 %v2366
  %v2382 = vpop.f32.mrf.mxu0
  %v2383 = vadd.f32 0.0, %v2382
  %v2384 = vpop.f32.mrf.mxu0
  %v2385 = vadd.f32 0.0, %v2384
  %2386 = vdwg.mxu0
  %v2387 = vadd.f32 %v2338, %v2378
  %v2388 = vadd.f32 %v2339, %v2380
  %v2389 = vadd.f32 %v2340, %v2383
  %v2390 = vadd.f32 %v2341, %v2385
  %v2391 = vld [vmem:[%s400] sm:$0xf]
  %v2392 = vld [vmem:[%s400 + $0x4] sm:$0xf]
  %v2393 = vld [vmem:[%s400 + $0x8] sm:$0xf]
  %v2394 = vld [vmem:[%s400 + $0xc] sm:$0xf]
  %v2399 = vunpack.c.l.b16 %v2391
  %v2400 = vunpack.c.l.b16 %v2392
  %v2401 = vunpack.c.l.b16 %v2393
  %v2402 = vunpack.c.l.b16 %v2394
  %v2403 = vpack.c.b16 %v2400, %v2399
  %v2404 = vpack.c.b16 %v2402, %v2401
  %2405 = vrot.lane.b32.xlu0 %v2113, 122
  %v2406 = vpop.permute.xlu0 %2405
  %2407 = vrot.lane.b32.xlu0 %v2114, 122
  %v2408 = vpop.permute.xlu0 %2407
  %v2412 = vsel %vm120, %v2403, 0
  %v2415 = vsel %vm120, %v2404, 0
  %2417 = vmatpush.bf16.msra.mxu0 0
  %2418 = vmatpush.bf16.msra.mxu0 0
  %2419 = vmatpush.bf16.msra.mxu0 0
  %2420 = vmatpush.bf16.msra.mxu0 0
  %2421 = vmatpush.bf16.msra.mxu0 0
  %2422 = vmatpush.bf16.msra.mxu0 0
  %2423 = vmatpush.bf16.msra.mxu0 %v2408
  %2424 = vmatpush.bf16.msra.mxu0 %v2406
  %2425 = vmatmul.bf16.gmra.mxu0 %v2412
  %v2426 = vpop.f32.mrf.mxu0
  %v2427 = vadd.f32 0.0, %v2426
  %v2428 = vpop.f32.mrf.mxu0
  %v2429 = vadd.f32 0.0, %v2428
  %2430 = vmatmul.bf16.gmra.mxu0 %v2415
  %v2431 = vpop.f32.mrf.mxu0
  %v2432 = vadd.f32 0.0, %v2431
  %v2433 = vpop.f32.mrf.mxu0
  %v2434 = vadd.f32 0.0, %v2433
  %2435 = vdwg.mxu0
  %v2436 = vadd.f32 %v2387, %v2427
  %v2437 = vadd.f32 %v2388, %v2429
  %v2438 = vadd.f32 %v2389, %v2432
  %v2439 = vadd.f32 %v2390, %v2434
  %v2440 = vld [vmem:[%s450] sm:$0xf]
  %v2441 = vld [vmem:[%s450 + $0x4] sm:$0xf]
  %v2442 = vld [vmem:[%s450 + $0x8] sm:$0xf]
  %v2443 = vld [vmem:[%s450 + $0xc] sm:$0xf]
  %v2448 = vunpack.c.l.b16 %v2440
  %v2449 = vunpack.c.l.b16 %v2441
  %v2450 = vunpack.c.l.b16 %v2442
  %v2451 = vunpack.c.l.b16 %v2443
  %v2452 = vpack.c.b16 %v2449, %v2448
  %v2453 = vpack.c.b16 %v2451, %v2450
  %2454 = vrot.lane.b32.xlu0 %v2113, 121
  %v2455 = vpop.permute.xlu0 %2454
  %2456 = vrot.lane.b32.xlu0 %v2114, 121
  %v2457 = vpop.permute.xlu0 %2456
  %v2461 = vsel %vm120, %v2452, 0
  %v2464 = vsel %vm120, %v2453, 0
  %2466 = vmatpush.bf16.msra.mxu0 0
  %2467 = vmatpush.bf16.msra.mxu0 0
  %2468 = vmatpush.bf16.msra.mxu0 0
  %2469 = vmatpush.bf16.msra.mxu0 0
  %2470 = vmatpush.bf16.msra.mxu0 0
  %2471 = vmatpush.bf16.msra.mxu0 0
  %2472 = vmatpush.bf16.msra.mxu0 %v2457
  %2473 = vmatpush.bf16.msra.mxu0 %v2455
  %2474 = vmatmul.bf16.gmra.mxu0 %v2461
  %v2475 = vpop.f32.mrf.mxu0
  %v2476 = vadd.f32 0.0, %v2475
  %v2477 = vpop.f32.mrf.mxu0
  %v2478 = vadd.f32 0.0, %v2477
  %2479 = vmatmul.bf16.gmra.mxu0 %v2464
  %v2480 = vpop.f32.mrf.mxu0
  %v2481 = vadd.f32 0.0, %v2480
  %v2482 = vpop.f32.mrf.mxu0
  %v2483 = vadd.f32 0.0, %v2482
  %2484 = vdwg.mxu0
  %v2485 = vadd.f32 %v2436, %v2476
  %v2486 = vadd.f32 %v2437, %v2478
  %v2487 = vadd.f32 %v2438, %v2481
  %v2488 = vadd.f32 %v2439, %v2483
  %v2489 = vld [vmem:[%s500] sm:$0xf]
  %v2490 = vld [vmem:[%s500 + $0x4] sm:$0xf]
  %v2491 = vld [vmem:[%s500 + $0x8] sm:$0xf]
  %v2492 = vld [vmem:[%s500 + $0xc] sm:$0xf]
  %v2497 = vunpack.c.l.b16 %v2489
  %v2498 = vunpack.c.l.b16 %v2490
  %v2499 = vunpack.c.l.b16 %v2491
  %v2500 = vunpack.c.l.b16 %v2492
  %v2501 = vpack.c.b16 %v2498, %v2497
  %v2502 = vpack.c.b16 %v2500, %v2499
  %2503 = vrot.lane.b32.xlu0 %v2113, 120
  %v2504 = vpop.permute.xlu0 %2503
  %2505 = vrot.lane.b32.xlu0 %v2114, 120
  %v2506 = vpop.permute.xlu0 %2505
  %v2510 = vsel %vm120, %v2501, 0
  %v2513 = vsel %vm120, %v2502, 0
  %2515 = vmatpush.bf16.msra.mxu0 0
  %2516 = vmatpush.bf16.msra.mxu0 0
  %2517 = vmatpush.bf16.msra.mxu0 0
  %2518 = vmatpush.bf16.msra.mxu0 0
  %2519 = vmatpush.bf16.msra.mxu0 0
  %2520 = vmatpush.bf16.msra.mxu0 0
  %2521 = vmatpush.bf16.msra.mxu0 %v2506
  %2522 = vmatpush.bf16.msra.mxu0 %v2504
  %2523 = vmatmul.bf16.gmra.mxu0 %v2510
  %v2524 = vpop.f32.mrf.mxu0
  %v2525 = vadd.f32 0.0, %v2524
  %v2526 = vpop.f32.mrf.mxu0
  %v2527 = vadd.f32 0.0, %v2526
  %2528 = vmatmul.bf16.gmra.mxu0 %v2513
  %v2529 = vpop.f32.mrf.mxu0
  %v2530 = vadd.f32 0.0, %v2529
  %v2531 = vpop.f32.mrf.mxu0
  %v2532 = vadd.f32 0.0, %v2531
  %2533 = vdwg.mxu0
  %v2534 = vadd.f32 %v2485, %v2525
  %v2535 = vadd.f32 %v2486, %v2527
  %v2536 = vadd.f32 %v2487, %v2530
  %v2537 = vadd.f32 %v2488, %v2532
  %v2538 = vmax.f32 %v2534, 0.0
  %v2539 = vmax.f32 %v2535, 0.0
  %v2540 = vmax.f32 %v2536, 0.0
  %v2541 = vmax.f32 %v2537, 0.0
  %v2542 = vmul.f32 %v2538, %v52
  %v2543 = vmul.f32 %v2539, %v53
  %v2544 = vmul.f32 %v2540, %v54
  %v2545 = vmul.f32 %v2541, %v55
  %s2546 = scalar_lea.vmem %s0, 160
  %v2547 = vld [vmem:[%s2546] sm:$0xff]
  %v2548 = vld [vmem:[%s2546 + $0x8] sm:$0xff]
  %v2549 = vld [vmem:[%s2546 + $0x10] sm:$0xff]
  %v2550 = vld [vmem:[%s2546 + $0x18] sm:$0xff]
  %v2551 = vadd.f32 %v2542, %v2547
  %v2552 = vadd.f32 %v2543, %v2548
  %v2553 = vadd.f32 %v2544, %v2549
  %v2554 = vadd.f32 %v2545, %v2550
  %s2555 = scalar_lea.vmem %s4, 160
  %2556 = vst.msk [vmem:[%s2555] sm:$0xff] %vm60, %v2551
  %2557 = vst.msk [vmem:[%s2555 + $0x8] sm:$0xff] %vm60, %v2552
  %2558 = vst.msk [vmem:[%s2555 + $0x10] sm:$0xff] %vm60, %v2553
  %2559 = vst.msk [vmem:[%s2555 + $0x18] sm:$0xff] %vm60, %v2554
  %v2560 = vpack.c.bf16 %v2551, %v2551
  %v2561 = vpack.c.bf16 %v2552, %v2552
  %v2562 = vpack.c.bf16 %v2553, %v2553
  %v2563 = vpack.c.bf16 %v2554, %v2554
  %2568 = vrot.lane.b32.xlu0 %v2560, 4
  %v2569 = vpop.permute.xlu0 %2568
  %2570 = vrot.lane.b32.xlu0 %v2561, 4
  %v2571 = vpop.permute.xlu0 %2570
  %2572 = vrot.lane.b32.xlu0 %v2562, 4
  %v2573 = vpop.permute.xlu0 %2572
  %2574 = vrot.lane.b32.xlu0 %v2563, 4
  %v2575 = vpop.permute.xlu0 %2574
  %2580 = vst.msk [vmem:[#allocation2] sm:$0xf] %vm85, %v2569
  %2581 = vst.msk [vmem:[#allocation2 + $0x4] sm:$0xf] %vm85, %v2571
  %2582 = vst.msk [vmem:[#allocation2 + $0x8] sm:$0xf] %vm85, %v2573
  %2583 = vst.msk [vmem:[#allocation2 + $0xc] sm:$0xf] %vm85, %v2575
  %v2584 = vld [vmem:[%s1] sm:$0xf]
  %v2585 = vld [vmem:[%s1 + $0x4] sm:$0xf]
  %v2586 = vld [vmem:[%s1 + $0x8] sm:$0xf]
  %v2587 = vld [vmem:[%s1 + $0xc] sm:$0xf]
  %v2588 = vld [vmem:[#allocation2] sm:$0xf]
  %v2589 = vld [vmem:[#allocation2 + $0x4] sm:$0xf]
  %v2590 = vld [vmem:[#allocation2 + $0x8] sm:$0xf]
  %v2591 = vld [vmem:[#allocation2 + $0xc] sm:$0xf]
  %v2596 = vunpack.c.l.b16 %v2584
  %v2597 = vunpack.c.l.b16 %v2585
  %v2598 = vunpack.c.l.b16 %v2586
  %v2599 = vunpack.c.l.b16 %v2587
  %v2600 = vpack.c.b16 %v2597, %v2596
  %v2601 = vpack.c.b16 %v2599, %v2598
  %v2606 = vunpack.c.l.b16 %v2588
  %v2607 = vunpack.c.l.b16 %v2589
  %v2608 = vunpack.c.l.b16 %v2590
  %v2609 = vunpack.c.l.b16 %v2591
  %v2610 = vpack.c.b16 %v2607, %v2606
  %v2611 = vpack.c.b16 %v2609, %v2608
  %v2615 = vsel %vm120, %v2600, 0
  %v2618 = vsel %vm120, %v2601, 0
  %2620 = vmatpush.bf16.msra.mxu0 0
  %2621 = vmatpush.bf16.msra.mxu0 0
  %2622 = vmatpush.bf16.msra.mxu0 0
  %2623 = vmatpush.bf16.msra.mxu0 0
  %2624 = vmatpush.bf16.msra.mxu0 0
  %2625 = vmatpush.bf16.msra.mxu0 0
  %2626 = vmatpush.bf16.msra.mxu0 %v2611
  %2627 = vmatpush.bf16.msra.mxu0 %v2610
  %2628 = vmatmul.bf16.gmra.mxu0 %v2615
  %v2629 = vpop.f32.mrf.mxu0
  %v2630 = vadd.f32 0.0, %v2629
  %v2631 = vpop.f32.mrf.mxu0
  %v2632 = vadd.f32 0.0, %v2631
  %2633 = vmatmul.bf16.gmra.mxu0 %v2618
  %v2634 = vpop.f32.mrf.mxu0
  %v2635 = vadd.f32 0.0, %v2634
  %v2636 = vpop.f32.mrf.mxu0
  %v2637 = vadd.f32 0.0, %v2636
  %2638 = vdwg.mxu0
  %v2639 = vadd.f32 %v35, %v2630
  %v2640 = vadd.f32 %v40, %v2632
  %v2641 = vadd.f32 %v45, %v2635
  %v2642 = vadd.f32 %v50, %v2637
  %v2643 = vld [vmem:[%s150] sm:$0xf]
  %v2644 = vld [vmem:[%s150 + $0x4] sm:$0xf]
  %v2645 = vld [vmem:[%s150 + $0x8] sm:$0xf]
  %v2646 = vld [vmem:[%s150 + $0xc] sm:$0xf]
  %v2651 = vunpack.c.l.b16 %v2643
  %v2652 = vunpack.c.l.b16 %v2644
  %v2653 = vunpack.c.l.b16 %v2645
  %v2654 = vunpack.c.l.b16 %v2646
  %v2655 = vpack.c.b16 %v2652, %v2651
  %v2656 = vpack.c.b16 %v2654, %v2653
  %2657 = vrot.lane.b32.xlu0 %v2610, 127
  %v2658 = vpop.permute.xlu0 %2657
  %2659 = vrot.lane.b32.xlu0 %v2611, 127
  %v2660 = vpop.permute.xlu0 %2659
  %v2664 = vsel %vm120, %v2655, 0
  %v2667 = vsel %vm120, %v2656, 0
  %2669 = vmatpush.bf16.msra.mxu0 0
  %2670 = vmatpush.bf16.msra.mxu0 0
  %2671 = vmatpush.bf16.msra.mxu0 0
  %2672 = vmatpush.bf16.msra.mxu0 0
  %2673 = vmatpush.bf16.msra.mxu0 0
  %2674 = vmatpush.bf16.msra.mxu0 0
  %2675 = vmatpush.bf16.msra.mxu0 %v2660
  %2676 = vmatpush.bf16.msra.mxu0 %v2658
  %2677 = vmatmul.bf16.gmra.mxu0 %v2664
  %v2678 = vpop.f32.mrf.mxu0
  %v2679 = vadd.f32 0.0, %v2678
  %v2680 = vpop.f32.mrf.mxu0
  %v2681 = vadd.f32 0.0, %v2680
  %2682 = vmatmul.bf16.gmra.mxu0 %v2667
  %v2683 = vpop.f32.mrf.mxu0
  %v2684 = vadd.f32 0.0, %v2683
  %v2685 = vpop.f32.mrf.mxu0
  %v2686 = vadd.f32 0.0, %v2685
  %2687 = vdwg.mxu0
  %v2688 = vadd.f32 %v2639, %v2679
  %v2689 = vadd.f32 %v2640, %v2681
  %v2690 = vadd.f32 %v2641, %v2684
  %v2691 = vadd.f32 %v2642, %v2686
  %v2692 = vld [vmem:[%s200] sm:$0xf]
  %v2693 = vld [vmem:[%s200 + $0x4] sm:$0xf]
  %v2694 = vld [vmem:[%s200 + $0x8] sm:$0xf]
  %v2695 = vld [vmem:[%s200 + $0xc] sm:$0xf]
  %v2700 = vunpack.c.l.b16 %v2692
  %v2701 = vunpack.c.l.b16 %v2693
  %v2702 = vunpack.c.l.b16 %v2694
  %v2703 = vunpack.c.l.b16 %v2695
  %v2704 = vpack.c.b16 %v2701, %v2700
  %v2705 = vpack.c.b16 %v2703, %v2702
  %2706 = vrot.lane.b32.xlu0 %v2610, 126
  %v2707 = vpop.permute.xlu0 %2706
  %2708 = vrot.lane.b32.xlu0 %v2611, 126
  %v2709 = vpop.permute.xlu0 %2708
  %v2713 = vsel %vm120, %v2704, 0
  %v2716 = vsel %vm120, %v2705, 0
  %2718 = vmatpush.bf16.msra.mxu0 0
  %2719 = vmatpush.bf16.msra.mxu0 0
  %2720 = vmatpush.bf16.msra.mxu0 0
  %2721 = vmatpush.bf16.msra.mxu0 0
  %2722 = vmatpush.bf16.msra.mxu0 0
  %2723 = vmatpush.bf16.msra.mxu0 0
  %2724 = vmatpush.bf16.msra.mxu0 %v2709
  %2725 = vmatpush.bf16.msra.mxu0 %v2707
  %2726 = vmatmul.bf16.gmra.mxu0 %v2713
  %v2727 = vpop.f32.mrf.mxu0
  %v2728 = vadd.f32 0.0, %v2727
  %v2729 = vpop.f32.mrf.mxu0
  %v2730 = vadd.f32 0.0, %v2729
  %2731 = vmatmul.bf16.gmra.mxu0 %v2716
  %v2732 = vpop.f32.mrf.mxu0
  %v2733 = vadd.f32 0.0, %v2732
  %v2734 = vpop.f32.mrf.mxu0
  %v2735 = vadd.f32 0.0, %v2734
  %2736 = vdwg.mxu0
  %v2737 = vadd.f32 %v2688, %v2728
  %v2738 = vadd.f32 %v2689, %v2730
  %v2739 = vadd.f32 %v2690, %v2733
  %v2740 = vadd.f32 %v2691, %v2735
  %v2741 = vld [vmem:[%s250] sm:$0xf]
  %v2742 = vld [vmem:[%s250 + $0x4] sm:$0xf]
  %v2743 = vld [vmem:[%s250 + $0x8] sm:$0xf]
  %v2744 = vld [vmem:[%s250 + $0xc] sm:$0xf]
  %v2749 = vunpack.c.l.b16 %v2741
  %v2750 = vunpack.c.l.b16 %v2742
  %v2751 = vunpack.c.l.b16 %v2743
  %v2752 = vunpack.c.l.b16 %v2744
  %v2753 = vpack.c.b16 %v2750, %v2749
  %v2754 = vpack.c.b16 %v2752, %v2751
  %2755 = vrot.lane.b32.xlu0 %v2610, 125
  %v2756 = vpop.permute.xlu0 %2755
  %2757 = vrot.lane.b32.xlu0 %v2611, 125
  %v2758 = vpop.permute.xlu0 %2757
  %v2762 = vsel %vm120, %v2753, 0
  %v2765 = vsel %vm120, %v2754, 0
  %2767 = vmatpush.bf16.msra.mxu0 0
  %2768 = vmatpush.bf16.msra.mxu0 0
  %2769 = vmatpush.bf16.msra.mxu0 0
  %2770 = vmatpush.bf16.msra.mxu0 0
  %2771 = vmatpush.bf16.msra.mxu0 0
  %2772 = vmatpush.bf16.msra.mxu0 0
  %2773 = vmatpush.bf16.msra.mxu0 %v2758
  %2774 = vmatpush.bf16.msra.mxu0 %v2756
  %2775 = vmatmul.bf16.gmra.mxu0 %v2762
  %v2776 = vpop.f32.mrf.mxu0
  %v2777 = vadd.f32 0.0, %v2776
  %v2778 = vpop.f32.mrf.mxu0
  %v2779 = vadd.f32 0.0, %v2778
  %2780 = vmatmul.bf16.gmra.mxu0 %v2765
  %v2781 = vpop.f32.mrf.mxu0
  %v2782 = vadd.f32 0.0, %v2781
  %v2783 = vpop.f32.mrf.mxu0
  %v2784 = vadd.f32 0.0, %v2783
  %2785 = vdwg.mxu0
  %v2786 = vadd.f32 %v2737, %v2777
  %v2787 = vadd.f32 %v2738, %v2779
  %v2788 = vadd.f32 %v2739, %v2782
  %v2789 = vadd.f32 %v2740, %v2784
  %v2790 = vld [vmem:[%s300] sm:$0xf]
  %v2791 = vld [vmem:[%s300 + $0x4] sm:$0xf]
  %v2792 = vld [vmem:[%s300 + $0x8] sm:$0xf]
  %v2793 = vld [vmem:[%s300 + $0xc] sm:$0xf]
  %v2798 = vunpack.c.l.b16 %v2790
  %v2799 = vunpack.c.l.b16 %v2791
  %v2800 = vunpack.c.l.b16 %v2792
  %v2801 = vunpack.c.l.b16 %v2793
  %v2802 = vpack.c.b16 %v2799, %v2798
  %v2803 = vpack.c.b16 %v2801, %v2800
  %2804 = vrot.lane.b32.xlu0 %v2610, 124
  %v2805 = vpop.permute.xlu0 %2804
  %2806 = vrot.lane.b32.xlu0 %v2611, 124
  %v2807 = vpop.permute.xlu0 %2806
  %v2811 = vsel %vm120, %v2802, 0
  %v2814 = vsel %vm120, %v2803, 0
  %2816 = vmatpush.bf16.msra.mxu0 0
  %2817 = vmatpush.bf16.msra.mxu0 0
  %2818 = vmatpush.bf16.msra.mxu0 0
  %2819 = vmatpush.bf16.msra.mxu0 0
  %2820 = vmatpush.bf16.msra.mxu0 0
  %2821 = vmatpush.bf16.msra.mxu0 0
  %2822 = vmatpush.bf16.msra.mxu0 %v2807
  %2823 = vmatpush.bf16.msra.mxu0 %v2805
  %2824 = vmatmul.bf16.gmra.mxu0 %v2811
  %v2825 = vpop.f32.mrf.mxu0
  %v2826 = vadd.f32 0.0, %v2825
  %v2827 = vpop.f32.mrf.mxu0
  %v2828 = vadd.f32 0.0, %v2827
  %2829 = vmatmul.bf16.gmra.mxu0 %v2814
  %v2830 = vpop.f32.mrf.mxu0
  %v2831 = vadd.f32 0.0, %v2830
  %v2832 = vpop.f32.mrf.mxu0
  %v2833 = vadd.f32 0.0, %v2832
  %2834 = vdwg.mxu0
  %v2835 = vadd.f32 %v2786, %v2826
  %v2836 = vadd.f32 %v2787, %v2828
  %v2837 = vadd.f32 %v2788, %v2831
  %v2838 = vadd.f32 %v2789, %v2833
  %v2839 = vld [vmem:[%s350] sm:$0xf]
  %v2840 = vld [vmem:[%s350 + $0x4] sm:$0xf]
  %v2841 = vld [vmem:[%s350 + $0x8] sm:$0xf]
  %v2842 = vld [vmem:[%s350 + $0xc] sm:$0xf]
  %v2847 = vunpack.c.l.b16 %v2839
  %v2848 = vunpack.c.l.b16 %v2840
  %v2849 = vunpack.c.l.b16 %v2841
  %v2850 = vunpack.c.l.b16 %v2842
  %v2851 = vpack.c.b16 %v2848, %v2847
  %v2852 = vpack.c.b16 %v2850, %v2849
  %2853 = vrot.lane.b32.xlu0 %v2610, 123
  %v2854 = vpop.permute.xlu0 %2853
  %2855 = vrot.lane.b32.xlu0 %v2611, 123
  %v2856 = vpop.permute.xlu0 %2855
  %v2860 = vsel %vm120, %v2851, 0
  %v2863 = vsel %vm120, %v2852, 0
  %2865 = vmatpush.bf16.msra.mxu0 0
  %2866 = vmatpush.bf16.msra.mxu0 0
  %2867 = vmatpush.bf16.msra.mxu0 0
  %2868 = vmatpush.bf16.msra.mxu0 0
  %2869 = vmatpush.bf16.msra.mxu0 0
  %2870 = vmatpush.bf16.msra.mxu0 0
  %2871 = vmatpush.bf16.msra.mxu0 %v2856
  %2872 = vmatpush.bf16.msra.mxu0 %v2854
  %2873 = vmatmul.bf16.gmra.mxu0 %v2860
  %v2874 = vpop.f32.mrf.mxu0
  %v2875 = vadd.f32 0.0, %v2874
  %v2876 = vpop.f32.mrf.mxu0
  %v2877 = vadd.f32 0.0, %v2876
  %2878 = vmatmul.bf16.gmra.mxu0 %v2863
  %v2879 = vpop.f32.mrf.mxu0
  %v2880 = vadd.f32 0.0, %v2879
  %v2881 = vpop.f32.mrf.mxu0
  %v2882 = vadd.f32 0.0, %v2881
  %2883 = vdwg.mxu0
  %v2884 = vadd.f32 %v2835, %v2875
  %v2885 = vadd.f32 %v2836, %v2877
  %v2886 = vadd.f32 %v2837, %v2880
  %v2887 = vadd.f32 %v2838, %v2882
  %v2888 = vld [vmem:[%s400] sm:$0xf]
  %v2889 = vld [vmem:[%s400 + $0x4] sm:$0xf]
  %v2890 = vld [vmem:[%s400 + $0x8] sm:$0xf]
  %v2891 = vld [vmem:[%s400 + $0xc] sm:$0xf]
  %v2896 = vunpack.c.l.b16 %v2888
  %v2897 = vunpack.c.l.b16 %v2889
  %v2898 = vunpack.c.l.b16 %v2890
  %v2899 = vunpack.c.l.b16 %v2891
  %v2900 = vpack.c.b16 %v2897, %v2896
  %v2901 = vpack.c.b16 %v2899, %v2898
  %2902 = vrot.lane.b32.xlu0 %v2610, 122
  %v2903 = vpop.permute.xlu0 %2902
  %2904 = vrot.lane.b32.xlu0 %v2611, 122
  %v2905 = vpop.permute.xlu0 %2904
  %v2909 = vsel %vm120, %v2900, 0
  %v2912 = vsel %vm120, %v2901, 0
  %2914 = vmatpush.bf16.msra.mxu0 0
  %2915 = vmatpush.bf16.msra.mxu0 0
  %2916 = vmatpush.bf16.msra.mxu0 0
  %2917 = vmatpush.bf16.msra.mxu0 0
  %2918 = vmatpush.bf16.msra.mxu0 0
  %2919 = vmatpush.bf16.msra.mxu0 0
  %2920 = vmatpush.bf16.msra.mxu0 %v2905
  %2921 = vmatpush.bf16.msra.mxu0 %v2903
  %2922 = vmatmul.bf16.gmra.mxu0 %v2909
  %v2923 = vpop.f32.mrf.mxu0
  %v2924 = vadd.f32 0.0, %v2923
  %v2925 = vpop.f32.mrf.mxu0
  %v2926 = vadd.f32 0.0, %v2925
  %2927 = vmatmul.bf16.gmra.mxu0 %v2912
  %v2928 = vpop.f32.mrf.mxu0
  %v2929 = vadd.f32 0.0, %v2928
  %v2930 = vpop.f32.mrf.mxu0
  %v2931 = vadd.f32 0.0, %v2930
  %2932 = vdwg.mxu0
  %v2933 = vadd.f32 %v2884, %v2924
  %v2934 = vadd.f32 %v2885, %v2926
  %v2935 = vadd.f32 %v2886, %v2929
  %v2936 = vadd.f32 %v2887, %v2931
  %v2937 = vld [vmem:[%s450] sm:$0xf]
  %v2938 = vld [vmem:[%s450 + $0x4] sm:$0xf]
  %v2939 = vld [vmem:[%s450 + $0x8] sm:$0xf]
  %v2940 = vld [vmem:[%s450 + $0xc] sm:$0xf]
  %v2945 = vunpack.c.l.b16 %v2937
  %v2946 = vunpack.c.l.b16 %v2938
  %v2947 = vunpack.c.l.b16 %v2939
  %v2948 = vunpack.c.l.b16 %v2940
  %v2949 = vpack.c.b16 %v2946, %v2945
  %v2950 = vpack.c.b16 %v2948, %v2947
  %2951 = vrot.lane.b32.xlu0 %v2610, 121
  %v2952 = vpop.permute.xlu0 %2951
  %2953 = vrot.lane.b32.xlu0 %v2611, 121
  %v2954 = vpop.permute.xlu0 %2953
  %v2958 = vsel %vm120, %v2949, 0
  %v2961 = vsel %vm120, %v2950, 0
  %2963 = vmatpush.bf16.msra.mxu0 0
  %2964 = vmatpush.bf16.msra.mxu0 0
  %2965 = vmatpush.bf16.msra.mxu0 0
  %2966 = vmatpush.bf16.msra.mxu0 0
  %2967 = vmatpush.bf16.msra.mxu0 0
  %2968 = vmatpush.bf16.msra.mxu0 0
  %2969 = vmatpush.bf16.msra.mxu0 %v2954
  %2970 = vmatpush.bf16.msra.mxu0 %v2952
  %2971 = vmatmul.bf16.gmra.mxu0 %v2958
  %v2972 = vpop.f32.mrf.mxu0
  %v2973 = vadd.f32 0.0, %v2972
  %v2974 = vpop.f32.mrf.mxu0
  %v2975 = vadd.f32 0.0, %v2974
  %2976 = vmatmul.bf16.gmra.mxu0 %v2961
  %v2977 = vpop.f32.mrf.mxu0
  %v2978 = vadd.f32 0.0, %v2977
  %v2979 = vpop.f32.mrf.mxu0
  %v2980 = vadd.f32 0.0, %v2979
  %2981 = vdwg.mxu0
  %v2982 = vadd.f32 %v2933, %v2973
  %v2983 = vadd.f32 %v2934, %v2975
  %v2984 = vadd.f32 %v2935, %v2978
  %v2985 = vadd.f32 %v2936, %v2980
  %v2986 = vld [vmem:[%s500] sm:$0xf]
  %v2987 = vld [vmem:[%s500 + $0x4] sm:$0xf]
  %v2988 = vld [vmem:[%s500 + $0x8] sm:$0xf]
  %v2989 = vld [vmem:[%s500 + $0xc] sm:$0xf]
  %v2994 = vunpack.c.l.b16 %v2986
  %v2995 = vunpack.c.l.b16 %v2987
  %v2996 = vunpack.c.l.b16 %v2988
  %v2997 = vunpack.c.l.b16 %v2989
  %v2998 = vpack.c.b16 %v2995, %v2994
  %v2999 = vpack.c.b16 %v2997, %v2996
  %3000 = vrot.lane.b32.xlu0 %v2610, 120
  %v3001 = vpop.permute.xlu0 %3000
  %3002 = vrot.lane.b32.xlu0 %v2611, 120
  %v3003 = vpop.permute.xlu0 %3002
  %v3007 = vsel %vm120, %v2998, 0
  %v3010 = vsel %vm120, %v2999, 0
  %3012 = vmatpush.bf16.msra.mxu0 0
  %3013 = vmatpush.bf16.msra.mxu0 0
  %3014 = vmatpush.bf16.msra.mxu0 0
  %3015 = vmatpush.bf16.msra.mxu0 0
  %3016 = vmatpush.bf16.msra.mxu0 0
  %3017 = vmatpush.bf16.msra.mxu0 0
  %3018 = vmatpush.bf16.msra.mxu0 %v3003
  %3019 = vmatpush.bf16.msra.mxu0 %v3001
  %3020 = vmatmul.bf16.gmra.mxu0 %v3007
  %v3021 = vpop.f32.mrf.mxu0
  %v3022 = vadd.f32 0.0, %v3021
  %v3023 = vpop.f32.mrf.mxu0
  %v3024 = vadd.f32 0.0, %v3023
  %3025 = vmatmul.bf16.gmra.mxu0 %v3010
  %v3026 = vpop.f32.mrf.mxu0
  %v3027 = vadd.f32 0.0, %v3026
  %v3028 = vpop.f32.mrf.mxu0
  %v3029 = vadd.f32 0.0, %v3028
  %3030 = vdwg.mxu0
  %v3031 = vadd.f32 %v2982, %v3022
  %v3032 = vadd.f32 %v2983, %v3024
  %v3033 = vadd.f32 %v2984, %v3027
  %v3034 = vadd.f32 %v2985, %v3029
  %v3035 = vmax.f32 %v3031, 0.0
  %v3036 = vmax.f32 %v3032, 0.0
  %v3037 = vmax.f32 %v3033, 0.0
  %v3038 = vmax.f32 %v3034, 0.0
  %v3039 = vmul.f32 %v3035, %v52
  %v3040 = vmul.f32 %v3036, %v53
  %v3041 = vmul.f32 %v3037, %v54
  %v3042 = vmul.f32 %v3038, %v55
  %v3043 = vld [vmem:[%s2058] sm:$0xff]
  %v3044 = vld [vmem:[%s2058 + $0x8] sm:$0xff]
  %v3045 = vld [vmem:[%s2058 + $0x10] sm:$0xff]
  %v3046 = vld [vmem:[%s2058 + $0x18] sm:$0xff]
  %v3047 = vadd.f32 %v3039, %v3043
  %v3048 = vadd.f32 %v3040, %v3044
  %v3049 = vadd.f32 %v3041, %v3045
  %v3050 = vadd.f32 %v3042, %v3046
  %3051 = vst.msk [vmem:[%s2058] sm:$0xff] %vm60, %v3047
  %3052 = vst.msk [vmem:[%s2058 + $0x8] sm:$0xff] %vm60, %v3048
  %3053 = vst.msk [vmem:[%s2058 + $0x10] sm:$0xff] %vm60, %v3049
  %3054 = vst.msk [vmem:[%s2058 + $0x18] sm:$0xff] %vm60, %v3050
  %v3055 = vpack.c.bf16 %v3047, %v3047
  %v3056 = vpack.c.bf16 %v3048, %v3048
  %v3057 = vpack.c.bf16 %v3049, %v3049
  %v3058 = vpack.c.bf16 %v3050, %v3050
  %3063 = vrot.lane.b32.xlu0 %v3055, 4
  %v3064 = vpop.permute.xlu0 %3063
  %3065 = vrot.lane.b32.xlu0 %v3056, 4
  %v3066 = vpop.permute.xlu0 %3065
  %3067 = vrot.lane.b32.xlu0 %v3057, 4
  %v3068 = vpop.permute.xlu0 %3067
  %3069 = vrot.lane.b32.xlu0 %v3058, 4
  %v3070 = vpop.permute.xlu0 %3069
  %3075 = vst.msk [vmem:[#allocation2] sm:$0xf] %vm85, %v3064
  %3076 = vst.msk [vmem:[#allocation2 + $0x4] sm:$0xf] %vm85, %v3066
  %3077 = vst.msk [vmem:[#allocation2 + $0x8] sm:$0xf] %vm85, %v3068
  %3078 = vst.msk [vmem:[#allocation2 + $0xc] sm:$0xf] %vm85, %v3070
  %v3079 = vld [vmem:[%s1] sm:$0xf]
  %v3080 = vld [vmem:[%s1 + $0x4] sm:$0xf]
  %v3081 = vld [vmem:[%s1 + $0x8] sm:$0xf]
  %v3082 = vld [vmem:[%s1 + $0xc] sm:$0xf]
  %v3083 = vld [vmem:[#allocation2] sm:$0xf]
  %v3084 = vld [vmem:[#allocation2 + $0x4] sm:$0xf]
  %v3085 = vld [vmem:[#allocation2 + $0x8] sm:$0xf]
  %v3086 = vld [vmem:[#allocation2 + $0xc] sm:$0xf]
  %v3091 = vunpack.c.l.b16 %v3079
  %v3092 = vunpack.c.l.b16 %v3080
  %v3093 = vunpack.c.l.b16 %v3081
  %v3094 = vunpack.c.l.b16 %v3082
  %v3095 = vpack.c.b16 %v3092, %v3091
  %v3096 = vpack.c.b16 %v3094, %v3093
  %v3101 = vunpack.c.l.b16 %v3083
  %v3102 = vunpack.c.l.b16 %v3084
  %v3103 = vunpack.c.l.b16 %v3085
  %v3104 = vunpack.c.l.b16 %v3086
  %v3105 = vpack.c.b16 %v3102, %v3101
  %v3106 = vpack.c.b16 %v3104, %v3103
  %v3110 = vsel %vm120, %v3095, 0
  %v3113 = vsel %vm120, %v3096, 0
  %3115 = vmatpush.bf16.msra.mxu0 0
  %3116 = vmatpush.bf16.msra.mxu0 0
  %3117 = vmatpush.bf16.msra.mxu0 0
  %3118 = vmatpush.bf16.msra.mxu0 0
  %3119 = vmatpush.bf16.msra.mxu0 0
  %3120 = vmatpush.bf16.msra.mxu0 0
  %3121 = vmatpush.bf16.msra.mxu0 %v3106
  %3122 = vmatpush.bf16.msra.mxu0 %v3105
  %3123 = vmatmul.bf16.gmra.mxu0 %v3110
  %v3124 = vpop.f32.mrf.mxu0
  %v3125 = vadd.f32 0.0, %v3124
  %v3126 = vpop.f32.mrf.mxu0
  %v3127 = vadd.f32 0.0, %v3126
  %3128 = vmatmul.bf16.gmra.mxu0 %v3113
  %v3129 = vpop.f32.mrf.mxu0
  %v3130 = vadd.f32 0.0, %v3129
  %v3131 = vpop.f32.mrf.mxu0
  %v3132 = vadd.f32 0.0, %v3131
  %3133 = vdwg.mxu0
  %v3134 = vadd.f32 %v35, %v3125
  %v3135 = vadd.f32 %v40, %v3127
  %v3136 = vadd.f32 %v45, %v3130
  %v3137 = vadd.f32 %v50, %v3132
  %v3138 = vld [vmem:[%s150] sm:$0xf]
  %v3139 = vld [vmem:[%s150 + $0x4] sm:$0xf]
  %v3140 = vld [vmem:[%s150 + $0x8] sm:$0xf]
  %v3141 = vld [vmem:[%s150 + $0xc] sm:$0xf]
  %v3146 = vunpack.c.l.b16 %v3138
  %v3147 = vunpack.c.l.b16 %v3139
  %v3148 = vunpack.c.l.b16 %v3140
  %v3149 = vunpack.c.l.b16 %v3141
  %v3150 = vpack.c.b16 %v3147, %v3146
  %v3151 = vpack.c.b16 %v3149, %v3148
  %3152 = vrot.lane.b32.xlu0 %v3105, 127
  %v3153 = vpop.permute.xlu0 %3152
  %3154 = vrot.lane.b32.xlu0 %v3106, 127
  %v3155 = vpop.permute.xlu0 %3154
  %v3159 = vsel %vm120, %v3150, 0
  %v3162 = vsel %vm120, %v3151, 0
  %3164 = vmatpush.bf16.msra.mxu0 0
  %3165 = vmatpush.bf16.msra.mxu0 0
  %3166 = vmatpush.bf16.msra.mxu0 0
  %3167 = vmatpush.bf16.msra.mxu0 0
  %3168 = vmatpush.bf16.msra.mxu0 0
  %3169 = vmatpush.bf16.msra.mxu0 0
  %3170 = vmatpush.bf16.msra.mxu0 %v3155
  %3171 = vmatpush.bf16.msra.mxu0 %v3153
  %3172 = vmatmul.bf16.gmra.mxu0 %v3159
  %v3173 = vpop.f32.mrf.mxu0
  %v3174 = vadd.f32 0.0, %v3173
  %v3175 = vpop.f32.mrf.mxu0
  %v3176 = vadd.f32 0.0, %v3175
  %3177 = vmatmul.bf16.gmra.mxu0 %v3162
  %v3178 = vpop.f32.mrf.mxu0
  %v3179 = vadd.f32 0.0, %v3178
  %v3180 = vpop.f32.mrf.mxu0
  %v3181 = vadd.f32 0.0, %v3180
  %3182 = vdwg.mxu0
  %v3183 = vadd.f32 %v3134, %v3174
  %v3184 = vadd.f32 %v3135, %v3176
  %v3185 = vadd.f32 %v3136, %v3179
  %v3186 = vadd.f32 %v3137, %v3181
  %v3187 = vld [vmem:[%s200] sm:$0xf]
  %v3188 = vld [vmem:[%s200 + $0x4] sm:$0xf]
  %v3189 = vld [vmem:[%s200 + $0x8] sm:$0xf]
  %v3190 = vld [vmem:[%s200 + $0xc] sm:$0xf]
  %v3195 = vunpack.c.l.b16 %v3187
  %v3196 = vunpack.c.l.b16 %v3188
  %v3197 = vunpack.c.l.b16 %v3189
  %v3198 = vunpack.c.l.b16 %v3190
  %v3199 = vpack.c.b16 %v3196, %v3195
  %v3200 = vpack.c.b16 %v3198, %v3197
  %3201 = vrot.lane.b32.xlu0 %v3105, 126
  %v3202 = vpop.permute.xlu0 %3201
  %3203 = vrot.lane.b32.xlu0 %v3106, 126
  %v3204 = vpop.permute.xlu0 %3203
  %v3208 = vsel %vm120, %v3199, 0
  %v3211 = vsel %vm120, %v3200, 0
  %3213 = vmatpush.bf16.msra.mxu0 0
  %3214 = vmatpush.bf16.msra.mxu0 0
  %3215 = vmatpush.bf16.msra.mxu0 0
  %3216 = vmatpush.bf16.msra.mxu0 0
  %3217 = vmatpush.bf16.msra.mxu0 0
  %3218 = vmatpush.bf16.msra.mxu0 0
  %3219 = vmatpush.bf16.msra.mxu0 %v3204
  %3220 = vmatpush.bf16.msra.mxu0 %v3202
  %3221 = vmatmul.bf16.gmra.mxu0 %v3208
  %v3222 = vpop.f32.mrf.mxu0
  %v3223 = vadd.f32 0.0, %v3222
  %v3224 = vpop.f32.mrf.mxu0
  %v3225 = vadd.f32 0.0, %v3224
  %3226 = vmatmul.bf16.gmra.mxu0 %v3211
  %v3227 = vpop.f32.mrf.mxu0
  %v3228 = vadd.f32 0.0, %v3227
  %v3229 = vpop.f32.mrf.mxu0
  %v3230 = vadd.f32 0.0, %v3229
  %3231 = vdwg.mxu0
  %v3232 = vadd.f32 %v3183, %v3223
  %v3233 = vadd.f32 %v3184, %v3225
  %v3234 = vadd.f32 %v3185, %v3228
  %v3235 = vadd.f32 %v3186, %v3230
  %v3236 = vld [vmem:[%s250] sm:$0xf]
  %v3237 = vld [vmem:[%s250 + $0x4] sm:$0xf]
  %v3238 = vld [vmem:[%s250 + $0x8] sm:$0xf]
  %v3239 = vld [vmem:[%s250 + $0xc] sm:$0xf]
  %v3244 = vunpack.c.l.b16 %v3236
  %v3245 = vunpack.c.l.b16 %v3237
  %v3246 = vunpack.c.l.b16 %v3238
  %v3247 = vunpack.c.l.b16 %v3239
  %v3248 = vpack.c.b16 %v3245, %v3244
  %v3249 = vpack.c.b16 %v3247, %v3246
  %3250 = vrot.lane.b32.xlu0 %v3105, 125
  %v3251 = vpop.permute.xlu0 %3250
  %3252 = vrot.lane.b32.xlu0 %v3106, 125
  %v3253 = vpop.permute.xlu0 %3252
  %v3257 = vsel %vm120, %v3248, 0
  %v3260 = vsel %vm120, %v3249, 0
  %3262 = vmatpush.bf16.msra.mxu0 0
  %3263 = vmatpush.bf16.msra.mxu0 0
  %3264 = vmatpush.bf16.msra.mxu0 0
  %3265 = vmatpush.bf16.msra.mxu0 0
  %3266 = vmatpush.bf16.msra.mxu0 0
  %3267 = vmatpush.bf16.msra.mxu0 0
  %3268 = vmatpush.bf16.msra.mxu0 %v3253
  %3269 = vmatpush.bf16.msra.mxu0 %v3251
  %3270 = vmatmul.bf16.gmra.mxu0 %v3257
  %v3271 = vpop.f32.mrf.mxu0
  %v3272 = vadd.f32 0.0, %v3271
  %v3273 = vpop.f32.mrf.mxu0
  %v3274 = vadd.f32 0.0, %v3273
  %3275 = vmatmul.bf16.gmra.mxu0 %v3260
  %v3276 = vpop.f32.mrf.mxu0
  %v3277 = vadd.f32 0.0, %v3276
  %v3278 = vpop.f32.mrf.mxu0
  %v3279 = vadd.f32 0.0, %v3278
  %3280 = vdwg.mxu0
  %v3281 = vadd.f32 %v3232, %v3272
  %v3282 = vadd.f32 %v3233, %v3274
  %v3283 = vadd.f32 %v3234, %v3277
  %v3284 = vadd.f32 %v3235, %v3279
  %v3285 = vld [vmem:[%s300] sm:$0xf]
  %v3286 = vld [vmem:[%s300 + $0x4] sm:$0xf]
  %v3287 = vld [vmem:[%s300 + $0x8] sm:$0xf]
  %v3288 = vld [vmem:[%s300 + $0xc] sm:$0xf]
  %v3293 = vunpack.c.l.b16 %v3285
  %v3294 = vunpack.c.l.b16 %v3286
  %v3295 = vunpack.c.l.b16 %v3287
  %v3296 = vunpack.c.l.b16 %v3288
  %v3297 = vpack.c.b16 %v3294, %v3293
  %v3298 = vpack.c.b16 %v3296, %v3295
  %3299 = vrot.lane.b32.xlu0 %v3105, 124
  %v3300 = vpop.permute.xlu0 %3299
  %3301 = vrot.lane.b32.xlu0 %v3106, 124
  %v3302 = vpop.permute.xlu0 %3301
  %v3306 = vsel %vm120, %v3297, 0
  %v3309 = vsel %vm120, %v3298, 0
  %3311 = vmatpush.bf16.msra.mxu0 0
  %3312 = vmatpush.bf16.msra.mxu0 0
  %3313 = vmatpush.bf16.msra.mxu0 0
  %3314 = vmatpush.bf16.msra.mxu0 0
  %3315 = vmatpush.bf16.msra.mxu0 0
  %3316 = vmatpush.bf16.msra.mxu0 0
  %3317 = vmatpush.bf16.msra.mxu0 %v3302
  %3318 = vmatpush.bf16.msra.mxu0 %v3300
  %3319 = vmatmul.bf16.gmra.mxu0 %v3306
  %v3320 = vpop.f32.mrf.mxu0
  %v3321 = vadd.f32 0.0, %v3320
  %v3322 = vpop.f32.mrf.mxu0
  %v3323 = vadd.f32 0.0, %v3322
  %3324 = vmatmul.bf16.gmra.mxu0 %v3309
  %v3325 = vpop.f32.mrf.mxu0
  %v3326 = vadd.f32 0.0, %v3325
  %v3327 = vpop.f32.mrf.mxu0
  %v3328 = vadd.f32 0.0, %v3327
  %3329 = vdwg.mxu0
  %v3330 = vadd.f32 %v3281, %v3321
  %v3331 = vadd.f32 %v3282, %v3323
  %v3332 = vadd.f32 %v3283, %v3326
  %v3333 = vadd.f32 %v3284, %v3328
  %v3334 = vld [vmem:[%s350] sm:$0xf]
  %v3335 = vld [vmem:[%s350 + $0x4] sm:$0xf]
  %v3336 = vld [vmem:[%s350 + $0x8] sm:$0xf]
  %v3337 = vld [vmem:[%s350 + $0xc] sm:$0xf]
  %v3342 = vunpack.c.l.b16 %v3334
  %v3343 = vunpack.c.l.b16 %v3335
  %v3344 = vunpack.c.l.b16 %v3336
  %v3345 = vunpack.c.l.b16 %v3337
  %v3346 = vpack.c.b16 %v3343, %v3342
  %v3347 = vpack.c.b16 %v3345, %v3344
  %3348 = vrot.lane.b32.xlu0 %v3105, 123
  %v3349 = vpop.permute.xlu0 %3348
  %3350 = vrot.lane.b32.xlu0 %v3106, 123
  %v3351 = vpop.permute.xlu0 %3350
  %v3355 = vsel %vm120, %v3346, 0
  %v3358 = vsel %vm120, %v3347, 0
  %3360 = vmatpush.bf16.msra.mxu0 0
  %3361 = vmatpush.bf16.msra.mxu0 0
  %3362 = vmatpush.bf16.msra.mxu0 0
  %3363 = vmatpush.bf16.msra.mxu0 0
  %3364 = vmatpush.bf16.msra.mxu0 0
  %3365 = vmatpush.bf16.msra.mxu0 0
  %3366 = vmatpush.bf16.msra.mxu0 %v3351
  %3367 = vmatpush.bf16.msra.mxu0 %v3349
  %3368 = vmatmul.bf16.gmra.mxu0 %v3355
  %v3369 = vpop.f32.mrf.mxu0
  %v3370 = vadd.f32 0.0, %v3369
  %v3371 = vpop.f32.mrf.mxu0
  %v3372 = vadd.f32 0.0, %v3371
  %3373 = vmatmul.bf16.gmra.mxu0 %v3358
  %v3374 = vpop.f32.mrf.mxu0
  %v3375 = vadd.f32 0.0, %v3374
  %v3376 = vpop.f32.mrf.mxu0
  %v3377 = vadd.f32 0.0, %v3376
  %3378 = vdwg.mxu0
  %v3379 = vadd.f32 %v3330, %v3370
  %v3380 = vadd.f32 %v3331, %v3372
  %v3381 = vadd.f32 %v3332, %v3375
  %v3382 = vadd.f32 %v3333, %v3377
  %v3383 = vld [vmem:[%s400] sm:$0xf]
  %v3384 = vld [vmem:[%s400 + $0x4] sm:$0xf]
  %v3385 = vld [vmem:[%s400 + $0x8] sm:$0xf]
  %v3386 = vld [vmem:[%s400 + $0xc] sm:$0xf]
  %v3391 = vunpack.c.l.b16 %v3383
  %v3392 = vunpack.c.l.b16 %v3384
  %v3393 = vunpack.c.l.b16 %v3385
  %v3394 = vunpack.c.l.b16 %v3386
  %v3395 = vpack.c.b16 %v3392, %v3391
  %v3396 = vpack.c.b16 %v3394, %v3393
  %3397 = vrot.lane.b32.xlu0 %v3105, 122
  %v3398 = vpop.permute.xlu0 %3397
  %3399 = vrot.lane.b32.xlu0 %v3106, 122
  %v3400 = vpop.permute.xlu0 %3399
  %v3404 = vsel %vm120, %v3395, 0
  %v3407 = vsel %vm120, %v3396, 0
  %3409 = vmatpush.bf16.msra.mxu0 0
  %3410 = vmatpush.bf16.msra.mxu0 0
  %3411 = vmatpush.bf16.msra.mxu0 0
  %3412 = vmatpush.bf16.msra.mxu0 0
  %3413 = vmatpush.bf16.msra.mxu0 0
  %3414 = vmatpush.bf16.msra.mxu0 0
  %3415 = vmatpush.bf16.msra.mxu0 %v3400
  %3416 = vmatpush.bf16.msra.mxu0 %v3398
  %3417 = vmatmul.bf16.gmra.mxu0 %v3404
  %v3418 = vpop.f32.mrf.mxu0
  %v3419 = vadd.f32 0.0, %v3418
  %v3420 = vpop.f32.mrf.mxu0
  %v3421 = vadd.f32 0.0, %v3420
  %3422 = vmatmul.bf16.gmra.mxu0 %v3407
  %v3423 = vpop.f32.mrf.mxu0
  %v3424 = vadd.f32 0.0, %v3423
  %v3425 = vpop.f32.mrf.mxu0
  %v3426 = vadd.f32 0.0, %v3425
  %3427 = vdwg.mxu0
  %v3428 = vadd.f32 %v3379, %v3419
  %v3429 = vadd.f32 %v3380, %v3421
  %v3430 = vadd.f32 %v3381, %v3424
  %v3431 = vadd.f32 %v3382, %v3426
  %v3432 = vld [vmem:[%s450] sm:$0xf]
  %v3433 = vld [vmem:[%s450 + $0x4] sm:$0xf]
  %v3434 = vld [vmem:[%s450 + $0x8] sm:$0xf]
  %v3435 = vld [vmem:[%s450 + $0xc] sm:$0xf]
  %v3440 = vunpack.c.l.b16 %v3432
  %v3441 = vunpack.c.l.b16 %v3433
  %v3442 = vunpack.c.l.b16 %v3434
  %v3443 = vunpack.c.l.b16 %v3435
  %v3444 = vpack.c.b16 %v3441, %v3440
  %v3445 = vpack.c.b16 %v3443, %v3442
  %3446 = vrot.lane.b32.xlu0 %v3105, 121
  %v3447 = vpop.permute.xlu0 %3446
  %3448 = vrot.lane.b32.xlu0 %v3106, 121
  %v3449 = vpop.permute.xlu0 %3448
  %v3453 = vsel %vm120, %v3444, 0
  %v3456 = vsel %vm120, %v3445, 0
  %3458 = vmatpush.bf16.msra.mxu0 0
  %3459 = vmatpush.bf16.msra.mxu0 0
  %3460 = vmatpush.bf16.msra.mxu0 0
  %3461 = vmatpush.bf16.msra.mxu0 0
  %3462 = vmatpush.bf16.msra.mxu0 0
  %3463 = vmatpush.bf16.msra.mxu0 0
  %3464 = vmatpush.bf16.msra.mxu0 %v3449
  %3465 = vmatpush.bf16.msra.mxu0 %v3447
  %3466 = vmatmul.bf16.gmra.mxu0 %v3453
  %v3467 = vpop.f32.mrf.mxu0
  %v3468 = vadd.f32 0.0, %v3467
  %v3469 = vpop.f32.mrf.mxu0
  %v3470 = vadd.f32 0.0, %v3469
  %3471 = vmatmul.bf16.gmra.mxu0 %v3456
  %v3472 = vpop.f32.mrf.mxu0
  %v3473 = vadd.f32 0.0, %v3472
  %v3474 = vpop.f32.mrf.mxu0
  %v3475 = vadd.f32 0.0, %v3474
  %3476 = vdwg.mxu0
  %v3477 = vadd.f32 %v3428, %v3468
  %v3478 = vadd.f32 %v3429, %v3470
  %v3479 = vadd.f32 %v3430, %v3473
  %v3480 = vadd.f32 %v3431, %v3475
  %v3481 = vld [vmem:[%s500] sm:$0xf]
  %v3482 = vld [vmem:[%s500 + $0x4] sm:$0xf]
  %v3483 = vld [vmem:[%s500 + $0x8] sm:$0xf]
  %v3484 = vld [vmem:[%s500 + $0xc] sm:$0xf]
  %v3489 = vunpack.c.l.b16 %v3481
  %v3490 = vunpack.c.l.b16 %v3482
  %v3491 = vunpack.c.l.b16 %v3483
  %v3492 = vunpack.c.l.b16 %v3484
  %v3493 = vpack.c.b16 %v3490, %v3489
  %v3494 = vpack.c.b16 %v3492, %v3491
  %3495 = vrot.lane.b32.xlu0 %v3105, 120
  %v3496 = vpop.permute.xlu0 %3495
  %3497 = vrot.lane.b32.xlu0 %v3106, 120
  %v3498 = vpop.permute.xlu0 %3497
  %v3502 = vsel %vm120, %v3493, 0
  %v3505 = vsel %vm120, %v3494, 0
  %3507 = vmatpush.bf16.msra.mxu0 0
  %3508 = vmatpush.bf16.msra.mxu0 0
  %3509 = vmatpush.bf16.msra.mxu0 0
  %3510 = vmatpush.bf16.msra.mxu0 0
  %3511 = vmatpush.bf16.msra.mxu0 0
  %3512 = vmatpush.bf16.msra.mxu0 0
  %3513 = vmatpush.bf16.msra.mxu0 %v3498
  %3514 = vmatpush.bf16.msra.mxu0 %v3496
  %3515 = vmatmul.bf16.gmra.mxu0 %v3502
  %v3516 = vpop.f32.mrf.mxu0
  %v3517 = vadd.f32 0.0, %v3516
  %v3518 = vpop.f32.mrf.mxu0
  %v3519 = vadd.f32 0.0, %v3518
  %3520 = vmatmul.bf16.gmra.mxu0 %v3505
  %v3521 = vpop.f32.mrf.mxu0
  %v3522 = vadd.f32 0.0, %v3521
  %v3523 = vpop.f32.mrf.mxu0
  %v3524 = vadd.f32 0.0, %v3523
  %3525 = vdwg.mxu0
  %v3526 = vadd.f32 %v3477, %v3517
  %v3527 = vadd.f32 %v3478, %v3519
  %v3528 = vadd.f32 %v3479, %v3522
  %v3529 = vadd.f32 %v3480, %v3524
  %v3530 = vmax.f32 %v3526, 0.0
  %v3531 = vmax.f32 %v3527, 0.0
  %v3532 = vmax.f32 %v3528, 0.0
  %v3533 = vmax.f32 %v3529, 0.0
  %v3534 = vmul.f32 %v3530, %v52
  %v3535 = vmul.f32 %v3531, %v53
  %v3536 = vmul.f32 %v3532, %v54
  %v3537 = vmul.f32 %v3533, %v55
  %v3538 = vld [vmem:[%s1561] sm:$0xff]
  %v3539 = vld [vmem:[%s1561 + $0x8] sm:$0xff]
  %v3540 = vld [vmem:[%s1561 + $0x10] sm:$0xff]
  %v3541 = vld [vmem:[%s1561 + $0x18] sm:$0xff]
  %v3542 = vadd.f32 %v3534, %v3538
  %v3543 = vadd.f32 %v3535, %v3539
  %v3544 = vadd.f32 %v3536, %v3540
  %v3545 = vadd.f32 %v3537, %v3541
  %3546 = vst.msk [vmem:[%s1561] sm:$0xff] %vm60, %v3542
  %3547 = vst.msk [vmem:[%s1561 + $0x8] sm:$0xff] %vm60, %v3543
  %3548 = vst.msk [vmem:[%s1561 + $0x10] sm:$0xff] %vm60, %v3544
  %3549 = vst.msk [vmem:[%s1561 + $0x18] sm:$0xff] %vm60, %v3545
  %v3550 = vpack.c.bf16 %v3542, %v3542
  %v3551 = vpack.c.bf16 %v3543, %v3543
  %v3552 = vpack.c.bf16 %v3544, %v3544
  %v3553 = vpack.c.bf16 %v3545, %v3545
  %3558 = vrot.lane.b32.xlu0 %v3550, 4
  %v3559 = vpop.permute.xlu0 %3558
  %3560 = vrot.lane.b32.xlu0 %v3551, 4
  %v3561 = vpop.permute.xlu0 %3560
  %3562 = vrot.lane.b32.xlu0 %v3552, 4
  %v3563 = vpop.permute.xlu0 %3562
  %3564 = vrot.lane.b32.xlu0 %v3553, 4
  %v3565 = vpop.permute.xlu0 %3564
  %3570 = vst.msk [vmem:[#allocation2] sm:$0xf] %vm85, %v3559
  %3571 = vst.msk [vmem:[#allocation2 + $0x4] sm:$0xf] %vm85, %v3561
  %3572 = vst.msk [vmem:[#allocation2 + $0x8] sm:$0xf] %vm85, %v3563
  %3573 = vst.msk [vmem:[#allocation2 + $0xc] sm:$0xf] %vm85, %v3565
  %v3574 = vld [vmem:[%s1] sm:$0xf]
  %v3575 = vld [vmem:[%s1 + $0x4] sm:$0xf]
  %v3576 = vld [vmem:[%s1 + $0x8] sm:$0xf]
  %v3577 = vld [vmem:[%s1 + $0xc] sm:$0xf]
  %v3578 = vld [vmem:[#allocation2] sm:$0xf]
  %v3579 = vld [vmem:[#allocation2 + $0x4] sm:$0xf]
  %v3580 = vld [vmem:[#allocation2 + $0x8] sm:$0xf]
  %v3581 = vld [vmem:[#allocation2 + $0xc] sm:$0xf]
  %v3586 = vunpack.c.l.b16 %v3574
  %v3587 = vunpack.c.l.b16 %v3575
  %v3588 = vunpack.c.l.b16 %v3576
  %v3589 = vunpack.c.l.b16 %v3577
  %v3590 = vpack.c.b16 %v3587, %v3586
  %v3591 = vpack.c.b16 %v3589, %v3588
  %v3596 = vunpack.c.l.b16 %v3578
  %v3597 = vunpack.c.l.b16 %v3579
  %v3598 = vunpack.c.l.b16 %v3580
  %v3599 = vunpack.c.l.b16 %v3581
  %v3600 = vpack.c.b16 %v3597, %v3596
  %v3601 = vpack.c.b16 %v3599, %v3598
  %v3605 = vsel %vm120, %v3590, 0
  %v3608 = vsel %vm120, %v3591, 0
  %3610 = vmatpush.bf16.msra.mxu0 0
  %3611 = vmatpush.bf16.msra.mxu0 0
  %3612 = vmatpush.bf16.msra.mxu0 0
  %3613 = vmatpush.bf16.msra.mxu0 0
  %3614 = vmatpush.bf16.msra.mxu0 0
  %3615 = vmatpush.bf16.msra.mxu0 0
  %3616 = vmatpush.bf16.msra.mxu0 %v3601
  %3617 = vmatpush.bf16.msra.mxu0 %v3600
  %3618 = vmatmul.bf16.gmra.mxu0 %v3605
  %v3619 = vpop.f32.mrf.mxu0
  %v3620 = vadd.f32 0.0, %v3619
  %v3621 = vpop.f32.mrf.mxu0
  %v3622 = vadd.f32 0.0, %v3621
  %3623 = vmatmul.bf16.gmra.mxu0 %v3608
  %v3624 = vpop.f32.mrf.mxu0
  %v3625 = vadd.f32 0.0, %v3624
  %v3626 = vpop.f32.mrf.mxu0
  %v3627 = vadd.f32 0.0, %v3626
  %3628 = vdwg.mxu0
  %v3629 = vadd.f32 %v35, %v3620
  %v3630 = vadd.f32 %v40, %v3622
  %v3631 = vadd.f32 %v45, %v3625
  %v3632 = vadd.f32 %v50, %v3627
  %v3633 = vld [vmem:[%s150] sm:$0xf]
  %v3634 = vld [vmem:[%s150 + $0x4] sm:$0xf]
  %v3635 = vld [vmem:[%s150 + $0x8] sm:$0xf]
  %v3636 = vld [vmem:[%s150 + $0xc] sm:$0xf]
  %v3641 = vunpack.c.l.b16 %v3633
  %v3642 = vunpack.c.l.b16 %v3634
  %v3643 = vunpack.c.l.b16 %v3635
  %v3644 = vunpack.c.l.b16 %v3636
  %v3645 = vpack.c.b16 %v3642, %v3641
  %v3646 = vpack.c.b16 %v3644, %v3643
  %3647 = vrot.lane.b32.xlu0 %v3600, 127
  %v3648 = vpop.permute.xlu0 %3647
  %3649 = vrot.lane.b32.xlu0 %v3601, 127
  %v3650 = vpop.permute.xlu0 %3649
  %v3654 = vsel %vm120, %v3645, 0
  %v3657 = vsel %vm120, %v3646, 0
  %3659 = vmatpush.bf16.msra.mxu0 0
  %3660 = vmatpush.bf16.msra.mxu0 0
  %3661 = vmatpush.bf16.msra.mxu0 0
  %3662 = vmatpush.bf16.msra.mxu0 0
  %3663 = vmatpush.bf16.msra.mxu0 0
  %3664 = vmatpush.bf16.msra.mxu0 0
  %3665 = vmatpush.bf16.msra.mxu0 %v3650
  %3666 = vmatpush.bf16.msra.mxu0 %v3648
  %3667 = vmatmul.bf16.gmra.mxu0 %v3654
  %v3668 = vpop.f32.mrf.mxu0
  %v3669 = vadd.f32 0.0, %v3668
  %v3670 = vpop.f32.mrf.mxu0
  %v3671 = vadd.f32 0.0, %v3670
  %3672 = vmatmul.bf16.gmra.mxu0 %v3657
  %v3673 = vpop.f32.mrf.mxu0
  %v3674 = vadd.f32 0.0, %v3673
  %v3675 = vpop.f32.mrf.mxu0
  %v3676 = vadd.f32 0.0, %v3675
  %3677 = vdwg.mxu0
  %v3678 = vadd.f32 %v3629, %v3669
  %v3679 = vadd.f32 %v3630, %v3671
  %v3680 = vadd.f32 %v3631, %v3674
  %v3681 = vadd.f32 %v3632, %v3676
  %v3682 = vld [vmem:[%s200] sm:$0xf]
  %v3683 = vld [vmem:[%s200 + $0x4] sm:$0xf]
  %v3684 = vld [vmem:[%s200 + $0x8] sm:$0xf]
  %v3685 = vld [vmem:[%s200 + $0xc] sm:$0xf]
  %v3690 = vunpack.c.l.b16 %v3682
  %v3691 = vunpack.c.l.b16 %v3683
  %v3692 = vunpack.c.l.b16 %v3684
  %v3693 = vunpack.c.l.b16 %v3685
  %v3694 = vpack.c.b16 %v3691, %v3690
  %v3695 = vpack.c.b16 %v3693, %v3692
  %3696 = vrot.lane.b32.xlu0 %v3600, 126
  %v3697 = vpop.permute.xlu0 %3696
  %3698 = vrot.lane.b32.xlu0 %v3601, 126
  %v3699 = vpop.permute.xlu0 %3698
  %v3703 = vsel %vm120, %v3694, 0
  %v3706 = vsel %vm120, %v3695, 0
  %3708 = vmatpush.bf16.msra.mxu0 0
  %3709 = vmatpush.bf16.msra.mxu0 0
  %3710 = vmatpush.bf16.msra.mxu0 0
  %3711 = vmatpush.bf16.msra.mxu0 0
  %3712 = vmatpush.bf16.msra.mxu0 0
  %3713 = vmatpush.bf16.msra.mxu0 0
  %3714 = vmatpush.bf16.msra.mxu0 %v3699
  %3715 = vmatpush.bf16.msra.mxu0 %v3697
  %3716 = vmatmul.bf16.gmra.mxu0 %v3703
  %v3717 = vpop.f32.mrf.mxu0
  %v3718 = vadd.f32 0.0, %v3717
  %v3719 = vpop.f32.mrf.mxu0
  %v3720 = vadd.f32 0.0, %v3719
  %3721 = vmatmul.bf16.gmra.mxu0 %v3706
  %v3722 = vpop.f32.mrf.mxu0
  %v3723 = vadd.f32 0.0, %v3722
  %v3724 = vpop.f32.mrf.mxu0
  %v3725 = vadd.f32 0.0, %v3724
  %3726 = vdwg.mxu0
  %v3727 = vadd.f32 %v3678, %v3718
  %v3728 = vadd.f32 %v3679, %v3720
  %v3729 = vadd.f32 %v3680, %v3723
  %v3730 = vadd.f32 %v3681, %v3725
  %v3731 = vld [vmem:[%s250] sm:$0xf]
  %v3732 = vld [vmem:[%s250 + $0x4] sm:$0xf]
  %v3733 = vld [vmem:[%s250 + $0x8] sm:$0xf]
  %v3734 = vld [vmem:[%s250 + $0xc] sm:$0xf]
  %v3739 = vunpack.c.l.b16 %v3731
  %v3740 = vunpack.c.l.b16 %v3732
  %v3741 = vunpack.c.l.b16 %v3733
  %v3742 = vunpack.c.l.b16 %v3734
  %v3743 = vpack.c.b16 %v3740, %v3739
  %v3744 = vpack.c.b16 %v3742, %v3741
  %3745 = vrot.lane.b32.xlu0 %v3600, 125
  %v3746 = vpop.permute.xlu0 %3745
  %3747 = vrot.lane.b32.xlu0 %v3601, 125
  %v3748 = vpop.permute.xlu0 %3747
  %v3752 = vsel %vm120, %v3743, 0
  %v3755 = vsel %vm120, %v3744, 0
  %3757 = vmatpush.bf16.msra.mxu0 0
  %3758 = vmatpush.bf16.msra.mxu0 0
  %3759 = vmatpush.bf16.msra.mxu0 0
  %3760 = vmatpush.bf16.msra.mxu0 0
  %3761 = vmatpush.bf16.msra.mxu0 0
  %3762 = vmatpush.bf16.msra.mxu0 0
  %3763 = vmatpush.bf16.msra.mxu0 %v3748
  %3764 = vmatpush.bf16.msra.mxu0 %v3746
  %3765 = vmatmul.bf16.gmra.mxu0 %v3752
  %v3766 = vpop.f32.mrf.mxu0
  %v3767 = vadd.f32 0.0, %v3766
  %v3768 = vpop.f32.mrf.mxu0
  %v3769 = vadd.f32 0.0, %v3768
  %3770 = vmatmul.bf16.gmra.mxu0 %v3755
  %v3771 = vpop.f32.mrf.mxu0
  %v3772 = vadd.f32 0.0, %v3771
  %v3773 = vpop.f32.mrf.mxu0
  %v3774 = vadd.f32 0.0, %v3773
  %3775 = vdwg.mxu0
  %v3776 = vadd.f32 %v3727, %v3767
  %v3777 = vadd.f32 %v3728, %v3769
  %v3778 = vadd.f32 %v3729, %v3772
  %v3779 = vadd.f32 %v3730, %v3774
  %v3780 = vld [vmem:[%s300] sm:$0xf]
  %v3781 = vld [vmem:[%s300 + $0x4] sm:$0xf]
  %v3782 = vld [vmem:[%s300 + $0x8] sm:$0xf]
  %v3783 = vld [vmem:[%s300 + $0xc] sm:$0xf]
  %v3788 = vunpack.c.l.b16 %v3780
  %v3789 = vunpack.c.l.b16 %v3781
  %v3790 = vunpack.c.l.b16 %v3782
  %v3791 = vunpack.c.l.b16 %v3783
  %v3792 = vpack.c.b16 %v3789, %v3788
  %v3793 = vpack.c.b16 %v3791, %v3790
  %3794 = vrot.lane.b32.xlu0 %v3600, 124
  %v3795 = vpop.permute.xlu0 %3794
  %3796 = vrot.lane.b32.xlu0 %v3601, 124
  %v3797 = vpop.permute.xlu0 %3796
  %v3801 = vsel %vm120, %v3792, 0
  %v3804 = vsel %vm120, %v3793, 0
  %3806 = vmatpush.bf16.msra.mxu0 0
  %3807 = vmatpush.bf16.msra.mxu0 0
  %3808 = vmatpush.bf16.msra.mxu0 0
  %3809 = vmatpush.bf16.msra.mxu0 0
  %3810 = vmatpush.bf16.msra.mxu0 0
  %3811 = vmatpush.bf16.msra.mxu0 0
  %3812 = vmatpush.bf16.msra.mxu0 %v3797
  %3813 = vmatpush.bf16.msra.mxu0 %v3795
  %3814 = vmatmul.bf16.gmra.mxu0 %v3801
  %v3815 = vpop.f32.mrf.mxu0
  %v3816 = vadd.f32 0.0, %v3815
  %v3817 = vpop.f32.mrf.mxu0
  %v3818 = vadd.f32 0.0, %v3817
  %3819 = vmatmul.bf16.gmra.mxu0 %v3804
  %v3820 = vpop.f32.mrf.mxu0
  %v3821 = vadd.f32 0.0, %v3820
  %v3822 = vpop.f32.mrf.mxu0
  %v3823 = vadd.f32 0.0, %v3822
  %3824 = vdwg.mxu0
  %v3825 = vadd.f32 %v3776, %v3816
  %v3826 = vadd.f32 %v3777, %v3818
  %v3827 = vadd.f32 %v3778, %v3821
  %v3828 = vadd.f32 %v3779, %v3823
  %v3829 = vld [vmem:[%s350] sm:$0xf]
  %v3830 = vld [vmem:[%s350 + $0x4] sm:$0xf]
  %v3831 = vld [vmem:[%s350 + $0x8] sm:$0xf]
  %v3832 = vld [vmem:[%s350 + $0xc] sm:$0xf]
  %v3837 = vunpack.c.l.b16 %v3829
  %v3838 = vunpack.c.l.b16 %v3830
  %v3839 = vunpack.c.l.b16 %v3831
  %v3840 = vunpack.c.l.b16 %v3832
  %v3841 = vpack.c.b16 %v3838, %v3837
  %v3842 = vpack.c.b16 %v3840, %v3839
  %3843 = vrot.lane.b32.xlu0 %v3600, 123
  %v3844 = vpop.permute.xlu0 %3843
  %3845 = vrot.lane.b32.xlu0 %v3601, 123
  %v3846 = vpop.permute.xlu0 %3845
  %v3850 = vsel %vm120, %v3841, 0
  %v3853 = vsel %vm120, %v3842, 0
  %3855 = vmatpush.bf16.msra.mxu0 0
  %3856 = vmatpush.bf16.msra.mxu0 0
  %3857 = vmatpush.bf16.msra.mxu0 0
  %3858 = vmatpush.bf16.msra.mxu0 0
  %3859 = vmatpush.bf16.msra.mxu0 0
  %3860 = vmatpush.bf16.msra.mxu0 0
  %3861 = vmatpush.bf16.msra.mxu0 %v3846
  %3862 = vmatpush.bf16.msra.mxu0 %v3844
  %3863 = vmatmul.bf16.gmra.mxu0 %v3850
  %v3864 = vpop.f32.mrf.mxu0
  %v3865 = vadd.f32 0.0, %v3864
  %v3866 = vpop.f32.mrf.mxu0
  %v3867 = vadd.f32 0.0, %v3866
  %3868 = vmatmul.bf16.gmra.mxu0 %v3853
  %v3869 = vpop.f32.mrf.mxu0
  %v3870 = vadd.f32 0.0, %v3869
  %v3871 = vpop.f32.mrf.mxu0
  %v3872 = vadd.f32 0.0, %v3871
  %3873 = vdwg.mxu0
  %v3874 = vadd.f32 %v3825, %v3865
  %v3875 = vadd.f32 %v3826, %v3867
  %v3876 = vadd.f32 %v3827, %v3870
  %v3877 = vadd.f32 %v3828, %v3872
  %v3878 = vld [vmem:[%s400] sm:$0xf]
  %v3879 = vld [vmem:[%s400 + $0x4] sm:$0xf]
  %v3880 = vld [vmem:[%s400 + $0x8] sm:$0xf]
  %v3881 = vld [vmem:[%s400 + $0xc] sm:$0xf]
  %v3886 = vunpack.c.l.b16 %v3878
  %v3887 = vunpack.c.l.b16 %v3879
  %v3888 = vunpack.c.l.b16 %v3880
  %v3889 = vunpack.c.l.b16 %v3881
  %v3890 = vpack.c.b16 %v3887, %v3886
  %v3891 = vpack.c.b16 %v3889, %v3888
  %3892 = vrot.lane.b32.xlu0 %v3600, 122
  %v3893 = vpop.permute.xlu0 %3892
  %3894 = vrot.lane.b32.xlu0 %v3601, 122
  %v3895 = vpop.permute.xlu0 %3894
  %v3899 = vsel %vm120, %v3890, 0
  %v3902 = vsel %vm120, %v3891, 0
  %3904 = vmatpush.bf16.msra.mxu0 0
  %3905 = vmatpush.bf16.msra.mxu0 0
  %3906 = vmatpush.bf16.msra.mxu0 0
  %3907 = vmatpush.bf16.msra.mxu0 0
  %3908 = vmatpush.bf16.msra.mxu0 0
  %3909 = vmatpush.bf16.msra.mxu0 0
  %3910 = vmatpush.bf16.msra.mxu0 %v3895
  %3911 = vmatpush.bf16.msra.mxu0 %v3893
  %3912 = vmatmul.bf16.gmra.mxu0 %v3899
  %v3913 = vpop.f32.mrf.mxu0
  %v3914 = vadd.f32 0.0, %v3913
  %v3915 = vpop.f32.mrf.mxu0
  %v3916 = vadd.f32 0.0, %v3915
  %3917 = vmatmul.bf16.gmra.mxu0 %v3902
  %v3918 = vpop.f32.mrf.mxu0
  %v3919 = vadd.f32 0.0, %v3918
  %v3920 = vpop.f32.mrf.mxu0
  %v3921 = vadd.f32 0.0, %v3920
  %3922 = vdwg.mxu0
  %v3923 = vadd.f32 %v3874, %v3914
  %v3924 = vadd.f32 %v3875, %v3916
  %v3925 = vadd.f32 %v3876, %v3919
  %v3926 = vadd.f32 %v3877, %v3921
  %v3927 = vld [vmem:[%s450] sm:$0xf]
  %v3928 = vld [vmem:[%s450 + $0x4] sm:$0xf]
  %v3929 = vld [vmem:[%s450 + $0x8] sm:$0xf]
  %v3930 = vld [vmem:[%s450 + $0xc] sm:$0xf]
  %v3935 = vunpack.c.l.b16 %v3927
  %v3936 = vunpack.c.l.b16 %v3928
  %v3937 = vunpack.c.l.b16 %v3929
  %v3938 = vunpack.c.l.b16 %v3930
  %v3939 = vpack.c.b16 %v3936, %v3935
  %v3940 = vpack.c.b16 %v3938, %v3937
  %3941 = vrot.lane.b32.xlu0 %v3600, 121
  %v3942 = vpop.permute.xlu0 %3941
  %3943 = vrot.lane.b32.xlu0 %v3601, 121
  %v3944 = vpop.permute.xlu0 %3943
  %v3948 = vsel %vm120, %v3939, 0
  %v3951 = vsel %vm120, %v3940, 0
  %3953 = vmatpush.bf16.msra.mxu0 0
  %3954 = vmatpush.bf16.msra.mxu0 0
  %3955 = vmatpush.bf16.msra.mxu0 0
  %3956 = vmatpush.bf16.msra.mxu0 0
  %3957 = vmatpush.bf16.msra.mxu0 0
  %3958 = vmatpush.bf16.msra.mxu0 0
  %3959 = vmatpush.bf16.msra.mxu0 %v3944
  %3960 = vmatpush.bf16.msra.mxu0 %v3942
  %3961 = vmatmul.bf16.gmra.mxu0 %v3948
  %v3962 = vpop.f32.mrf.mxu0
  %v3963 = vadd.f32 0.0, %v3962
  %v3964 = vpop.f32.mrf.mxu0
  %v3965 = vadd.f32 0.0, %v3964
  %3966 = vmatmul.bf16.gmra.mxu0 %v3951
  %v3967 = vpop.f32.mrf.mxu0
  %v3968 = vadd.f32 0.0, %v3967
  %v3969 = vpop.f32.mrf.mxu0
  %v3970 = vadd.f32 0.0, %v3969
  %3971 = vdwg.mxu0
  %v3972 = vadd.f32 %v3923, %v3963
  %v3973 = vadd.f32 %v3924, %v3965
  %v3974 = vadd.f32 %v3925, %v3968
  %v3975 = vadd.f32 %v3926, %v3970
  %v3976 = vld [vmem:[%s500] sm:$0xf]
  %v3977 = vld [vmem:[%s500 + $0x4] sm:$0xf]
  %v3978 = vld [vmem:[%s500 + $0x8] sm:$0xf]
  %v3979 = vld [vmem:[%s500 + $0xc] sm:$0xf]
  %v3984 = vunpack.c.l.b16 %v3976
  %v3985 = vunpack.c.l.b16 %v3977
  %v3986 = vunpack.c.l.b16 %v3978
  %v3987 = vunpack.c.l.b16 %v3979
  %v3988 = vpack.c.b16 %v3985, %v3984
  %v3989 = vpack.c.b16 %v3987, %v3986
  %3990 = vrot.lane.b32.xlu0 %v3600, 120
  %v3991 = vpop.permute.xlu0 %3990
  %3992 = vrot.lane.b32.xlu0 %v3601, 120
  %v3993 = vpop.permute.xlu0 %3992
  %v3997 = vsel %vm120, %v3988, 0
  %v4000 = vsel %vm120, %v3989, 0
  %4002 = vmatpush.bf16.msra.mxu0 0
  %4003 = vmatpush.bf16.msra.mxu0 0
  %4004 = vmatpush.bf16.msra.mxu0 0
  %4005 = vmatpush.bf16.msra.mxu0 0
  %4006 = vmatpush.bf16.msra.mxu0 0
  %4007 = vmatpush.bf16.msra.mxu0 0
  %4008 = vmatpush.bf16.msra.mxu0 %v3993
  %4009 = vmatpush.bf16.msra.mxu0 %v3991
  %4010 = vmatmul.bf16.gmra.mxu0 %v3997
  %v4011 = vpop.f32.mrf.mxu0
  %v4012 = vadd.f32 0.0, %v4011
  %v4013 = vpop.f32.mrf.mxu0
  %v4014 = vadd.f32 0.0, %v4013
  %4015 = vmatmul.bf16.gmra.mxu0 %v4000
  %v4016 = vpop.f32.mrf.mxu0
  %v4017 = vadd.f32 0.0, %v4016
  %v4018 = vpop.f32.mrf.mxu0
  %v4019 = vadd.f32 0.0, %v4018
  %4020 = vdwg.mxu0
  %v4021 = vadd.f32 %v3972, %v4012
  %v4022 = vadd.f32 %v3973, %v4014
  %v4023 = vadd.f32 %v3974, %v4017
  %v4024 = vadd.f32 %v3975, %v4019
  %v4025 = vmax.f32 %v4021, 0.0
  %v4026 = vmax.f32 %v4022, 0.0
  %v4027 = vmax.f32 %v4023, 0.0
  %v4028 = vmax.f32 %v4024, 0.0
  %v4029 = vmul.f32 %v4025, %v52
  %v4030 = vmul.f32 %v4026, %v53
  %v4031 = vmul.f32 %v4027, %v54
  %v4032 = vmul.f32 %v4028, %v55
  %v4033 = vld [vmem:[%s1064] sm:$0xff]
  %v4034 = vld [vmem:[%s1064 + $0x8] sm:$0xff]
  %v4035 = vld [vmem:[%s1064 + $0x10] sm:$0xff]
  %v4036 = vld [vmem:[%s1064 + $0x18] sm:$0xff]
  %v4037 = vadd.f32 %v4029, %v4033
  %v4038 = vadd.f32 %v4030, %v4034
  %v4039 = vadd.f32 %v4031, %v4035
  %v4040 = vadd.f32 %v4032, %v4036
  %4041 = vst.msk [vmem:[%s1064] sm:$0xff] %vm60, %v4037
  %4042 = vst.msk [vmem:[%s1064 + $0x8] sm:$0xff] %vm60, %v4038
  %4043 = vst.msk [vmem:[%s1064 + $0x10] sm:$0xff] %vm60, %v4039
  %4044 = vst.msk [vmem:[%s1064 + $0x18] sm:$0xff] %vm60, %v4040
  %v4045 = vpack.c.bf16 %v4037, %v4037
  %v4046 = vpack.c.bf16 %v4038, %v4038
  %v4047 = vpack.c.bf16 %v4039, %v4039
  %v4048 = vpack.c.bf16 %v4040, %v4040
  %4053 = vrot.lane.b32.xlu0 %v4045, 4
  %v4054 = vpop.permute.xlu0 %4053
  %4055 = vrot.lane.b32.xlu0 %v4046, 4
  %v4056 = vpop.permute.xlu0 %4055
  %4057 = vrot.lane.b32.xlu0 %v4047, 4
  %v4058 = vpop.permute.xlu0 %4057
  %4059 = vrot.lane.b32.xlu0 %v4048, 4
  %v4060 = vpop.permute.xlu0 %4059
  %4065 = vst.msk [vmem:[#allocation2] sm:$0xf] %vm85, %v4054
  %4066 = vst.msk [vmem:[#allocation2 + $0x4] sm:$0xf] %vm85, %v4056
  %4067 = vst.msk [vmem:[#allocation2 + $0x8] sm:$0xf] %vm85, %v4058
  %4068 = vst.msk [vmem:[#allocation2 + $0xc] sm:$0xf] %vm85, %v4060
  %v4069 = vld [vmem:[%s1] sm:$0xf]
  %v4070 = vld [vmem:[%s1 + $0x4] sm:$0xf]
  %v4071 = vld [vmem:[%s1 + $0x8] sm:$0xf]
  %v4072 = vld [vmem:[%s1 + $0xc] sm:$0xf]
  %v4073 = vld [vmem:[#allocation2] sm:$0xf]
  %v4074 = vld [vmem:[#allocation2 + $0x4] sm:$0xf]
  %v4075 = vld [vmem:[#allocation2 + $0x8] sm:$0xf]
  %v4076 = vld [vmem:[#allocation2 + $0xc] sm:$0xf]
  %v4081 = vunpack.c.l.b16 %v4069
  %v4082 = vunpack.c.l.b16 %v4070
  %v4083 = vunpack.c.l.b16 %v4071
  %v4084 = vunpack.c.l.b16 %v4072
  %v4085 = vpack.c.b16 %v4082, %v4081
  %v4086 = vpack.c.b16 %v4084, %v4083
  %v4091 = vunpack.c.l.b16 %v4073
  %v4092 = vunpack.c.l.b16 %v4074
  %v4093 = vunpack.c.l.b16 %v4075
  %v4094 = vunpack.c.l.b16 %v4076
  %v4095 = vpack.c.b16 %v4092, %v4091
  %v4096 = vpack.c.b16 %v4094, %v4093
  %v4100 = vsel %vm120, %v4085, 0
  %v4103 = vsel %vm120, %v4086, 0
  %4105 = vmatpush.bf16.msra.mxu0 0
  %4106 = vmatpush.bf16.msra.mxu0 0
  %4107 = vmatpush.bf16.msra.mxu0 0
  %4108 = vmatpush.bf16.msra.mxu0 0
  %4109 = vmatpush.bf16.msra.mxu0 0
  %4110 = vmatpush.bf16.msra.mxu0 0
  %4111 = vmatpush.bf16.msra.mxu0 %v4096
  %4112 = vmatpush.bf16.msra.mxu0 %v4095
  %4113 = vmatmul.bf16.gmra.mxu0 %v4100
  %v4114 = vpop.f32.mrf.mxu0
  %v4115 = vadd.f32 0.0, %v4114
  %v4116 = vpop.f32.mrf.mxu0
  %v4117 = vadd.f32 0.0, %v4116
  %4118 = vmatmul.bf16.gmra.mxu0 %v4103
  %v4119 = vpop.f32.mrf.mxu0
  %v4120 = vadd.f32 0.0, %v4119
  %v4121 = vpop.f32.mrf.mxu0
  %v4122 = vadd.f32 0.0, %v4121
  %4123 = vdwg.mxu0
  %v4124 = vadd.f32 %v35, %v4115
  %v4125 = vadd.f32 %v40, %v4117
  %v4126 = vadd.f32 %v45, %v4120
  %v4127 = vadd.f32 %v50, %v4122
  %v4128 = vld [vmem:[%s150] sm:$0xf]
  %v4129 = vld [vmem:[%s150 + $0x4] sm:$0xf]
  %v4130 = vld [vmem:[%s150 + $0x8] sm:$0xf]
  %v4131 = vld [vmem:[%s150 + $0xc] sm:$0xf]
  %v4136 = vunpack.c.l.b16 %v4128
  %v4137 = vunpack.c.l.b16 %v4129
  %v4138 = vunpack.c.l.b16 %v4130
  %v4139 = vunpack.c.l.b16 %v4131
  %v4140 = vpack.c.b16 %v4137, %v4136
  %v4141 = vpack.c.b16 %v4139, %v4138
  %4142 = vrot.lane.b32.xlu0 %v4095, 127
  %v4143 = vpop.permute.xlu0 %4142
  %4144 = vrot.lane.b32.xlu0 %v4096, 127
  %v4145 = vpop.permute.xlu0 %4144
  %v4149 = vsel %vm120, %v4140, 0
  %v4152 = vsel %vm120, %v4141, 0
  %4154 = vmatpush.bf16.msra.mxu0 0
  %4155 = vmatpush.bf16.msra.mxu0 0
  %4156 = vmatpush.bf16.msra.mxu0 0
  %4157 = vmatpush.bf16.msra.mxu0 0
  %4158 = vmatpush.bf16.msra.mxu0 0
  %4159 = vmatpush.bf16.msra.mxu0 0
  %4160 = vmatpush.bf16.msra.mxu0 %v4145
  %4161 = vmatpush.bf16.msra.mxu0 %v4143
  %4162 = vmatmul.bf16.gmra.mxu0 %v4149
  %v4163 = vpop.f32.mrf.mxu0
  %v4164 = vadd.f32 0.0, %v4163
  %v4165 = vpop.f32.mrf.mxu0
  %v4166 = vadd.f32 0.0, %v4165
  %4167 = vmatmul.bf16.gmra.mxu0 %v4152
  %v4168 = vpop.f32.mrf.mxu0
  %v4169 = vadd.f32 0.0, %v4168
  %v4170 = vpop.f32.mrf.mxu0
  %v4171 = vadd.f32 0.0, %v4170
  %4172 = vdwg.mxu0
  %v4173 = vadd.f32 %v4124, %v4164
  %v4174 = vadd.f32 %v4125, %v4166
  %v4175 = vadd.f32 %v4126, %v4169
  %v4176 = vadd.f32 %v4127, %v4171
  %v4177 = vld [vmem:[%s200] sm:$0xf]
  %v4178 = vld [vmem:[%s200 + $0x4] sm:$0xf]
  %v4179 = vld [vmem:[%s200 + $0x8] sm:$0xf]
  %v4180 = vld [vmem:[%s200 + $0xc] sm:$0xf]
  %v4185 = vunpack.c.l.b16 %v4177
  %v4186 = vunpack.c.l.b16 %v4178
  %v4187 = vunpack.c.l.b16 %v4179
  %v4188 = vunpack.c.l.b16 %v4180
  %v4189 = vpack.c.b16 %v4186, %v4185
  %v4190 = vpack.c.b16 %v4188, %v4187
  %4191 = vrot.lane.b32.xlu0 %v4095, 126
  %v4192 = vpop.permute.xlu0 %4191
  %4193 = vrot.lane.b32.xlu0 %v4096, 126
  %v4194 = vpop.permute.xlu0 %4193
  %v4198 = vsel %vm120, %v4189, 0
  %v4201 = vsel %vm120, %v4190, 0
  %4203 = vmatpush.bf16.msra.mxu0 0
  %4204 = vmatpush.bf16.msra.mxu0 0
  %4205 = vmatpush.bf16.msra.mxu0 0
  %4206 = vmatpush.bf16.msra.mxu0 0
  %4207 = vmatpush.bf16.msra.mxu0 0
  %4208 = vmatpush.bf16.msra.mxu0 0
  %4209 = vmatpush.bf16.msra.mxu0 %v4194
  %4210 = vmatpush.bf16.msra.mxu0 %v4192
  %4211 = vmatmul.bf16.gmra.mxu0 %v4198
  %v4212 = vpop.f32.mrf.mxu0
  %v4213 = vadd.f32 0.0, %v4212
  %v4214 = vpop.f32.mrf.mxu0
  %v4215 = vadd.f32 0.0, %v4214
  %4216 = vmatmul.bf16.gmra.mxu0 %v4201
  %v4217 = vpop.f32.mrf.mxu0
  %v4218 = vadd.f32 0.0, %v4217
  %v4219 = vpop.f32.mrf.mxu0
  %v4220 = vadd.f32 0.0, %v4219
  %4221 = vdwg.mxu0
  %v4222 = vadd.f32 %v4173, %v4213
  %v4223 = vadd.f32 %v4174, %v4215
  %v4224 = vadd.f32 %v4175, %v4218
  %v4225 = vadd.f32 %v4176, %v4220
  %v4226 = vld [vmem:[%s250] sm:$0xf]
  %v4227 = vld [vmem:[%s250 + $0x4] sm:$0xf]
  %v4228 = vld [vmem:[%s250 + $0x8] sm:$0xf]
  %v4229 = vld [vmem:[%s250 + $0xc] sm:$0xf]
  %v4234 = vunpack.c.l.b16 %v4226
  %v4235 = vunpack.c.l.b16 %v4227
  %v4236 = vunpack.c.l.b16 %v4228
  %v4237 = vunpack.c.l.b16 %v4229
  %v4238 = vpack.c.b16 %v4235, %v4234
  %v4239 = vpack.c.b16 %v4237, %v4236
  %4240 = vrot.lane.b32.xlu0 %v4095, 125
  %v4241 = vpop.permute.xlu0 %4240
  %4242 = vrot.lane.b32.xlu0 %v4096, 125
  %v4243 = vpop.permute.xlu0 %4242
  %v4247 = vsel %vm120, %v4238, 0
  %v4250 = vsel %vm120, %v4239, 0
  %4252 = vmatpush.bf16.msra.mxu0 0
  %4253 = vmatpush.bf16.msra.mxu0 0
  %4254 = vmatpush.bf16.msra.mxu0 0
  %4255 = vmatpush.bf16.msra.mxu0 0
  %4256 = vmatpush.bf16.msra.mxu0 0
  %4257 = vmatpush.bf16.msra.mxu0 0
  %4258 = vmatpush.bf16.msra.mxu0 %v4243
  %4259 = vmatpush.bf16.msra.mxu0 %v4241
  %4260 = vmatmul.bf16.gmra.mxu0 %v4247
  %v4261 = vpop.f32.mrf.mxu0
  %v4262 = vadd.f32 0.0, %v4261
  %v4263 = vpop.f32.mrf.mxu0
  %v4264 = vadd.f32 0.0, %v4263
  %4265 = vmatmul.bf16.gmra.mxu0 %v4250
  %v4266 = vpop.f32.mrf.mxu0
  %v4267 = vadd.f32 0.0, %v4266
  %v4268 = vpop.f32.mrf.mxu0
  %v4269 = vadd.f32 0.0, %v4268
  %4270 = vdwg.mxu0
  %v4271 = vadd.f32 %v4222, %v4262
  %v4272 = vadd.f32 %v4223, %v4264
  %v4273 = vadd.f32 %v4224, %v4267
  %v4274 = vadd.f32 %v4225, %v4269
  %v4275 = vld [vmem:[%s300] sm:$0xf]
  %v4276 = vld [vmem:[%s300 + $0x4] sm:$0xf]
  %v4277 = vld [vmem:[%s300 + $0x8] sm:$0xf]
  %v4278 = vld [vmem:[%s300 + $0xc] sm:$0xf]
  %v4283 = vunpack.c.l.b16 %v4275
  %v4284 = vunpack.c.l.b16 %v4276
  %v4285 = vunpack.c.l.b16 %v4277
  %v4286 = vunpack.c.l.b16 %v4278
  %v4287 = vpack.c.b16 %v4284, %v4283
  %v4288 = vpack.c.b16 %v4286, %v4285
  %4289 = vrot.lane.b32.xlu0 %v4095, 124
  %v4290 = vpop.permute.xlu0 %4289
  %4291 = vrot.lane.b32.xlu0 %v4096, 124
  %v4292 = vpop.permute.xlu0 %4291
  %v4296 = vsel %vm120, %v4287, 0
  %v4299 = vsel %vm120, %v4288, 0
  %4301 = vmatpush.bf16.msra.mxu0 0
  %4302 = vmatpush.bf16.msra.mxu0 0
  %4303 = vmatpush.bf16.msra.mxu0 0
  %4304 = vmatpush.bf16.msra.mxu0 0
  %4305 = vmatpush.bf16.msra.mxu0 0
  %4306 = vmatpush.bf16.msra.mxu0 0
  %4307 = vmatpush.bf16.msra.mxu0 %v4292
  %4308 = vmatpush.bf16.msra.mxu0 %v4290
  %4309 = vmatmul.bf16.gmra.mxu0 %v4296
  %v4310 = vpop.f32.mrf.mxu0
  %v4311 = vadd.f32 0.0, %v4310
  %v4312 = vpop.f32.mrf.mxu0
  %v4313 = vadd.f32 0.0, %v4312
  %4314 = vmatmul.bf16.gmra.mxu0 %v4299
  %v4315 = vpop.f32.mrf.mxu0
  %v4316 = vadd.f32 0.0, %v4315
  %v4317 = vpop.f32.mrf.mxu0
  %v4318 = vadd.f32 0.0, %v4317
  %4319 = vdwg.mxu0
  %v4320 = vadd.f32 %v4271, %v4311
  %v4321 = vadd.f32 %v4272, %v4313
  %v4322 = vadd.f32 %v4273, %v4316
  %v4323 = vadd.f32 %v4274, %v4318
  %v4324 = vld [vmem:[%s350] sm:$0xf]
  %v4325 = vld [vmem:[%s350 + $0x4] sm:$0xf]
  %v4326 = vld [vmem:[%s350 + $0x8] sm:$0xf]
  %v4327 = vld [vmem:[%s350 + $0xc] sm:$0xf]
  %v4332 = vunpack.c.l.b16 %v4324
  %v4333 = vunpack.c.l.b16 %v4325
  %v4334 = vunpack.c.l.b16 %v4326
  %v4335 = vunpack.c.l.b16 %v4327
  %v4336 = vpack.c.b16 %v4333, %v4332
  %v4337 = vpack.c.b16 %v4335, %v4334
  %4338 = vrot.lane.b32.xlu0 %v4095, 123
  %v4339 = vpop.permute.xlu0 %4338
  %4340 = vrot.lane.b32.xlu0 %v4096, 123
  %v4341 = vpop.permute.xlu0 %4340
  %v4345 = vsel %vm120, %v4336, 0
  %v4348 = vsel %vm120, %v4337, 0
  %4350 = vmatpush.bf16.msra.mxu0 0
  %4351 = vmatpush.bf16.msra.mxu0 0
  %4352 = vmatpush.bf16.msra.mxu0 0
  %4353 = vmatpush.bf16.msra.mxu0 0
  %4354 = vmatpush.bf16.msra.mxu0 0
  %4355 = vmatpush.bf16.msra.mxu0 0
  %4356 = vmatpush.bf16.msra.mxu0 %v4341
  %4357 = vmatpush.bf16.msra.mxu0 %v4339
  %4358 = vmatmul.bf16.gmra.mxu0 %v4345
  %v4359 = vpop.f32.mrf.mxu0
  %v4360 = vadd.f32 0.0, %v4359
  %v4361 = vpop.f32.mrf.mxu0
  %v4362 = vadd.f32 0.0, %v4361
  %4363 = vmatmul.bf16.gmra.mxu0 %v4348
  %v4364 = vpop.f32.mrf.mxu0
  %v4365 = vadd.f32 0.0, %v4364
  %v4366 = vpop.f32.mrf.mxu0
  %v4367 = vadd.f32 0.0, %v4366
  %4368 = vdwg.mxu0
  %v4369 = vadd.f32 %v4320, %v4360
  %v4370 = vadd.f32 %v4321, %v4362
  %v4371 = vadd.f32 %v4322, %v4365
  %v4372 = vadd.f32 %v4323, %v4367
  %v4373 = vld [vmem:[%s400] sm:$0xf]
  %v4374 = vld [vmem:[%s400 + $0x4] sm:$0xf]
  %v4375 = vld [vmem:[%s400 + $0x8] sm:$0xf]
  %v4376 = vld [vmem:[%s400 + $0xc] sm:$0xf]
  %v4381 = vunpack.c.l.b16 %v4373
  %v4382 = vunpack.c.l.b16 %v4374
  %v4383 = vunpack.c.l.b16 %v4375
  %v4384 = vunpack.c.l.b16 %v4376
  %v4385 = vpack.c.b16 %v4382, %v4381
  %v4386 = vpack.c.b16 %v4384, %v4383
  %4387 = vrot.lane.b32.xlu0 %v4095, 122
  %v4388 = vpop.permute.xlu0 %4387
  %4389 = vrot.lane.b32.xlu0 %v4096, 122
  %v4390 = vpop.permute.xlu0 %4389
  %v4394 = vsel %vm120, %v4385, 0
  %v4397 = vsel %vm120, %v4386, 0
  %4399 = vmatpush.bf16.msra.mxu0 0
  %4400 = vmatpush.bf16.msra.mxu0 0
  %4401 = vmatpush.bf16.msra.mxu0 0
  %4402 = vmatpush.bf16.msra.mxu0 0
  %4403 = vmatpush.bf16.msra.mxu0 0
  %4404 = vmatpush.bf16.msra.mxu0 0
  %4405 = vmatpush.bf16.msra.mxu0 %v4390
  %4406 = vmatpush.bf16.msra.mxu0 %v4388
  %4407 = vmatmul.bf16.gmra.mxu0 %v4394
  %v4408 = vpop.f32.mrf.mxu0
  %v4409 = vadd.f32 0.0, %v4408
  %v4410 = vpop.f32.mrf.mxu0
  %v4411 = vadd.f32 0.0, %v4410
  %4412 = vmatmul.bf16.gmra.mxu0 %v4397
  %v4413 = vpop.f32.mrf.mxu0
  %v4414 = vadd.f32 0.0, %v4413
  %v4415 = vpop.f32.mrf.mxu0
  %v4416 = vadd.f32 0.0, %v4415
  %4417 = vdwg.mxu0
  %v4418 = vadd.f32 %v4369, %v4409
  %v4419 = vadd.f32 %v4370, %v4411
  %v4420 = vadd.f32 %v4371, %v4414
  %v4421 = vadd.f32 %v4372, %v4416
  %v4422 = vld [vmem:[%s450] sm:$0xf]
  %v4423 = vld [vmem:[%s450 + $0x4] sm:$0xf]
  %v4424 = vld [vmem:[%s450 + $0x8] sm:$0xf]
  %v4425 = vld [vmem:[%s450 + $0xc] sm:$0xf]
  %v4430 = vunpack.c.l.b16 %v4422
  %v4431 = vunpack.c.l.b16 %v4423
  %v4432 = vunpack.c.l.b16 %v4424
  %v4433 = vunpack.c.l.b16 %v4425
  %v4434 = vpack.c.b16 %v4431, %v4430
  %v4435 = vpack.c.b16 %v4433, %v4432
  %4436 = vrot.lane.b32.xlu0 %v4095, 121
  %v4437 = vpop.permute.xlu0 %4436
  %4438 = vrot.lane.b32.xlu0 %v4096, 121
  %v4439 = vpop.permute.xlu0 %4438
  %v4443 = vsel %vm120, %v4434, 0
  %v4446 = vsel %vm120, %v4435, 0
  %4448 = vmatpush.bf16.msra.mxu0 0
  %4449 = vmatpush.bf16.msra.mxu0 0
  %4450 = vmatpush.bf16.msra.mxu0 0
  %4451 = vmatpush.bf16.msra.mxu0 0
  %4452 = vmatpush.bf16.msra.mxu0 0
  %4453 = vmatpush.bf16.msra.mxu0 0
  %4454 = vmatpush.bf16.msra.mxu0 %v4439
  %4455 = vmatpush.bf16.msra.mxu0 %v4437
  %4456 = vmatmul.bf16.gmra.mxu0 %v4443
  %v4457 = vpop.f32.mrf.mxu0
  %v4458 = vadd.f32 0.0, %v4457
  %v4459 = vpop.f32.mrf.mxu0
  %v4460 = vadd.f32 0.0, %v4459
  %4461 = vmatmul.bf16.gmra.mxu0 %v4446
  %v4462 = vpop.f32.mrf.mxu0
  %v4463 = vadd.f32 0.0, %v4462
  %v4464 = vpop.f32.mrf.mxu0
  %v4465 = vadd.f32 0.0, %v4464
  %4466 = vdwg.mxu0
  %v4467 = vadd.f32 %v4418, %v4458
  %v4468 = vadd.f32 %v4419, %v4460
  %v4469 = vadd.f32 %v4420, %v4463
  %v4470 = vadd.f32 %v4421, %v4465
  %v4471 = vld [vmem:[%s500] sm:$0xf]
  %v4472 = vld [vmem:[%s500 + $0x4] sm:$0xf]
  %v4473 = vld [vmem:[%s500 + $0x8] sm:$0xf]
  %v4474 = vld [vmem:[%s500 + $0xc] sm:$0xf]
  %v4479 = vunpack.c.l.b16 %v4471
  %v4480 = vunpack.c.l.b16 %v4472
  %v4481 = vunpack.c.l.b16 %v4473
  %v4482 = vunpack.c.l.b16 %v4474
  %v4483 = vpack.c.b16 %v4480, %v4479
  %v4484 = vpack.c.b16 %v4482, %v4481
  %4485 = vrot.lane.b32.xlu0 %v4095, 120
  %v4486 = vpop.permute.xlu0 %4485
  %4487 = vrot.lane.b32.xlu0 %v4096, 120
  %v4488 = vpop.permute.xlu0 %4487
  %v4492 = vsel %vm120, %v4483, 0
  %v4495 = vsel %vm120, %v4484, 0
  %4497 = vmatpush.bf16.msra.mxu0 0
  %4498 = vmatpush.bf16.msra.mxu0 0
  %4499 = vmatpush.bf16.msra.mxu0 0
  %4500 = vmatpush.bf16.msra.mxu0 0
  %4501 = vmatpush.bf16.msra.mxu0 0
  %4502 = vmatpush.bf16.msra.mxu0 0
  %4503 = vmatpush.bf16.msra.mxu0 %v4488
  %4504 = vmatpush.bf16.msra.mxu0 %v4486
  %4505 = vmatmul.bf16.gmra.mxu0 %v4492
  %v4506 = vpop.f32.mrf.mxu0
  %v4507 = vadd.f32 0.0, %v4506
  %v4508 = vpop.f32.mrf.mxu0
  %v4509 = vadd.f32 0.0, %v4508
  %4510 = vmatmul.bf16.gmra.mxu0 %v4495
  %v4511 = vpop.f32.mrf.mxu0
  %v4512 = vadd.f32 0.0, %v4511
  %v4513 = vpop.f32.mrf.mxu0
  %v4514 = vadd.f32 0.0, %v4513
  %4515 = vdwg.mxu0
  %v4516 = vadd.f32 %v4467, %v4507
  %v4517 = vadd.f32 %v4468, %v4509
  %v4518 = vadd.f32 %v4469, %v4512
  %v4519 = vadd.f32 %v4470, %v4514
  %v4520 = vmax.f32 %v4516, 0.0
  %v4521 = vmax.f32 %v4517, 0.0
  %v4522 = vmax.f32 %v4518, 0.0
  %v4523 = vmax.f32 %v4519, 0.0
  %v4524 = vmul.f32 %v4520, %v52
  %v4525 = vmul.f32 %v4521, %v53
  %v4526 = vmul.f32 %v4522, %v54
  %v4527 = vmul.f32 %v4523, %v55
  %v4528 = vld [vmem:[%s567] sm:$0xff]
  %v4529 = vld [vmem:[%s567 + $0x8] sm:$0xff]
  %v4530 = vld [vmem:[%s567 + $0x10] sm:$0xff]
  %v4531 = vld [vmem:[%s567 + $0x18] sm:$0xff]
  %v4532 = vadd.f32 %v4524, %v4528
  %v4533 = vadd.f32 %v4525, %v4529
  %v4534 = vadd.f32 %v4526, %v4530
  %v4535 = vadd.f32 %v4527, %v4531
  %4536 = vst.msk [vmem:[%s567] sm:$0xff] %vm60, %v4532
  %4537 = vst.msk [vmem:[%s567 + $0x8] sm:$0xff] %vm60, %v4533
  %4538 = vst.msk [vmem:[%s567 + $0x10] sm:$0xff] %vm60, %v4534
  %4539 = vst.msk [vmem:[%s567 + $0x18] sm:$0xff] %vm60, %v4535
  // Predicated region
  $region18: #{convlr_pallas.1} parent=0 // pred_check
    _
  $region19: #{convlr_pallas.1} parent=0 // pred_check_branch
    %4541 = sbr.rel (0) target = $region21
  $region20: #{convlr_pallas.1} parent=0 // pred_region
    _
  $region21: #{convlr_pallas.1} parent=0 // pred_fallthru
    _
  // Predicated region
  $region22: #{convlr_pallas.1} parent=0 // pred_check
    _
  $region23: #{convlr_pallas.1} parent=0 // pred_check_branch
    %4543 = sbr.rel (0) target = $region25
  $region24: #{convlr_pallas.1} parent=0 // pred_region
    _
  $region25: #{convlr_pallas.1} parent=0 // pred_fallthru
    _

</llo_original>
